<compile_context>
chip_gen: v7x
topology: tpu7x:2x2x1
jax: 0.10.0
libtpu: 0.0.40
codegen_flags: <defaults>
</compile_context>

<pallas_src>
import jax
import jax.numpy as jnp
import numpy as np
from jax.experimental import pallas as pl
from jax.experimental.pallas import tpu as pltpu

LN_EPS = 1e-5

KERNEL_PARAM_ORDER = (
    "ln_w", "ln_b", "in_wx", "in_wz", "conv_wT", "conv_b",
    "w_dt", "w_B", "w_C", "dt_b", "a_logT", "d_param", "out_wT",
)


def _softplus(x):
    return jnp.maximum(x, 0.0) + jnp.log1p(jnp.exp(-jnp.abs(x)))


def _silu(x):
    return x * jax.nn.sigmoid(x)


def _largest_divisor_leq(n, cap):
    best = 1
    for d in range(1, n + 1):
        if n % d == 0 and d <= cap:
            best = d
    return best


def _pick_block_b(B, L, row_target=256):
    # fold enough batch elements per grid step that the matmul LHS has ~row_target rows
    cap = max(1, -(-row_target // max(L, 1)))
    return _largest_divisor_leq(B, cap)


# ----------------------------------------------------------------------------
# Pallas kernel: one Mamba block, `Bblk` batch elements per grid step.
# ----------------------------------------------------------------------------
def make_block_kernel(Bblk, L, D, Din, N, K, Lc, mm_dtype):
    R2 = Bblk * L
    n_chunks = L // Lc

    def kernel(x_ref, res_ref,
               ln_w_ref, ln_b_ref, in_wx_ref, in_wz_ref, conv_w_ref, conv_b_ref,
               wdt_ref, wb_ref, wc_ref, dt_b_ref, a_log_ref, d_skip_ref, out_w_ref,
               y_ref, res_out_ref,
               dA_s, dBu_s, st_s):
        # ---- fused residual add + LayerNorm (fp32), batch folded into rows ----
        x = x_ref[...].reshape(R2, D).astype(jnp.float32)
        res = res_ref[...].reshape(R2, D)
        res_new = x + res
        mean = jnp.mean(res_new, axis=-1, keepdims=True)
        ctr = res_new - mean
        var = jnp.mean(ctr * ctr, axis=-1, keepdims=True)
        h = ctr * jax.lax.rsqrt(var + LN_EPS)
        h = h * ln_w_ref[...] + ln_b_ref[...]                       # (R2, D)
        hm = h.astype(mm_dtype)

        # ---- in_proj, split into x / z halves (lane-aligned, bf16 on the MXU) ----
        x_in = jnp.dot(hm, in_wx_ref[...], preferred_element_type=jnp.float32)  # (R2, Din)
        z = jnp.dot(hm, in_wz_ref[...], preferred_element_type=jnp.float32)     # (R2, Din)

        # ---- causal depthwise conv1d (+bias), SiLU (per sequence, along L) ----
        xin3 = x_in.reshape(Bblk, L, Din)
        acc3 = jnp.broadcast_to(conv_b_ref[...].reshape(1, 1, Din), (Bblk, L, Din))
        for k in range(K):
            s = K - 1 - k
            w_k = conv_w_ref[k:k + 1, :].reshape(1, 1, Din)
            if s == 0:
                term = xin3
            else:
                term = jnp.concatenate(
                    [jnp.zeros((Bblk, s, Din), jnp.float32), xin3[:, :L - s, :]], axis=1)
            acc3 = acc3 + term * w_k
        u = _silu(acc3.reshape(R2, Din))                            # (R2, Din) fp32
        um = u.astype(mm_dtype)

        # ---- x_proj with dt_proj pre-composed; separate B / C heads ----
        dt = jnp.dot(um, wdt_ref[...], preferred_element_type=jnp.float32)      # (R2, Din)
        delta = _softplus(dt + dt_b_ref[...])                                   # (R2, Din)
        Bm = jnp.dot(um, wb_ref[...], preferred_element_type=jnp.float32)       # (R2, N)
        Cm = jnp.dot(um, wc_ref[...], preferred_element_type=jnp.float32)       # (R2, N)

        negA = -jnp.exp(a_log_ref[...])                                         # (N, Din)
        du = delta * u                                                          # (R2, Din)

        # ---- selective scan, chunked over L; recurrence runs on the VPU only ----
        def scan_step(l, st):                                       # st: (Bblk, 1, N, Din)
            dA_l = dA_s[:, pl.ds(l, 1), :, :]
            dBu_l = dBu_s[:, pl.ds(l, 1), :, :]
            st = dA_l * st + dBu_l
            st_s[:, pl.ds(l, 1), :, :] = st
            return st

        state = jnp.zeros((Bblk, 1, N, Din), jnp.float32)
        y_pieces = [[None] * n_chunks for _ in range(Bblk)]
        for c in range(n_chunks):
            # materialize this chunk's deltaA / deltaB*u into VMEM scratch
            for b in range(Bblk):
                r0 = b * L + c * Lc
                delta_b = delta[r0:r0 + Lc, :]                      # (Lc, Din)
                du_b = du[r0:r0 + Lc, :]                            # (Lc, Din)
                B_b = Bm[r0:r0 + Lc, :]                             # (Lc, N)
                dA_s[b, :, :, :] = jnp.exp(delta_b[:, None, :] * negA[None, :, :])
                dBu_s[b, :, :, :] = B_b[:, :, None] * du_b[:, None, :]
            # sequential recurrence over the chunk (element-wise FMA, no MXU)
            state = jax.lax.fori_loop(0, Lc, scan_step, state)
            # chunk outputs: one VPU multiply + reduce over N
            for b in range(Bblk):
                r0 = b * L + c * Lc
                C_b = Cm[r0:r0 + Lc, :]                             # (Lc, N)
                states_b = st_s[b, :, :, :]                         # (Lc, N, Din)
                y_pieces[b][c] = jnp.sum(C_b[:, :, None] * states_b, axis=1)    # (Lc, Din)

        per_b = [y_pieces[b][0] if n_chunks == 1
                 else jnp.concatenate(y_pieces[b], axis=0) for b in range(Bblk)]
        y = per_b[0] if Bblk == 1 else jnp.concatenate(per_b, axis=0)           # (R2, Din)

        # ---- skip, gate, out_proj ----
        y = y + u * d_skip_ref[...]
        y = y * _silu(z)
        out = jnp.dot(y.astype(mm_dtype), out_w_ref[...],
                      preferred_element_type=jnp.float32)                       # (R2, D)

        y_ref[...] = out.reshape(Bblk, L, D)
        res_out_ref[...] = res_new.reshape(Bblk, L, D)

    return kernel


def mamba_block_pallas(x, residual, kp, *, block_b=None, chunk=None):
    B, L, D = x.shape
    Din = kp["w_dt"].shape[0]
    N = kp["a_logT"].shape[0]
    K = kp["conv_wT"].shape[0]
    mm_dtype = kp["in_wx"].dtype

    if block_b is None:
        block_b = _pick_block_b(B, L)
    assert B % block_b == 0
    if chunk is None:
        chunk = _largest_divisor_leq(L, 128)
    assert L % chunk == 0

    kernel = make_block_kernel(block_b, L, D, Din, N, K, chunk, mm_dtype)
    param_arrays = [kp[k] for k in KERNEL_PARAM_ORDER]

    act_spec = pl.BlockSpec((block_b, L, D), lambda b: (b, 0, 0))

    def full_spec(arr):
        nd = arr.ndim
        return pl.BlockSpec(arr.shape, lambda b, _nd=nd: (0,) * _nd)

    # advisory cost estimate so XLA schedules the per-layer calls sensibly
    flops = int(2 * B * L * (D * 2 * Din + Din * (Din + 2 * N) + Din * D)
                + 8 * B * L * N * Din)
    transcendentals = int(B * L * (N * Din + 6 * Din))
    bytes_accessed = int(4 * 4 * B * L * D
                         + sum(a.size * a.dtype.itemsize for a in param_arrays))

    fn = pl.pallas_call(
        kernel,
        out_shape=(jax.ShapeDtypeStruct((B, L, D), jnp.float32),
                   jax.ShapeDtypeStruct((B, L, D), jnp.float32)),
        grid_spec=pltpu.PrefetchScalarGridSpec(
            num_scalar_prefetch=0,
            grid=(B // block_b,),
            in_specs=[act_spec, act_spec] + [full_spec(a) for a in param_arrays],
            out_specs=(act_spec, act_spec),
            scratch_shapes=[
                pltpu.VMEM((block_b, chunk, N, Din), jnp.float32),   # deltaA chunk
                pltpu.VMEM((block_b, chunk, N, Din), jnp.float32),   # deltaB*u chunk
                pltpu.VMEM((block_b, chunk, N, Din), jnp.float32),   # states chunk
            ],
        ),
        compiler_params=pltpu.CompilerParams(
            dimension_semantics=("parallel",),
            vmem_limit_bytes=48 * 1024 * 1024,
        ),
        cost_estimate=pl.CostEstimate(flops=flops,
                                      transcendentals=transcendentals,
                                      bytes_accessed=bytes_accessed),
    )
    return fn(x, residual, *param_arrays)


@jax.jit
def mamba_model_forward(x, layer_params):
    x = x.astype(jnp.float32)
    residual = x
    y = None
    for p in layer_params:
        y, residual = mamba_block_pallas(x, residual, p)
    return y


# ----------------------------------------------------------------------------
# Deterministic parameter init (shapes follow mamba_ssm defaults:
# d_state=16, d_conv=4, expand=2, dt_rank=ceil(dim/16)).
# ----------------------------------------------------------------------------
def init_raw_params(key, D, num_layers, d_state=16, d_conv=4, expand=2):
    Din = expand * D
    R = max(1, -(-D // 16))
    layers = []
    for lk in jax.random.split(key, num_layers):
        ks = jax.random.split(lk, 8)
        layers.append(dict(
            ln_w=1.0 + 0.1 * jax.random.normal(ks[7], (D,), jnp.float32),
            ln_b=jnp.zeros((D,), jnp.float32),
            in_w=jax.random.normal(ks[0], (2 * Din, D), jnp.float32) / np.sqrt(D),
            conv_w=jax.random.normal(ks[1], (Din, d_conv), jnp.float32) / np.sqrt(d_conv),
            conv_b=0.1 * jax.random.normal(ks[2], (Din,), jnp.float32),
            xproj_w=jax.random.normal(ks[3], (R + 2 * d_state, Din), jnp.float32) / np.sqrt(Din),
            dt_w=jax.random.normal(ks[4], (Din, R), jnp.float32) / np.sqrt(R),
            dt_b=0.1 * jax.random.normal(ks[5], (Din,), jnp.float32),
            out_w=jax.random.normal(ks[6], (D, Din), jnp.float32) / np.sqrt(Din),
            a_log=jnp.log(jnp.tile(jnp.arange(1, d_state + 1, dtype=jnp.float32)[None, :],
                                   (Din, 1))),                      # (Din, N) S4D-real init
            d_param=jnp.ones((Din,), jnp.float32),
        ))
    return layers


def prepare_layer_params(raw, mm_dtype=jnp.bfloat16):
    """Convert torch-layout weights into the kernel layout (pre-transposed, dt pre-composed)."""
    Din, R = raw["dt_w"].shape
    N = raw["a_log"].shape[1]
    D = raw["in_w"].shape[1]
    in_wT = raw["in_w"].T                                # (D, 2*Din)
    xprojT = raw["xproj_w"].T                            # (Din, R + 2N)
    w_dt = xprojT[:, :R] @ raw["dt_w"].T                 # (Din, Din) pre-composed dt path
    return dict(
        ln_w=raw["ln_w"].reshape(1, D),
        ln_b=raw["ln_b"].reshape(1, D),
        in_wx=in_wT[:, :Din].astype(mm_dtype),
        in_wz=in_wT[:, Din:].astype(mm_dtype),
        conv_wT=raw["conv_w"].T,                         # (K, Din) fp32 (element-wise use)
        conv_b=raw["conv_b"].reshape(1, Din),
        w_dt=w_dt.astype(mm_dtype),
        w_B=xprojT[:, R:R + N].astype(mm_dtype),
        w_C=xprojT[:, R + N:].astype(mm_dtype),
        dt_b=raw["dt_b"].reshape(1, Din),
        a_logT=raw["a_log"].T,                           # (N, Din) fp32
        d_param=raw["d_param"].reshape(1, Din),
        out_wT=raw["out_w"].T.astype(mm_dtype),          # (Din, D)
    )


# ----------------------------------------------------------------------------
# Pure-JAX reference (mirrors mamba_ssm selective_scan_ref semantics, fp32).
# ----------------------------------------------------------------------------
def mamba_block_ref(x, residual, p):
    Bsz, L, D = x.shape
    Din, R = p["dt_w"].shape
    N = p["a_log"].shape[1]
    K = p["conv_w"].shape[1]

    res_new = x.astype(jnp.float32) + residual
    mean = res_new.mean(-1, keepdims=True)
    var = ((res_new - mean) ** 2).mean(-1, keepdims=True)
    h = (res_new - mean) / jnp.sqrt(var + LN_EPS) * p["ln_w"] + p["ln_b"]

    xz = h @ p["in_w"].T
    x_in, z = xz[..., :Din], xz[..., Din:]
    xp = jnp.concatenate([jnp.zeros((Bsz, K - 1, Din), jnp.float32), x_in], axis=1)
    conv = jnp.broadcast_to(p["conv_b"], (Bsz, L, Din))
    for k in range(K):
        conv = conv + xp[:, k:k + L, :] * p["conv_w"][:, k]
    u = conv * jax.nn.sigmoid(conv)

    x_dbl = u @ p["xproj_w"].T
    dt = x_dbl[..., :R] @ p["dt_w"].T
    delta = jax.nn.softplus(dt + p["dt_b"])
    Bm, Cm = x_dbl[..., R:R + N], x_dbl[..., R + N:]
    A = -jnp.exp(p["a_log"])                             # (Din, N)

    def step(state, inp):
        d_l, u_l, b_l, c_l = inp                         # (B,Din),(B,Din),(B,N),(B,N)
        dA = jnp.exp(d_l[..., None] * A)                 # (B, Din, N)
        dBu = (d_l * u_l)[..., None] * b_l[:, None, :]
        state = dA * state + dBu
        return state, jnp.einsum("bdn,bn->bd", state, c_l)

    inputs = tuple(jnp.moveaxis(a, 1, 0) for a in (delta, u, Bm, Cm))
    _, ys = jax.lax.scan(step, jnp.zeros((Bsz, Din, N), jnp.float32), inputs)
    y = jnp.moveaxis(ys, 0, 1)
    y = y + u * p["d_param"]
    y = y * (z * jax.nn.sigmoid(z))
    return y @ p["out_w"].T, res_new


if __name__ == "__main__":
    key = jax.random.PRNGKey(0)
    B, L, D = 2, 8, 32          # batch, seq, d_model -> d_inner=64, d_state=16, dt_rank=2
    num_layers = 2
    kx, kp = jax.random.split(key)
    x = jax.random.normal(kx, (B, L, D), jnp.float32)
    raw_layers = init_raw_params(kp, D, num_layers)

    # pure-JAX fp32 reference
    residual = x
    y_ref = None
    for p in raw_layers:
        y_ref, residual = mamba_block_ref(x, residual, p)
    y_ref = np.asarray(jax.block_until_ready(y_ref))

    # 1) fp32-matmul kernel: tight check on the math
    params_f32 = [prepare_layer_params(p, jnp.float32) for p in raw_layers]
    y32 = jax.block_until_ready(mamba_model_forward(x, params_f32))
    np.testing.assert_allclose(np.asarray(y32), y_ref, rtol=1e-3, atol=1e-3)

    # 2) bf16-matmul kernel (default perf configuration): loose check (bf16 rounding)
    params_bf16 = [prepare_layer_params(p, jnp.bfloat16) for p in raw_layers]
    y16 = jax.block_until_ready(mamba_model_forward(x, params_bf16))
    np.testing.assert_allclose(np.asarray(y16), y_ref, rtol=1e-1, atol=1e-1)

    print("KERNEL_OK")
</pallas_src>

<mosaic_0001>
module attributes {stable_mosaic.version = 11 : i64} {
  func.func @kernel(%arg0: i32, %arg1: memref<2x8x32xf32, #tpu.memory_space<vmem>>, %arg2: memref<2x8x32xf32, #tpu.memory_space<vmem>>, %arg3: memref<1x32xf32, #tpu.memory_space<vmem>>, %arg4: memref<1x32xf32, #tpu.memory_space<vmem>>, %arg5: memref<32x64xf32, #tpu.memory_space<vmem>>, %arg6: memref<32x64xf32, #tpu.memory_space<vmem>>, %arg7: memref<4x64xf32, #tpu.memory_space<vmem>>, %arg8: memref<1x64xf32, #tpu.memory_space<vmem>>, %arg9: memref<64x64xf32, #tpu.memory_space<vmem>>, %arg10: memref<64x16xf32, #tpu.memory_space<vmem>>, %arg11: memref<64x16xf32, #tpu.memory_space<vmem>>, %arg12: memref<1x64xf32, #tpu.memory_space<vmem>>, %arg13: memref<16x64xf32, #tpu.memory_space<vmem>>, %arg14: memref<1x64xf32, #tpu.memory_space<vmem>>, %arg15: memref<64x32xf32, #tpu.memory_space<vmem>>, %arg16: memref<2x8x32xf32, #tpu.memory_space<vmem>>, %arg17: memref<2x8x32xf32, #tpu.memory_space<vmem>>, %arg18: memref<2x8x16x64xf32, #tpu.memory_space<vmem>>, %arg19: memref<2x8x16x64xf32, #tpu.memory_space<vmem>>, %arg20: memref<2x8x16x64xf32, #tpu.memory_space<vmem>>) attributes {dimension_semantics = [#tpu.dimension_semantics<parallel>], iteration_bounds = array<i64: 1>, scalar_prefetch = 0 : i64, scratch_operands = 3 : i64, tpu.core_type = #tpu.core_type<tc>, window_params = [{transform_indices = @transform_0, window_bounds = array<i64: 2, 8, 32>}, {transform_indices = @transform_1, window_bounds = array<i64: 2, 8, 32>}, {pipeline_mode = #tpu.pipeline_mode<synchronous>, transform_indices = @transform_2, window_bounds = array<i64: 1, 32>}, {pipeline_mode = #tpu.pipeline_mode<synchronous>, transform_indices = @transform_3, window_bounds = array<i64: 1, 32>}, {pipeline_mode = #tpu.pipeline_mode<synchronous>, transform_indices = @transform_4, window_bounds = array<i64: 32, 64>}, {pipeline_mode = #tpu.pipeline_mode<synchronous>, transform_indices = @transform_5, window_bounds = array<i64: 32, 64>}, {pipeline_mode = #tpu.pipeline_mode<synchronous>, transform_indices = @transform_6, window_bounds = array<i64: 4, 64>}, {pipeline_mode = #tpu.pipeline_mode<synchronous>, transform_indices = @transform_7, window_bounds = array<i64: 1, 64>}, {pipeline_mode = #tpu.pipeline_mode<synchronous>, transform_indices = @transform_8, window_bounds = array<i64: 64, 64>}, {pipeline_mode = #tpu.pipeline_mode<synchronous>, transform_indices = @transform_9, window_bounds = array<i64: 64, 16>}, {pipeline_mode = #tpu.pipeline_mode<synchronous>, transform_indices = @transform_10, window_bounds = array<i64: 64, 16>}, {pipeline_mode = #tpu.pipeline_mode<synchronous>, transform_indices = @transform_11, window_bounds = array<i64: 1, 64>}, {pipeline_mode = #tpu.pipeline_mode<synchronous>, transform_indices = @transform_12, window_bounds = array<i64: 16, 64>}, {pipeline_mode = #tpu.pipeline_mode<synchronous>, transform_indices = @transform_13, window_bounds = array<i64: 1, 64>}, {pipeline_mode = #tpu.pipeline_mode<synchronous>, transform_indices = @transform_14, window_bounds = array<i64: 64, 32>}, {transform_indices = @transform_15, window_bounds = array<i64: 2, 8, 32>}, {transform_indices = @transform_16, window_bounds = array<i64: 2, 8, 32>}]} {
    %c0 = arith.constant 0 : index
    %c0_0 = arith.constant 0 : index
    %c0_1 = arith.constant 0 : index
    %0 = vector.load %arg1[%c0, %c0_0, %c0_1] : memref<2x8x32xf32, #tpu.memory_space<vmem>>, vector<2x8x32xf32>
    %1 = vector.shape_cast %0 : vector<2x8x32xf32> to vector<16x32xf32>
    %c0_2 = arith.constant 0 : index
    %c0_3 = arith.constant 0 : index
    %c0_4 = arith.constant 0 : index
    %2 = vector.load %arg2[%c0_2, %c0_3, %c0_4] : memref<2x8x32xf32, #tpu.memory_space<vmem>>, vector<2x8x32xf32>
    %3 = vector.shape_cast %2 : vector<2x8x32xf32> to vector<16x32xf32>
    %4 = arith.addf %1, %3 : vector<16x32xf32>
    %cst = arith.constant dense<0.000000e+00> : vector<16xf32>
    %5 = vector.multi_reduction <add>, %4, %cst [1] : vector<16x32xf32> to vector<16xf32>
    %6 = vector.shape_cast %5 : vector<16xf32> to vector<16x1xf32>
    %cst_5 = arith.constant 3.200000e+01 : f32
    %7 = vector.broadcast %cst_5 : f32 to vector<16x1xf32>
    %8 = arith.divf %6, %7 : vector<16x1xf32>
    %9 = vector.broadcast %8 : vector<16x1xf32> to vector<16x32xf32>
    %10 = arith.subf %4, %9 : vector<16x32xf32>
    %11 = arith.mulf %10, %10 : vector<16x32xf32>
    %cst_6 = arith.constant dense<0.000000e+00> : vector<16xf32>
    %12 = vector.multi_reduction <add>, %11, %cst_6 [1] : vector<16x32xf32> to vector<16xf32>
    %13 = vector.shape_cast %12 : vector<16xf32> to vector<16x1xf32>
    %cst_7 = arith.constant 3.200000e+01 : f32
    %14 = vector.broadcast %cst_7 : f32 to vector<16x1xf32>
    %15 = arith.divf %13, %14 : vector<16x1xf32>
    %cst_8 = arith.constant 9.99999974E-6 : f32
    %16 = vector.broadcast %cst_8 : f32 to vector<16x1xf32>
    %17 = arith.addf %15, %16 : vector<16x1xf32>
    %18 = math.rsqrt %17 : vector<16x1xf32>
    %19 = vector.broadcast %18 : vector<16x1xf32> to vector<16x32xf32>
    %20 = arith.mulf %10, %19 : vector<16x32xf32>
    %c0_9 = arith.constant 0 : index
    %c0_10 = arith.constant 0 : index
    %21 = vector.load %arg3[%c0_9, %c0_10] : memref<1x32xf32, #tpu.memory_space<vmem>>, vector<1x32xf32>
    %22 = vector.broadcast %21 : vector<1x32xf32> to vector<16x32xf32>
    %23 = arith.mulf %20, %22 : vector<16x32xf32>
    %c0_11 = arith.constant 0 : index
    %c0_12 = arith.constant 0 : index
    %24 = vector.load %arg4[%c0_11, %c0_12] : memref<1x32xf32, #tpu.memory_space<vmem>>, vector<1x32xf32>
    %25 = vector.broadcast %24 : vector<1x32xf32> to vector<16x32xf32>
    %26 = arith.addf %23, %25 : vector<16x32xf32>
    %c0_13 = arith.constant 0 : index
    %c0_14 = arith.constant 0 : index
    %27 = vector.load %arg5[%c0_13, %c0_14] : memref<32x64xf32, #tpu.memory_space<vmem>>, vector<32x64xf32>
    %cst_15 = arith.constant dense<0.000000e+00> : vector<16x64xf32>
    %28 = tpu.matmul %26, %27, %cst_15 {dimension_numbers = #tpu.dot_dimension_numbers<[1], [0], [0], [1], [0, 0, 1, 1], [], []>} : vector<16x32xf32>, vector<32x64xf32>, vector<16x64xf32> -> vector<16x64xf32>
    %c0_16 = arith.constant 0 : index
    %c0_17 = arith.constant 0 : index
    %29 = vector.load %arg6[%c0_16, %c0_17] : memref<32x64xf32, #tpu.memory_space<vmem>>, vector<32x64xf32>
    %cst_18 = arith.constant dense<0.000000e+00> : vector<16x64xf32>
    %30 = tpu.matmul %26, %29, %cst_18 {dimension_numbers = #tpu.dot_dimension_numbers<[1], [0], [0], [1], [0, 0, 1, 1], [], []>} : vector<16x32xf32>, vector<32x64xf32>, vector<16x64xf32> -> vector<16x64xf32>
    %31 = vector.shape_cast %28 : vector<16x64xf32> to vector<2x8x64xf32>
    %c0_19 = arith.constant 0 : index
    %c0_20 = arith.constant 0 : index
    %32 = vector.load %arg8[%c0_19, %c0_20] : memref<1x64xf32, #tpu.memory_space<vmem>>, vector<1x64xf32>
    %33 = vector.shape_cast %32 : vector<1x64xf32> to vector<1x1x64xf32>
    %34 = vector.shape_cast %33 : vector<1x1x64xf32> to vector<1x1x64xf32>
    %35 = vector.broadcast %34 : vector<1x1x64xf32> to vector<2x8x64xf32>
    %c0_21 = arith.constant 0 : index
    %c0_22 = arith.constant 0 : index
    %36 = vector.load %arg7[%c0_21, %c0_22] : memref<4x64xf32, #tpu.memory_space<vmem>>, vector<1x64xf32>
    %37 = vector.shape_cast %36 : vector<1x64xf32> to vector<1x1x64xf32>
    %cst_23 = arith.constant 0.000000e+00 : f32
    %38 = vector.broadcast %cst_23 : f32 to vector<2x3x64xf32>
    %39 = vector.extract_strided_slice %31 {offsets = [0, 0, 0], sizes = [2, 5, 64], strides = [1, 1, 1]} : vector<2x8x64xf32> to vector<2x5x64xf32>
    %40 = tpu.concatenate %38, %39 in 1 : vector<2x3x64xf32>, vector<2x5x64xf32> -> vector<2x8x64xf32>
    %41 = vector.broadcast %37 : vector<1x1x64xf32> to vector<2x8x64xf32>
    %42 = arith.mulf %40, %41 : vector<2x8x64xf32>
    %43 = arith.addf %35, %42 : vector<2x8x64xf32>
    %c1 = arith.constant 1 : index
    %c0_24 = arith.constant 0 : index
    %44 = vector.load %arg7[%c1, %c0_24] : memref<4x64xf32, #tpu.memory_space<vmem>>, vector<1x64xf32>
    %45 = vector.shape_cast %44 : vector<1x64xf32> to vector<1x1x64xf32>
    %cst_25 = arith.constant 0.000000e+00 : f32
    %46 = vector.broadcast %cst_25 : f32 to vector<2x2x64xf32>
    %47 = vector.extract_strided_slice %31 {offsets = [0, 0, 0], sizes = [2, 6, 64], strides = [1, 1, 1]} : vector<2x8x64xf32> to vector<2x6x64xf32>
    %48 = tpu.concatenate %46, %47 in 1 : vector<2x2x64xf32>, vector<2x6x64xf32> -> vector<2x8x64xf32>
    %49 = vector.broadcast %45 : vector<1x1x64xf32> to vector<2x8x64xf32>
    %50 = arith.mulf %48, %49 : vector<2x8x64xf32>
    %51 = arith.addf %43, %50 : vector<2x8x64xf32>
    %c2 = arith.constant 2 : index
    %c0_26 = arith.constant 0 : index
    %52 = vector.load %arg7[%c2, %c0_26] : memref<4x64xf32, #tpu.memory_space<vmem>>, vector<1x64xf32>
    %53 = vector.shape_cast %52 : vector<1x64xf32> to vector<1x1x64xf32>
    %cst_27 = arith.constant 0.000000e+00 : f32
    %54 = vector.broadcast %cst_27 : f32 to vector<2x1x64xf32>
    %55 = vector.extract_strided_slice %31 {offsets = [0, 0, 0], sizes = [2, 7, 64], strides = [1, 1, 1]} : vector<2x8x64xf32> to vector<2x7x64xf32>
    %56 = tpu.concatenate %54, %55 in 1 : vector<2x1x64xf32>, vector<2x7x64xf32> -> vector<2x8x64xf32>
    %57 = vector.broadcast %53 : vector<1x1x64xf32> to vector<2x8x64xf32>
    %58 = arith.mulf %56, %57 : vector<2x8x64xf32>
    %59 = arith.addf %51, %58 : vector<2x8x64xf32>
    %c3 = arith.constant 3 : index
    %c0_28 = arith.constant 0 : index
    %60 = vector.load %arg7[%c3, %c0_28] : memref<4x64xf32, #tpu.memory_space<vmem>>, vector<1x64xf32>
    %61 = vector.shape_cast %60 : vector<1x64xf32> to vector<1x1x64xf32>
    %62 = vector.broadcast %61 : vector<1x1x64xf32> to vector<2x8x64xf32>
    %63 = arith.mulf %31, %62 : vector<2x8x64xf32>
    %64 = arith.addf %59, %63 : vector<2x8x64xf32>
    %65 = vector.shape_cast %64 : vector<2x8x64xf32> to vector<16x64xf32>
    %66 = arith.negf %65 : vector<16x64xf32>
    %67 = math.exp %66 : vector<16x64xf32>
    %cst_29 = arith.constant 1.000000e+00 : f32
    %68 = vector.broadcast %cst_29 : f32 to vector<16x64xf32>
    %69 = arith.addf %68, %67 : vector<16x64xf32>
    %70 = arith.divf %68, %69 : vector<16x64xf32>
    %71 = arith.mulf %65, %70 : vector<16x64xf32>
    %c0_30 = arith.constant 0 : index
    %c0_31 = arith.constant 0 : index
    %72 = vector.load %arg9[%c0_30, %c0_31] : memref<64x64xf32, #tpu.memory_space<vmem>>, vector<64x64xf32>
    %cst_32 = arith.constant dense<0.000000e+00> : vector<16x64xf32>
    %73 = tpu.matmul %71, %72, %cst_32 {dimension_numbers = #tpu.dot_dimension_numbers<[1], [0], [0], [1], [0, 0, 1, 1], [], []>} : vector<16x64xf32>, vector<64x64xf32>, vector<16x64xf32> -> vector<16x64xf32>
    %c0_33 = arith.constant 0 : index
    %c0_34 = arith.constant 0 : index
    %74 = vector.load %arg12[%c0_33, %c0_34] : memref<1x64xf32, #tpu.memory_space<vmem>>, vector<1x64xf32>
    %75 = vector.broadcast %74 : vector<1x64xf32> to vector<16x64xf32>
    %76 = arith.addf %73, %75 : vector<16x64xf32>
    %cst_35 = arith.constant 0.000000e+00 : f32
    %77 = vector.broadcast %cst_35 : f32 to vector<16x64xf32>
    %78 = arith.maximumf %76, %77 : vector<16x64xf32>
    %79 = math.absf %76 : vector<16x64xf32>
    %cst_36 = arith.constant 0.000000e+00 : f32
    %80 = vector.broadcast %cst_36 : f32 to vector<16x64xf32>
    %81 = arith.subf %80, %79 : vector<16x64xf32>
    %82 = math.exp %81 : vector<16x64xf32>
    %83 = math.log1p %82 : vector<16x64xf32>
    %84 = arith.addf %78, %83 : vector<16x64xf32>
    %c0_37 = arith.constant 0 : index
    %c0_38 = arith.constant 0 : index
    %85 = vector.load %arg10[%c0_37, %c0_38] : memref<64x16xf32, #tpu.memory_space<vmem>>, vector<64x16xf32>
    %cst_39 = arith.constant dense<0.000000e+00> : vector<16x16xf32>
    %86 = tpu.matmul %71, %85, %cst_39 {dimension_numbers = #tpu.dot_dimension_numbers<[1], [0], [0], [1], [0, 0, 1, 1], [], []>} : vector<16x64xf32>, vector<64x16xf32>, vector<16x16xf32> -> vector<16x16xf32>
    %c0_40 = arith.constant 0 : index
    %c0_41 = arith.constant 0 : index
    %87 = vector.load %arg11[%c0_40, %c0_41] : memref<64x16xf32, #tpu.memory_space<vmem>>, vector<64x16xf32>
    %cst_42 = arith.constant dense<0.000000e+00> : vector<16x16xf32>
    %88 = tpu.matmul %71, %87, %cst_42 {dimension_numbers = #tpu.dot_dimension_numbers<[1], [0], [0], [1], [0, 0, 1, 1], [], []>} : vector<16x64xf32>, vector<64x16xf32>, vector<16x16xf32> -> vector<16x16xf32>
    %c0_43 = arith.constant 0 : index
    %c0_44 = arith.constant 0 : index
    %89 = vector.load %arg13[%c0_43, %c0_44] : memref<16x64xf32, #tpu.memory_space<vmem>>, vector<16x64xf32>
    %90 = math.exp %89 : vector<16x64xf32>
    %cst_45 = arith.constant 0.000000e+00 : f32
    %91 = vector.broadcast %cst_45 : f32 to vector<16x64xf32>
    %92 = arith.subf %91, %90 : vector<16x64xf32>
    %93 = arith.mulf %84, %71 : vector<16x64xf32>
    %cst_46 = arith.constant 0.000000e+00 : f32
    %94 = vector.broadcast %cst_46 : f32 to vector<2x1x16x64xf32>
    %95 = vector.extract_strided_slice %84 {offsets = [0, 0], sizes = [8, 64], strides = [1, 1]} : vector<16x64xf32> to vector<8x64xf32>
    %96 = vector.extract_strided_slice %93 {offsets = [0, 0], sizes = [8, 64], strides = [1, 1]} : vector<16x64xf32> to vector<8x64xf32>
    %97 = vector.extract_strided_slice %86 {offsets = [0, 0], sizes = [8, 16], strides = [1, 1]} : vector<16x16xf32> to vector<8x16xf32>
    %98 = vector.shape_cast %95 : vector<8x64xf32> to vector<8x1x64xf32>
    %99 = vector.shape_cast %92 : vector<16x64xf32> to vector<1x16x64xf32>
    %100 = vector.broadcast %98 : vector<8x1x64xf32> to vector<8x16x64xf32>
    %101 = vector.broadcast %99 : vector<1x16x64xf32> to vector<8x16x64xf32>
    %102 = arith.mulf %100, %101 : vector<8x16x64xf32>
    %103 = math.exp %102 : vector<8x16x64xf32>
    %c0_47 = arith.constant 0 : index
    %c0_48 = arith.constant 0 : index
    %c0_49 = arith.constant 0 : index
    %c0_50 = arith.constant 0 : index
    %104 = vector.load %arg18[%c0_47, %c0_48, %c0_49, %c0_50] : memref<2x8x16x64xf32, #tpu.memory_space<vmem>>, vector<1x8x16x64xf32>
    %105 = vector.shape_cast %104 : vector<1x8x16x64xf32> to vector<8x16x64xf32>
    %106 = vector.shape_cast %103 : vector<8x16x64xf32> to vector<1x8x16x64xf32>
    tpu.vector_store %arg18[%c0_47, %c0_48, %c0_49, %c0_50], %106 {strides = array<i32>} : memref<2x8x16x64xf32, #tpu.memory_space<vmem>>, vector<1x8x16x64xf32>,
    %107 = vector.shape_cast %97 : vector<8x16xf32> to vector<8x16x1xf32>
    %108 = vector.shape_cast %96 : vector<8x64xf32> to vector<8x1x64xf32>
    %109 = vector.broadcast %107 : vector<8x16x1xf32> to vector<8x16x64xf32>
    %110 = vector.broadcast %108 : vector<8x1x64xf32> to vector<8x16x64xf32>
    %111 = arith.mulf %109, %110 : vector<8x16x64xf32>
    %c0_51 = arith.constant 0 : index
    %c0_52 = arith.constant 0 : index
    %c0_53 = arith.constant 0 : index
    %c0_54 = arith.constant 0 : index
    %112 = vector.load %arg19[%c0_51, %c0_52, %c0_53, %c0_54] : memref<2x8x16x64xf32, #tpu.memory_space<vmem>>, vector<1x8x16x64xf32>
    %113 = vector.shape_cast %112 : vector<1x8x16x64xf32> to vector<8x16x64xf32>
    %114 = vector.shape_cast %111 : vector<8x16x64xf32> to vector<1x8x16x64xf32>
    tpu.vector_store %arg19[%c0_51, %c0_52, %c0_53, %c0_54], %114 {strides = array<i32>} : memref<2x8x16x64xf32, #tpu.memory_space<vmem>>, vector<1x8x16x64xf32>,
    %115 = vector.extract_strided_slice %84 {offsets = [8, 0], sizes = [8, 64], strides = [1, 1]} : vector<16x64xf32> to vector<8x64xf32>
    %116 = vector.extract_strided_slice %93 {offsets = [8, 0], sizes = [8, 64], strides = [1, 1]} : vector<16x64xf32> to vector<8x64xf32>
    %117 = vector.extract_strided_slice %86 {offsets = [8, 0], sizes = [8, 16], strides = [1, 1]} : vector<16x16xf32> to vector<8x16xf32>
    %118 = vector.shape_cast %115 : vector<8x64xf32> to vector<8x1x64xf32>
    %119 = vector.shape_cast %92 : vector<16x64xf32> to vector<1x16x64xf32>
    %120 = vector.broadcast %118 : vector<8x1x64xf32> to vector<8x16x64xf32>
    %121 = vector.broadcast %119 : vector<1x16x64xf32> to vector<8x16x64xf32>
    %122 = arith.mulf %120, %121 : vector<8x16x64xf32>
    %123 = math.exp %122 : vector<8x16x64xf32>
    %c1_55 = arith.constant 1 : index
    %c0_56 = arith.constant 0 : index
    %c0_57 = arith.constant 0 : index
    %c0_58 = arith.constant 0 : index
    %124 = vector.load %arg18[%c1_55, %c0_56, %c0_57, %c0_58] : memref<2x8x16x64xf32, #tpu.memory_space<vmem>>, vector<1x8x16x64xf32>
    %125 = vector.shape_cast %124 : vector<1x8x16x64xf32> to vector<8x16x64xf32>
    %126 = vector.shape_cast %123 : vector<8x16x64xf32> to vector<1x8x16x64xf32>
    tpu.vector_store %arg18[%c1_55, %c0_56, %c0_57, %c0_58], %126 {strides = array<i32>} : memref<2x8x16x64xf32, #tpu.memory_space<vmem>>, vector<1x8x16x64xf32>,
    %127 = vector.shape_cast %117 : vector<8x16xf32> to vector<8x16x1xf32>
    %128 = vector.shape_cast %116 : vector<8x64xf32> to vector<8x1x64xf32>
    %129 = vector.broadcast %127 : vector<8x16x1xf32> to vector<8x16x64xf32>
    %130 = vector.broadcast %128 : vector<8x1x64xf32> to vector<8x16x64xf32>
    %131 = arith.mulf %129, %130 : vector<8x16x64xf32>
    %c1_59 = arith.constant 1 : index
    %c0_60 = arith.constant 0 : index
    %c0_61 = arith.constant 0 : index
    %c0_62 = arith.constant 0 : index
    %132 = vector.load %arg19[%c1_59, %c0_60, %c0_61, %c0_62] : memref<2x8x16x64xf32, #tpu.memory_space<vmem>>, vector<1x8x16x64xf32>
    %133 = vector.shape_cast %132 : vector<1x8x16x64xf32> to vector<8x16x64xf32>
    %134 = vector.shape_cast %131 : vector<8x16x64xf32> to vector<1x8x16x64xf32>
    tpu.vector_store %arg19[%c1_59, %c0_60, %c0_61, %c0_62], %134 {strides = array<i32>} : memref<2x8x16x64xf32, #tpu.memory_space<vmem>>, vector<1x8x16x64xf32>,
    %c0_i32 = arith.constant 0 : i32
    %c8_i32 = arith.constant 8 : i32
    %135 = arith.addi %c0_i32, %c8_i32 : i32
    %c1_i32 = arith.constant 1 : i32
    %136 = scf.for %arg21 = %c0_i32 to %135 step %c1_i32 iter_args(%arg22 = %94) -> (vector<2x1x16x64xf32>)  : i32 {
      %c0_86 = arith.constant 0 : index
      %169 = arith.index_cast %arg21 : i32 to index
      %c0_87 = arith.constant 0 : index
      %c0_88 = arith.constant 0 : index
      %170 = vector.load %arg18[%c0_86, %169, %c0_87, %c0_88] : memref<2x8x16x64xf32, #tpu.memory_space<vmem>>, vector<2x1x16x64xf32>
      %c0_89 = arith.constant 0 : index
      %171 = arith.index_cast %arg21 : i32 to index
      %c0_90 = arith.constant 0 : index
      %c0_91 = arith.constant 0 : index
      %172 = vector.load %arg19[%c0_89, %171, %c0_90, %c0_91] : memref<2x8x16x64xf32, #tpu.memory_space<vmem>>, vector<2x1x16x64xf32>
      %173 = arith.mulf %170, %arg22 : vector<2x1x16x64xf32>
      %174 = arith.addf %173, %172 : vector<2x1x16x64xf32>
      %c0_92 = arith.constant 0 : index
      %175 = arith.index_cast %arg21 : i32 to index
      %c0_93 = arith.constant 0 : index
      %c0_94 = arith.constant 0 : index
      %176 = vector.load %arg20[%c0_92, %175, %c0_93, %c0_94] : memref<2x8x16x64xf32, #tpu.memory_space<vmem>>, vector<2x1x16x64xf32>
      tpu.vector_store %arg20[%c0_92, %175, %c0_93, %c0_94], %174 {strides = array<i32>} : memref<2x8x16x64xf32, #tpu.memory_space<vmem>>, vector<2x1x16x64xf32>,
      scf.yield %174 : vector<2x1x16x64xf32>
    }
    %c8_i32_63 = arith.constant 8 : i32
    %137 = vector.extract_strided_slice %88 {offsets = [0, 0], sizes = [8, 16], strides = [1, 1]} : vector<16x16xf32> to vector<8x16xf32>
    %c0_64 = arith.constant 0 : index
    %c0_65 = arith.constant 0 : index
    %c0_66 = arith.constant 0 : index
    %c0_67 = arith.constant 0 : index
    %138 = vector.load %arg20[%c0_64, %c0_65, %c0_66, %c0_67] : memref<2x8x16x64xf32, #tpu.memory_space<vmem>>, vector<1x8x16x64xf32>
    %139 = vector.shape_cast %138 : vector<1x8x16x64xf32> to vector<8x16x64xf32>
    %140 = vector.shape_cast %137 : vector<8x16xf32> to vector<8x16x1xf32>
    %141 = vector.broadcast %140 : vector<8x16x1xf32> to vector<8x16x64xf32>
    %142 = arith.mulf %141, %139 : vector<8x16x64xf32>
    %cst_68 = arith.constant dense<0.000000e+00> : vector<8x64xf32>
    %143 = vector.multi_reduction <add>, %142, %cst_68 [1] : vector<8x16x64xf32> to vector<8x64xf32>
    %144 = vector.extract_strided_slice %88 {offsets = [8, 0], sizes = [8, 16], strides = [1, 1]} : vector<16x16xf32> to vector<8x16xf32>
    %c1_69 = arith.constant 1 : index
    %c0_70 = arith.constant 0 : index
    %c0_71 = arith.constant 0 : index
    %c0_72 = arith.constant 0 : index
    %145 = vector.load %arg20[%c1_69, %c0_70, %c0_71, %c0_72] : memref<2x8x16x64xf32, #tpu.memory_space<vmem>>, vector<1x8x16x64xf32>
    %146 = vector.shape_cast %145 : vector<1x8x16x64xf32> to vector<8x16x64xf32>
    %147 = vector.shape_cast %144 : vector<8x16xf32> to vector<8x16x1xf32>
    %148 = vector.broadcast %147 : vector<8x16x1xf32> to vector<8x16x64xf32>
    %149 = arith.mulf %148, %146 : vector<8x16x64xf32>
    %cst_73 = arith.constant dense<0.000000e+00> : vector<8x64xf32>
    %150 = vector.multi_reduction <add>, %149, %cst_73 [1] : vector<8x16x64xf32> to vector<8x64xf32>
    %151 = tpu.concatenate %143, %150 in 0 : vector<8x64xf32>, vector<8x64xf32> -> vector<16x64xf32>
    %c0_74 = arith.constant 0 : index
    %c0_75 = arith.constant 0 : index
    %152 = vector.load %arg14[%c0_74, %c0_75] : memref<1x64xf32, #tpu.memory_space<vmem>>, vector<1x64xf32>
    %153 = vector.broadcast %152 : vector<1x64xf32> to vector<16x64xf32>
    %154 = arith.mulf %71, %153 : vector<16x64xf32>
    %155 = arith.addf %151, %154 : vector<16x64xf32>
    %156 = arith.negf %30 : vector<16x64xf32>
    %157 = math.exp %156 : vector<16x64xf32>
    %cst_76 = arith.constant 1.000000e+00 : f32
    %158 = vector.broadcast %cst_76 : f32 to vector<16x64xf32>
    %159 = arith.addf %158, %157 : vector<16x64xf32>
    %160 = arith.divf %158, %159 : vector<16x64xf32>
    %161 = arith.mulf %30, %160 : vector<16x64xf32>
    %162 = arith.mulf %155, %161 : vector<16x64xf32>
    %c0_77 = arith.constant 0 : index
    %c0_78 = arith.constant 0 : index
    %163 = vector.load %arg15[%c0_77, %c0_78] : memref<64x32xf32, #tpu.memory_space<vmem>>, vector<64x32xf32>
    %cst_79 = arith.constant dense<0.000000e+00> : vector<16x32xf32>
    %164 = tpu.matmul %162, %163, %cst_79 {dimension_numbers = #tpu.dot_dimension_numbers<[1], [0], [0], [1], [0, 0, 1, 1], [], []>} : vector<16x64xf32>, vector<64x32xf32>, vector<16x32xf32> -> vector<16x32xf32>
    %165 = vector.shape_cast %164 : vector<16x32xf32> to vector<2x8x32xf32>
    %c0_80 = arith.constant 0 : index
    %c0_81 = arith.constant 0 : index
    %c0_82 = arith.constant 0 : index
    %166 = vector.load %arg16[%c0_80, %c0_81, %c0_82] : memref<2x8x32xf32, #tpu.memory_space<vmem>>, vector<2x8x32xf32>
    tpu.vector_store %arg16[%c0_80, %c0_81, %c0_82], %165 {strides = array<i32>} : memref<2x8x32xf32, #tpu.memory_space<vmem>>, vector<2x8x32xf32>,
    %167 = vector.shape_cast %4 : vector<16x32xf32> to vector<2x8x32xf32>
    %c0_83 = arith.constant 0 : index
    %c0_84 = arith.constant 0 : index
    %c0_85 = arith.constant 0 : index
    %168 = vector.load %arg17[%c0_83, %c0_84, %c0_85] : memref<2x8x32xf32, #tpu.memory_space<vmem>>, vector<2x8x32xf32>
    tpu.vector_store %arg17[%c0_83, %c0_84, %c0_85], %167 {strides = array<i32>} : memref<2x8x32xf32, #tpu.memory_space<vmem>>, vector<2x8x32xf32>,
    return
  }
  func.func @transform_0(%arg0: i32) -> (i32, i32, i32) {
    %c0_i32 = arith.constant 0 : i32
    %c0_i32_0 = arith.constant 0 : i32
    %c0_i32_1 = arith.constant 0 : i32
    return %arg0, %c0_i32, %c0_i32_0 : i32, i32, i32
  }
  func.func @transform_1(%arg0: i32) -> (i32, i32, i32) {
    %c0_i32 = arith.constant 0 : i32
    %c0_i32_0 = arith.constant 0 : i32
    %c0_i32_1 = arith.constant 0 : i32
    return %arg0, %c0_i32, %c0_i32_0 : i32, i32, i32
  }
  func.func @transform_2(%arg0: i32) -> (i32, i32) {
    %c0_i32 = arith.constant 0 : i32
    %c0_i32_0 = arith.constant 0 : i32
    %c0_i32_1 = arith.constant 0 : i32
    return %c0_i32, %c0_i32_0 : i32, i32
  }
  func.func @transform_3(%arg0: i32) -> (i32, i32) {
    %c0_i32 = arith.constant 0 : i32
    %c0_i32_0 = arith.constant 0 : i32
    %c0_i32_1 = arith.constant 0 : i32
    return %c0_i32, %c0_i32_0 : i32, i32
  }
  func.func @transform_4(%arg0: i32) -> (i32, i32) {
    %c0_i32 = arith.constant 0 : i32
    %c0_i32_0 = arith.constant 0 : i32
    %c0_i32_1 = arith.constant 0 : i32
    return %c0_i32, %c0_i32_0 : i32, i32
  }
  func.func @transform_5(%arg0: i32) -> (i32, i32) {
    %c0_i32 = arith.constant 0 : i32
    %c0_i32_0 = arith.constant 0 : i32
    %c0_i32_1 = arith.constant 0 : i32
    return %c0_i32, %c0_i32_0 : i32, i32
  }
  func.func @transform_6(%arg0: i32) -> (i32, i32) {
    %c0_i32 = arith.constant 0 : i32
    %c0_i32_0 = arith.constant 0 : i32
    %c0_i32_1 = arith.constant 0 : i32
    return %c0_i32, %c0_i32_0 : i32, i32
  }
  func.func @transform_7(%arg0: i32) -> (i32, i32) {
    %c0_i32 = arith.constant 0 : i32
    %c0_i32_0 = arith.constant 0 : i32
    %c0_i32_1 = arith.constant 0 : i32
    return %c0_i32, %c0_i32_0 : i32, i32
  }
  func.func @transform_8(%arg0: i32) -> (i32, i32) {
    %c0_i32 = arith.constant 0 : i32
    %c0_i32_0 = arith.constant 0 : i32
    %c0_i32_1 = arith.constant 0 : i32
    return %c0_i32, %c0_i32_0 : i32, i32
  }
  func.func @transform_9(%arg0: i32) -> (i32, i32) {
    %c0_i32 = arith.constant 0 : i32
    %c0_i32_0 = arith.constant 0 : i32
    %c0_i32_1 = arith.constant 0 : i32
    return %c0_i32, %c0_i32_0 : i32, i32
  }
  func.func @transform_10(%arg0: i32) -> (i32, i32) {
    %c0_i32 = arith.constant 0 : i32
    %c0_i32_0 = arith.constant 0 : i32
    %c0_i32_1 = arith.constant 0 : i32
    return %c0_i32, %c0_i32_0 : i32, i32
  }
  func.func @transform_11(%arg0: i32) -> (i32, i32) {
    %c0_i32 = arith.constant 0 : i32
    %c0_i32_0 = arith.constant 0 : i32
    %c0_i32_1 = arith.constant 0 : i32
    return %c0_i32, %c0_i32_0 : i32, i32
  }
  func.func @transform_12(%arg0: i32) -> (i32, i32) {
    %c0_i32 = arith.constant 0 : i32
    %c0_i32_0 = arith.constant 0 : i32
    %c0_i32_1 = arith.constant 0 : i32
    return %c0_i32, %c0_i32_0 : i32, i32
  }
  func.func @transform_13(%arg0: i32) -> (i32, i32) {
    %c0_i32 = arith.constant 0 : i32
    %c0_i32_0 = arith.constant 0 : i32
    %c0_i32_1 = arith.constant 0 : i32
    return %c0_i32, %c0_i32_0 : i32, i32
  }
  func.func @transform_14(%arg0: i32) -> (i32, i32) {
    %c0_i32 = arith.constant 0 : i32
    %c0_i32_0 = arith.constant 0 : i32
    %c0_i32_1 = arith.constant 0 : i32
    return %c0_i32, %c0_i32_0 : i32, i32
  }
  func.func @transform_15(%arg0: i32) -> (i32, i32, i32) {
    %c0_i32 = arith.constant 0 : i32
    %c0_i32_0 = arith.constant 0 : i32
    %c0_i32_1 = arith.constant 0 : i32
    return %arg0, %c0_i32, %c0_i32_0 : i32, i32, i32
  }
  func.func @transform_16(%arg0: i32) -> (i32, i32, i32) {
    %c0_i32 = arith.constant 0 : i32
    %c0_i32_0 = arith.constant 0 : i32
    %c0_i32_1 = arith.constant 0 : i32
    return %arg0, %c0_i32, %c0_i32_0 : i32, i32, i32
  }
}

module attributes {stable_mosaic.version = 11 : i64} {
  func.func @kernel(%arg0: i32, %arg1: memref<2x8x32xf32, #tpu.memory_space<vmem>>, %arg2: memref<2x8x32xf32, #tpu.memory_space<vmem>>, %arg3: memref<1x32xf32, #tpu.memory_space<vmem>>, %arg4: memref<1x32xf32, #tpu.memory_space<vmem>>, %arg5: memref<32x64xf32, #tpu.memory_space<vmem>>, %arg6: memref<32x64xf32, #tpu.memory_space<vmem>>, %arg7: memref<4x64xf32, #tpu.memory_space<vmem>>, %arg8: memref<1x64xf32, #tpu.memory_space<vmem>>, %arg9: memref<64x64xf32, #tpu.memory_space<vmem>>, %arg10: memref<64x16xf32, #tpu.memory_space<vmem>>, %arg11: memref<64x16xf32, #tpu.memory_space<vmem>>, %arg12: memref<1x64xf32, #tpu.memory_space<vmem>>, %arg13: memref<16x64xf32, #tpu.memory_space<vmem>>, %arg14: memref<1x64xf32, #tpu.memory_space<vmem>>, %arg15: memref<64x32xf32, #tpu.memory_space<vmem>>, %arg16: memref<2x8x32xf32, #tpu.memory_space<vmem>>, %arg17: memref<2x8x32xf32, #tpu.memory_space<vmem>>, %arg18: memref<2x8x16x64xf32, #tpu.memory_space<vmem>>, %arg19: memref<2x8x16x64xf32, #tpu.memory_space<vmem>>, %arg20: memref<2x8x16x64xf32, #tpu.memory_space<vmem>>) attributes {dimension_semantics = [#tpu.dimension_semantics<parallel>], iteration_bounds = array<i64: 1>, scalar_prefetch = 0 : i64, scratch_operands = 3 : i64, tpu.core_type = #tpu.core_type<tc>, window_params = [{transform_indices = @transform_0, window_bounds = array<i64: 2, 8, 32>}, {transform_indices = @transform_1, window_bounds = array<i64: 2, 8, 32>}, {pipeline_mode = #tpu.pipeline_mode<synchronous>, transform_indices = @transform_2, window_bounds = array<i64: 1, 32>}, {pipeline_mode = #tpu.pipeline_mode<synchronous>, transform_indices = @transform_3, window_bounds = array<i64: 1, 32>}, {pipeline_mode = #tpu.pipeline_mode<synchronous>, transform_indices = @transform_4, window_bounds = array<i64: 32, 64>}, {pipeline_mode = #tpu.pipeline_mode<synchronous>, transform_indices = @transform_5, window_bounds = array<i64: 32, 64>}, {pipeline_mode = #tpu.pipeline_mode<synchronous>, transform_indices = @transform_6, window_bounds = array<i64: 4, 64>}, {pipeline_mode = #tpu.pipeline_mode<synchronous>, transform_indices = @transform_7, window_bounds = array<i64: 1, 64>}, {pipeline_mode = #tpu.pipeline_mode<synchronous>, transform_indices = @transform_8, window_bounds = array<i64: 64, 64>}, {pipeline_mode = #tpu.pipeline_mode<synchronous>, transform_indices = @transform_9, window_bounds = array<i64: 64, 16>}, {pipeline_mode = #tpu.pipeline_mode<synchronous>, transform_indices = @transform_10, window_bounds = array<i64: 64, 16>}, {pipeline_mode = #tpu.pipeline_mode<synchronous>, transform_indices = @transform_11, window_bounds = array<i64: 1, 64>}, {pipeline_mode = #tpu.pipeline_mode<synchronous>, transform_indices = @transform_12, window_bounds = array<i64: 16, 64>}, {pipeline_mode = #tpu.pipeline_mode<synchronous>, transform_indices = @transform_13, window_bounds = array<i64: 1, 64>}, {pipeline_mode = #tpu.pipeline_mode<synchronous>, transform_indices = @transform_14, window_bounds = array<i64: 64, 32>}, {transform_indices = @transform_15, window_bounds = array<i64: 2, 8, 32>}, {transform_indices = @transform_16, window_bounds = array<i64: 2, 8, 32>}]} {
    %c0 = arith.constant 0 : index
    %c0_0 = arith.constant 0 : index
    %c0_1 = arith.constant 0 : index
    %0 = vector.load %arg1[%c0, %c0_0, %c0_1] : memref<2x8x32xf32, #tpu.memory_space<vmem>>, vector<2x8x32xf32>
    %1 = vector.shape_cast %0 : vector<2x8x32xf32> to vector<16x32xf32>
    %c0_2 = arith.constant 0 : index
    %c0_3 = arith.constant 0 : index
    %c0_4 = arith.constant 0 : index
    %2 = vector.load %arg2[%c0_2, %c0_3, %c0_4] : memref<2x8x32xf32, #tpu.memory_space<vmem>>, vector<2x8x32xf32>
    %3 = vector.shape_cast %2 : vector<2x8x32xf32> to vector<16x32xf32>
    %4 = arith.addf %1, %3 : vector<16x32xf32>
    %cst = arith.constant dense<0.000000e+00> : vector<16xf32>
    %5 = vector.multi_reduction <add>, %4, %cst [1] : vector<16x32xf32> to vector<16xf32>
    %6 = vector.shape_cast %5 : vector<16xf32> to vector<16x1xf32>
    %cst_5 = arith.constant 3.200000e+01 : f32
    %7 = vector.broadcast %cst_5 : f32 to vector<16x1xf32>
    %8 = arith.divf %6, %7 : vector<16x1xf32>
    %9 = vector.broadcast %8 : vector<16x1xf32> to vector<16x32xf32>
    %10 = arith.subf %4, %9 : vector<16x32xf32>
    %11 = arith.mulf %10, %10 : vector<16x32xf32>
    %cst_6 = arith.constant dense<0.000000e+00> : vector<16xf32>
    %12 = vector.multi_reduction <add>, %11, %cst_6 [1] : vector<16x32xf32> to vector<16xf32>
    %13 = vector.shape_cast %12 : vector<16xf32> to vector<16x1xf32>
    %cst_7 = arith.constant 3.200000e+01 : f32
    %14 = vector.broadcast %cst_7 : f32 to vector<16x1xf32>
    %15 = arith.divf %13, %14 : vector<16x1xf32>
    %cst_8 = arith.constant 9.99999974E-6 : f32
    %16 = vector.broadcast %cst_8 : f32 to vector<16x1xf32>
    %17 = arith.addf %15, %16 : vector<16x1xf32>
    %18 = math.rsqrt %17 : vector<16x1xf32>
    %19 = vector.broadcast %18 : vector<16x1xf32> to vector<16x32xf32>
    %20 = arith.mulf %10, %19 : vector<16x32xf32>
    %c0_9 = arith.constant 0 : index
    %c0_10 = arith.constant 0 : index
    %21 = vector.load %arg3[%c0_9, %c0_10] : memref<1x32xf32, #tpu.memory_space<vmem>>, vector<1x32xf32>
    %22 = vector.broadcast %21 : vector<1x32xf32> to vector<16x32xf32>
    %23 = arith.mulf %20, %22 : vector<16x32xf32>
    %c0_11 = arith.constant 0 : index
    %c0_12 = arith.constant 0 : index
    %24 = vector.load %arg4[%c0_11, %c0_12] : memref<1x32xf32, #tpu.memory_space<vmem>>, vector<1x32xf32>
    %25 = vector.broadcast %24 : vector<1x32xf32> to vector<16x32xf32>
    %26 = arith.addf %23, %25 : vector<16x32xf32>
    %c0_13 = arith.constant 0 : index
    %c0_14 = arith.constant 0 : index
    %27 = vector.load %arg5[%c0_13, %c0_14] : memref<32x64xf32, #tpu.memory_space<vmem>>, vector<32x64xf32>
    %cst_15 = arith.constant dense<0.000000e+00> : vector<16x64xf32>
    %28 = tpu.matmul %26, %27, %cst_15 {dimension_numbers = #tpu.dot_dimension_numbers<[1], [0], [0], [1], [0, 0, 1, 1], [], []>} : vector<16x32xf32>, vector<32x64xf32>, vector<16x64xf32> -> vector<16x64xf32>
    %c0_16 = arith.constant 0 : index
    %c0_17 = arith.constant 0 : index
    %29 = vector.load %arg6[%c0_16, %c0_17] : memref<32x64xf32, #tpu.memory_space<vmem>>, vector<32x64xf32>
    %cst_18 = arith.constant dense<0.000000e+00> : vector<16x64xf32>
    %30 = tpu.matmul %26, %29, %cst_18 {dimension_numbers = #tpu.dot_dimension_numbers<[1], [0], [0], [1], [0, 0, 1, 1], [], []>} : vector<16x32xf32>, vector<32x64xf32>, vector<16x64xf32> -> vector<16x64xf32>
    %31 = vector.shape_cast %28 : vector<16x64xf32> to vector<2x8x64xf32>
    %c0_19 = arith.constant 0 : index
    %c0_20 = arith.constant 0 : index
    %32 = vector.load %arg8[%c0_19, %c0_20] : memref<1x64xf32, #tpu.memory_space<vmem>>, vector<1x64xf32>
    %33 = vector.shape_cast %32 : vector<1x64xf32> to vector<1x1x64xf32>
    %34 = vector.shape_cast %33 : vector<1x1x64xf32> to vector<1x1x64xf32>
    %35 = vector.broadcast %34 : vector<1x1x64xf32> to vector<2x8x64xf32>
    %c0_21 = arith.constant 0 : index
    %c0_22 = arith.constant 0 : index
    %36 = vector.load %arg7[%c0_21, %c0_22] : memref<4x64xf32, #tpu.memory_space<vmem>>, vector<1x64xf32>
    %37 = vector.shape_cast %36 : vector<1x64xf32> to vector<1x1x64xf32>
    %cst_23 = arith.constant 0.000000e+00 : f32
    %38 = vector.broadcast %cst_23 : f32 to vector<2x3x64xf32>
    %39 = vector.extract_strided_slice %31 {offsets = [0, 0, 0], sizes = [2, 5, 64], strides = [1, 1, 1]} : vector<2x8x64xf32> to vector<2x5x64xf32>
    %40 = tpu.concatenate %38, %39 in 1 : vector<2x3x64xf32>, vector<2x5x64xf32> -> vector<2x8x64xf32>
    %41 = vector.broadcast %37 : vector<1x1x64xf32> to vector<2x8x64xf32>
    %42 = arith.mulf %40, %41 : vector<2x8x64xf32>
    %43 = arith.addf %35, %42 : vector<2x8x64xf32>
    %c1 = arith.constant 1 : index
    %c0_24 = arith.constant 0 : index
    %44 = vector.load %arg7[%c1, %c0_24] : memref<4x64xf32, #tpu.memory_space<vmem>>, vector<1x64xf32>
    %45 = vector.shape_cast %44 : vector<1x64xf32> to vector<1x1x64xf32>
    %cst_25 = arith.constant 0.000000e+00 : f32
    %46 = vector.broadcast %cst_25 : f32 to vector<2x2x64xf32>
    %47 = vector.extract_strided_slice %31 {offsets = [0, 0, 0], sizes = [2, 6, 64], strides = [1, 1, 1]} : vector<2x8x64xf32> to vector<2x6x64xf32>
    %48 = tpu.concatenate %46, %47 in 1 : vector<2x2x64xf32>, vector<2x6x64xf32> -> vector<2x8x64xf32>
    %49 = vector.broadcast %45 : vector<1x1x64xf32> to vector<2x8x64xf32>
    %50 = arith.mulf %48, %49 : vector<2x8x64xf32>
    %51 = arith.addf %43, %50 : vector<2x8x64xf32>
    %c2 = arith.constant 2 : index
    %c0_26 = arith.constant 0 : index
    %52 = vector.load %arg7[%c2, %c0_26] : memref<4x64xf32, #tpu.memory_space<vmem>>, vector<1x64xf32>
    %53 = vector.shape_cast %52 : vector<1x64xf32> to vector<1x1x64xf32>
    %cst_27 = arith.constant 0.000000e+00 : f32
    %54 = vector.broadcast %cst_27 : f32 to vector<2x1x64xf32>
    %55 = vector.extract_strided_slice %31 {offsets = [0, 0, 0], sizes = [2, 7, 64], strides = [1, 1, 1]} : vector<2x8x64xf32> to vector<2x7x64xf32>
    %56 = tpu.concatenate %54, %55 in 1 : vector<2x1x64xf32>, vector<2x7x64xf32> -> vector<2x8x64xf32>
    %57 = vector.broadcast %53 : vector<1x1x64xf32> to vector<2x8x64xf32>
    %58 = arith.mulf %56, %57 : vector<2x8x64xf32>
    %59 = arith.addf %51, %58 : vector<2x8x64xf32>
    %c3 = arith.constant 3 : index
    %c0_28 = arith.constant 0 : index
    %60 = vector.load %arg7[%c3, %c0_28] : memref<4x64xf32, #tpu.memory_space<vmem>>, vector<1x64xf32>
    %61 = vector.shape_cast %60 : vector<1x64xf32> to vector<1x1x64xf32>
    %62 = vector.broadcast %61 : vector<1x1x64xf32> to vector<2x8x64xf32>
    %63 = arith.mulf %31, %62 : vector<2x8x64xf32>
    %64 = arith.addf %59, %63 : vector<2x8x64xf32>
    %65 = vector.shape_cast %64 : vector<2x8x64xf32> to vector<16x64xf32>
    %66 = arith.negf %65 : vector<16x64xf32>
    %67 = math.exp %66 : vector<16x64xf32>
    %cst_29 = arith.constant 1.000000e+00 : f32
    %68 = vector.broadcast %cst_29 : f32 to vector<16x64xf32>
    %69 = arith.addf %68, %67 : vector<16x64xf32>
    %70 = arith.divf %68, %69 : vector<16x64xf32>
    %71 = arith.mulf %65, %70 : vector<16x64xf32>
    %c0_30 = arith.constant 0 : index
    %c0_31 = arith.constant 0 : index
    %72 = vector.load %arg9[%c0_30, %c0_31] : memref<64x64xf32, #tpu.memory_space<vmem>>, vector<64x64xf32>
    %cst_32 = arith.constant dense<0.000000e+00> : vector<16x64xf32>
    %73 = tpu.matmul %71, %72, %cst_32 {dimension_numbers = #tpu.dot_dimension_numbers<[1], [0], [0], [1], [0, 0, 1, 1], [], []>} : vector<16x64xf32>, vector<64x64xf32>, vector<16x64xf32> -> vector<16x64xf32>
    %c0_33 = arith.constant 0 : index
    %c0_34 = arith.constant 0 : index
    %74 = vector.load %arg12[%c0_33, %c0_34] : memref<1x64xf32, #tpu.memory_space<vmem>>, vector<1x64xf32>
    %75 = vector.broadcast %74 : vector<1x64xf32> to vector<16x64xf32>
    %76 = arith.addf %73, %75 : vector<16x64xf32>
    %cst_35 = arith.constant 0.000000e+00 : f32
    %77 = vector.broadcast %cst_35 : f32 to vector<16x64xf32>
    %78 = arith.maximumf %76, %77 : vector<16x64xf32>
    %79 = math.absf %76 : vector<16x64xf32>
    %cst_36 = arith.constant 0.000000e+00 : f32
    %80 = vector.broadcast %cst_36 : f32 to vector<16x64xf32>
    %81 = arith.subf %80, %79 : vector<16x64xf32>
    %82 = math.exp %81 : vector<16x64xf32>
    %83 = math.log1p %82 : vector<16x64xf32>
    %84 = arith.addf %78, %83 : vector<16x64xf32>
    %c0_37 = arith.constant 0 : index
    %c0_38 = arith.constant 0 : index
    %85 = vector.load %arg10[%c0_37, %c0_38] : memref<64x16xf32, #tpu.memory_space<vmem>>, vector<64x16xf32>
    %cst_39 = arith.constant dense<0.000000e+00> : vector<16x16xf32>
    %86 = tpu.matmul %71, %85, %cst_39 {dimension_numbers = #tpu.dot_dimension_numbers<[1], [0], [0], [1], [0, 0, 1, 1], [], []>} : vector<16x64xf32>, vector<64x16xf32>, vector<16x16xf32> -> vector<16x16xf32>
    %c0_40 = arith.constant 0 : index
    %c0_41 = arith.constant 0 : index
    %87 = vector.load %arg11[%c0_40, %c0_41] : memref<64x16xf32, #tpu.memory_space<vmem>>, vector<64x16xf32>
    %cst_42 = arith.constant dense<0.000000e+00> : vector<16x16xf32>
    %88 = tpu.matmul %71, %87, %cst_42 {dimension_numbers = #tpu.dot_dimension_numbers<[1], [0], [0], [1], [0, 0, 1, 1], [], []>} : vector<16x64xf32>, vector<64x16xf32>, vector<16x16xf32> -> vector<16x16xf32>
    %c0_43 = arith.constant 0 : index
    %c0_44 = arith.constant 0 : index
    %89 = vector.load %arg13[%c0_43, %c0_44] : memref<16x64xf32, #tpu.memory_space<vmem>>, vector<16x64xf32>
    %90 = math.exp %89 : vector<16x64xf32>
    %cst_45 = arith.constant 0.000000e+00 : f32
    %91 = vector.broadcast %cst_45 : f32 to vector<16x64xf32>
    %92 = arith.subf %91, %90 : vector<16x64xf32>
    %93 = arith.mulf %84, %71 : vector<16x64xf32>
    %cst_46 = arith.constant 0.000000e+00 : f32
    %94 = vector.broadcast %cst_46 : f32 to vector<2x1x16x64xf32>
    %95 = vector.extract_strided_slice %84 {offsets = [0, 0], sizes = [8, 64], strides = [1, 1]} : vector<16x64xf32> to vector<8x64xf32>
    %96 = vector.extract_strided_slice %93 {offsets = [0, 0], sizes = [8, 64], strides = [1, 1]} : vector<16x64xf32> to vector<8x64xf32>
    %97 = vector.extract_strided_slice %86 {offsets = [0, 0], sizes = [8, 16], strides = [1, 1]} : vector<16x16xf32> to vector<8x16xf32>
    %98 = vector.shape_cast %95 : vector<8x64xf32> to vector<8x1x64xf32>
    %99 = vector.shape_cast %92 : vector<16x64xf32> to vector<1x16x64xf32>
    %100 = vector.broadcast %98 : vector<8x1x64xf32> to vector<8x16x64xf32>
    %101 = vector.broadcast %99 : vector<1x16x64xf32> to vector<8x16x64xf32>
    %102 = arith.mulf %100, %101 : vector<8x16x64xf32>
    %103 = math.exp %102 : vector<8x16x64xf32>
    %c0_47 = arith.constant 0 : index
    %c0_48 = arith.constant 0 : index
    %c0_49 = arith.constant 0 : index
    %c0_50 = arith.constant 0 : index
    %104 = vector.load %arg18[%c0_47, %c0_48, %c0_49, %c0_50] : memref<2x8x16x64xf32, #tpu.memory_space<vmem>>, vector<1x8x16x64xf32>
    %105 = vector.shape_cast %104 : vector<1x8x16x64xf32> to vector<8x16x64xf32>
    %106 = vector.shape_cast %103 : vector<8x16x64xf32> to vector<1x8x16x64xf32>
    tpu.vector_store %arg18[%c0_47, %c0_48, %c0_49, %c0_50], %106 {strides = array<i32>} : memref<2x8x16x64xf32, #tpu.memory_space<vmem>>, vector<1x8x16x64xf32>,
    %107 = vector.shape_cast %97 : vector<8x16xf32> to vector<8x16x1xf32>
    %108 = vector.shape_cast %96 : vector<8x64xf32> to vector<8x1x64xf32>
    %109 = vector.broadcast %107 : vector<8x16x1xf32> to vector<8x16x64xf32>
    %110 = vector.broadcast %108 : vector<8x1x64xf32> to vector<8x16x64xf32>
    %111 = arith.mulf %109, %110 : vector<8x16x64xf32>
    %c0_51 = arith.constant 0 : index
    %c0_52 = arith.constant 0 : index
    %c0_53 = arith.constant 0 : index
    %c0_54 = arith.constant 0 : index
    %112 = vector.load %arg19[%c0_51, %c0_52, %c0_53, %c0_54] : memref<2x8x16x64xf32, #tpu.memory_space<vmem>>, vector<1x8x16x64xf32>
    %113 = vector.shape_cast %112 : vector<1x8x16x64xf32> to vector<8x16x64xf32>
    %114 = vector.shape_cast %111 : vector<8x16x64xf32> to vector<1x8x16x64xf32>
    tpu.vector_store %arg19[%c0_51, %c0_52, %c0_53, %c0_54], %114 {strides = array<i32>} : memref<2x8x16x64xf32, #tpu.memory_space<vmem>>, vector<1x8x16x64xf32>,
    %115 = vector.extract_strided_slice %84 {offsets = [8, 0], sizes = [8, 64], strides = [1, 1]} : vector<16x64xf32> to vector<8x64xf32>
    %116 = vector.extract_strided_slice %93 {offsets = [8, 0], sizes = [8, 64], strides = [1, 1]} : vector<16x64xf32> to vector<8x64xf32>
    %117 = vector.extract_strided_slice %86 {offsets = [8, 0], sizes = [8, 16], strides = [1, 1]} : vector<16x16xf32> to vector<8x16xf32>
    %118 = vector.shape_cast %115 : vector<8x64xf32> to vector<8x1x64xf32>
    %119 = vector.shape_cast %92 : vector<16x64xf32> to vector<1x16x64xf32>
    %120 = vector.broadcast %118 : vector<8x1x64xf32> to vector<8x16x64xf32>
    %121 = vector.broadcast %119 : vector<1x16x64xf32> to vector<8x16x64xf32>
    %122 = arith.mulf %120, %121 : vector<8x16x64xf32>
    %123 = math.exp %122 : vector<8x16x64xf32>
    %c1_55 = arith.constant 1 : index
    %c0_56 = arith.constant 0 : index
    %c0_57 = arith.constant 0 : index
    %c0_58 = arith.constant 0 : index
    %124 = vector.load %arg18[%c1_55, %c0_56, %c0_57, %c0_58] : memref<2x8x16x64xf32, #tpu.memory_space<vmem>>, vector<1x8x16x64xf32>
    %125 = vector.shape_cast %124 : vector<1x8x16x64xf32> to vector<8x16x64xf32>
    %126 = vector.shape_cast %123 : vector<8x16x64xf32> to vector<1x8x16x64xf32>
    tpu.vector_store %arg18[%c1_55, %c0_56, %c0_57, %c0_58], %126 {strides = array<i32>} : memref<2x8x16x64xf32, #tpu.memory_space<vmem>>, vector<1x8x16x64xf32>,
    %127 = vector.shape_cast %117 : vector<8x16xf32> to vector<8x16x1xf32>
    %128 = vector.shape_cast %116 : vector<8x64xf32> to vector<8x1x64xf32>
    %129 = vector.broadcast %127 : vector<8x16x1xf32> to vector<8x16x64xf32>
    %130 = vector.broadcast %128 : vector<8x1x64xf32> to vector<8x16x64xf32>
    %131 = arith.mulf %129, %130 : vector<8x16x64xf32>
    %c1_59 = arith.constant 1 : index
    %c0_60 = arith.constant 0 : index
    %c0_61 = arith.constant 0 : index
    %c0_62 = arith.constant 0 : index
    %132 = vector.load %arg19[%c1_59, %c0_60, %c0_61, %c0_62] : memref<2x8x16x64xf32, #tpu.memory_space<vmem>>, vector<1x8x16x64xf32>
    %133 = vector.shape_cast %132 : vector<1x8x16x64xf32> to vector<8x16x64xf32>
    %134 = vector.shape_cast %131 : vector<8x16x64xf32> to vector<1x8x16x64xf32>
    tpu.vector_store %arg19[%c1_59, %c0_60, %c0_61, %c0_62], %134 {strides = array<i32>} : memref<2x8x16x64xf32, #tpu.memory_space<vmem>>, vector<1x8x16x64xf32>,
    %c0_i32 = arith.constant 0 : i32
    %c8_i32 = arith.constant 8 : i32
    %135 = arith.addi %c0_i32, %c8_i32 : i32
    %c1_i32 = arith.constant 1 : i32
    %136 = scf.for %arg21 = %c0_i32 to %135 step %c1_i32 iter_args(%arg22 = %94) -> (vector<2x1x16x64xf32>)  : i32 {
      %c0_86 = arith.constant 0 : index
      %169 = arith.index_cast %arg21 : i32 to index
      %c0_87 = arith.constant 0 : index
      %c0_88 = arith.constant 0 : index
      %170 = vector.load %arg18[%c0_86, %169, %c0_87, %c0_88] : memref<2x8x16x64xf32, #tpu.memory_space<vmem>>, vector<2x1x16x64xf32>
      %c0_89 = arith.constant 0 : index
      %171 = arith.index_cast %arg21 : i32 to index
      %c0_90 = arith.constant 0 : index
      %c0_91 = arith.constant 0 : index
      %172 = vector.load %arg19[%c0_89, %171, %c0_90, %c0_91] : memref<2x8x16x64xf32, #tpu.memory_space<vmem>>, vector<2x1x16x64xf32>
      %173 = arith.mulf %170, %arg22 : vector<2x1x16x64xf32>
      %174 = arith.addf %173, %172 : vector<2x1x16x64xf32>
      %c0_92 = arith.constant 0 : index
      %175 = arith.index_cast %arg21 : i32 to index
      %c0_93 = arith.constant 0 : index
      %c0_94 = arith.constant 0 : index
      %176 = vector.load %arg20[%c0_92, %175, %c0_93, %c0_94] : memref<2x8x16x64xf32, #tpu.memory_space<vmem>>, vector<2x1x16x64xf32>
      tpu.vector_store %arg20[%c0_92, %175, %c0_93, %c0_94], %174 {strides = array<i32>} : memref<2x8x16x64xf32, #tpu.memory_space<vmem>>, vector<2x1x16x64xf32>,
      scf.yield %174 : vector<2x1x16x64xf32>
    }
    %c8_i32_63 = arith.constant 8 : i32
    %137 = vector.extract_strided_slice %88 {offsets = [0, 0], sizes = [8, 16], strides = [1, 1]} : vector<16x16xf32> to vector<8x16xf32>
    %c0_64 = arith.constant 0 : index
    %c0_65 = arith.constant 0 : index
    %c0_66 = arith.constant 0 : index
    %c0_67 = arith.constant 0 : index
    %138 = vector.load %arg20[%c0_64, %c0_65, %c0_66, %c0_67] : memref<2x8x16x64xf32, #tpu.memory_space<vmem>>, vector<1x8x16x64xf32>
    %139 = vector.shape_cast %138 : vector<1x8x16x64xf32> to vector<8x16x64xf32>
    %140 = vector.shape_cast %137 : vector<8x16xf32> to vector<8x16x1xf32>
    %141 = vector.broadcast %140 : vector<8x16x1xf32> to vector<8x16x64xf32>
    %142 = arith.mulf %141, %139 : vector<8x16x64xf32>
    %cst_68 = arith.constant dense<0.000000e+00> : vector<8x64xf32>
    %143 = vector.multi_reduction <add>, %142, %cst_68 [1] : vector<8x16x64xf32> to vector<8x64xf32>
    %144 = vector.extract_strided_slice %88 {offsets = [8, 0], sizes = [8, 16], strides = [1, 1]} : vector<16x16xf32> to vector<8x16xf32>
    %c1_69 = arith.constant 1 : index
    %c0_70 = arith.constant 0 : index
    %c0_71 = arith.constant 0 : index
    %c0_72 = arith.constant 0 : index
    %145 = vector.load %arg20[%c1_69, %c0_70, %c0_71, %c0_72] : memref<2x8x16x64xf32, #tpu.memory_space<vmem>>, vector<1x8x16x64xf32>
    %146 = vector.shape_cast %145 : vector<1x8x16x64xf32> to vector<8x16x64xf32>
    %147 = vector.shape_cast %144 : vector<8x16xf32> to vector<8x16x1xf32>
    %148 = vector.broadcast %147 : vector<8x16x1xf32> to vector<8x16x64xf32>
    %149 = arith.mulf %148, %146 : vector<8x16x64xf32>
    %cst_73 = arith.constant dense<0.000000e+00> : vector<8x64xf32>
    %150 = vector.multi_reduction <add>, %149, %cst_73 [1] : vector<8x16x64xf32> to vector<8x64xf32>
    %151 = tpu.concatenate %143, %150 in 0 : vector<8x64xf32>, vector<8x64xf32> -> vector<16x64xf32>
    %c0_74 = arith.constant 0 : index
    %c0_75 = arith.constant 0 : index
    %152 = vector.load %arg14[%c0_74, %c0_75] : memref<1x64xf32, #tpu.memory_space<vmem>>, vector<1x64xf32>
    %153 = vector.broadcast %152 : vector<1x64xf32> to vector<16x64xf32>
    %154 = arith.mulf %71, %153 : vector<16x64xf32>
    %155 = arith.addf %151, %154 : vector<16x64xf32>
    %156 = arith.negf %30 : vector<16x64xf32>
    %157 = math.exp %156 : vector<16x64xf32>
    %cst_76 = arith.constant 1.000000e+00 : f32
    %158 = vector.broadcast %cst_76 : f32 to vector<16x64xf32>
    %159 = arith.addf %158, %157 : vector<16x64xf32>
    %160 = arith.divf %158, %159 : vector<16x64xf32>
    %161 = arith.mulf %30, %160 : vector<16x64xf32>
    %162 = arith.mulf %155, %161 : vector<16x64xf32>
    %c0_77 = arith.constant 0 : index
    %c0_78 = arith.constant 0 : index
    %163 = vector.load %arg15[%c0_77, %c0_78] : memref<64x32xf32, #tpu.memory_space<vmem>>, vector<64x32xf32>
    %cst_79 = arith.constant dense<0.000000e+00> : vector<16x32xf32>
    %164 = tpu.matmul %162, %163, %cst_79 {dimension_numbers = #tpu.dot_dimension_numbers<[1], [0], [0], [1], [0, 0, 1, 1], [], []>} : vector<16x64xf32>, vector<64x32xf32>, vector<16x32xf32> -> vector<16x32xf32>
    %165 = vector.shape_cast %164 : vector<16x32xf32> to vector<2x8x32xf32>
    %c0_80 = arith.constant 0 : index
    %c0_81 = arith.constant 0 : index
    %c0_82 = arith.constant 0 : index
    %166 = vector.load %arg16[%c0_80, %c0_81, %c0_82] : memref<2x8x32xf32, #tpu.memory_space<vmem>>, vector<2x8x32xf32>
    tpu.vector_store %arg16[%c0_80, %c0_81, %c0_82], %165 {strides = array<i32>} : memref<2x8x32xf32, #tpu.memory_space<vmem>>, vector<2x8x32xf32>,
    %167 = vector.shape_cast %4 : vector<16x32xf32> to vector<2x8x32xf32>
    %c0_83 = arith.constant 0 : index
    %c0_84 = arith.constant 0 : index
    %c0_85 = arith.constant 0 : index
    %168 = vector.load %arg17[%c0_83, %c0_84, %c0_85] : memref<2x8x32xf32, #tpu.memory_space<vmem>>, vector<2x8x32xf32>
    tpu.vector_store %arg17[%c0_83, %c0_84, %c0_85], %167 {strides = array<i32>} : memref<2x8x32xf32, #tpu.memory_space<vmem>>, vector<2x8x32xf32>,
    return
  }
  func.func @transform_0(%arg0: i32) -> (i32, i32, i32) {
    %c0_i32 = arith.constant 0 : i32
    %c0_i32_0 = arith.constant 0 : i32
    %c0_i32_1 = arith.constant 0 : i32
    return %arg0, %c0_i32, %c0_i32_0 : i32, i32, i32
  }
  func.func @transform_1(%arg0: i32) -> (i32, i32, i32) {
    %c0_i32 = arith.constant 0 : i32
    %c0_i32_0 = arith.constant 0 : i32
    %c0_i32_1 = arith.constant 0 : i32
    return %arg0, %c0_i32, %c0_i32_0 : i32, i32, i32
  }
  func.func @transform_2(%arg0: i32) -> (i32, i32) {
    %c0_i32 = arith.constant 0 : i32
    %c0_i32_0 = arith.constant 0 : i32
    %c0_i32_1 = arith.constant 0 : i32
    return %c0_i32, %c0_i32_0 : i32, i32
  }
  func.func @transform_3(%arg0: i32) -> (i32, i32) {
    %c0_i32 = arith.constant 0 : i32
    %c0_i32_0 = arith.constant 0 : i32
    %c0_i32_1 = arith.constant 0 : i32
    return %c0_i32, %c0_i32_0 : i32, i32
  }
  func.func @transform_4(%arg0: i32) -> (i32, i32) {
    %c0_i32 = arith.constant 0 : i32
    %c0_i32_0 = arith.constant 0 : i32
    %c0_i32_1 = arith.constant 0 : i32
    return %c0_i32, %c0_i32_0 : i32, i32
  }
  func.func @transform_5(%arg0: i32) -> (i32, i32) {
    %c0_i32 = arith.constant 0 : i32
    %c0_i32_0 = arith.constant 0 : i32
    %c0_i32_1 = arith.constant 0 : i32
    return %c0_i32, %c0_i32_0 : i32, i32
  }
  func.func @transform_6(%arg0: i32) -> (i32, i32) {
    %c0_i32 = arith.constant 0 : i32
    %c0_i32_0 = arith.constant 0 : i32
    %c0_i32_1 = arith.constant 0 : i32
    return %c0_i32, %c0_i32_0 : i32, i32
  }
  func.func @transform_7(%arg0: i32) -> (i32, i32) {
    %c0_i32 = arith.constant 0 : i32
    %c0_i32_0 = arith.constant 0 : i32
    %c0_i32_1 = arith.constant 0 : i32
    return %c0_i32, %c0_i32_0 : i32, i32
  }
  func.func @transform_8(%arg0: i32) -> (i32, i32) {
    %c0_i32 = arith.constant 0 : i32
    %c0_i32_0 = arith.constant 0 : i32
    %c0_i32_1 = arith.constant 0 : i32
    return %c0_i32, %c0_i32_0 : i32, i32
  }
  func.func @transform_9(%arg0: i32) -> (i32, i32) {
    %c0_i32 = arith.constant 0 : i32
    %c0_i32_0 = arith.constant 0 : i32
    %c0_i32_1 = arith.constant 0 : i32
    return %c0_i32, %c0_i32_0 : i32, i32
  }
  func.func @transform_10(%arg0: i32) -> (i32, i32) {
    %c0_i32 = arith.constant 0 : i32
    %c0_i32_0 = arith.constant 0 : i32
    %c0_i32_1 = arith.constant 0 : i32
    return %c0_i32, %c0_i32_0 : i32, i32
  }
  func.func @transform_11(%arg0: i32) -> (i32, i32) {
    %c0_i32 = arith.constant 0 : i32
    %c0_i32_0 = arith.constant 0 : i32
    %c0_i32_1 = arith.constant 0 : i32
    return %c0_i32, %c0_i32_0 : i32, i32
  }
  func.func @transform_12(%arg0: i32) -> (i32, i32) {
    %c0_i32 = arith.constant 0 : i32
    %c0_i32_0 = arith.constant 0 : i32
    %c0_i32_1 = arith.constant 0 : i32
    return %c0_i32, %c0_i32_0 : i32, i32
  }
  func.func @transform_13(%arg0: i32) -> (i32, i32) {
    %c0_i32 = arith.constant 0 : i32
    %c0_i32_0 = arith.constant 0 : i32
    %c0_i32_1 = arith.constant 0 : i32
    return %c0_i32, %c0_i32_0 : i32, i32
  }
  func.func @transform_14(%arg0: i32) -> (i32, i32) {
    %c0_i32 = arith.constant 0 : i32
    %c0_i32_0 = arith.constant 0 : i32
    %c0_i32_1 = arith.constant 0 : i32
    return %c0_i32, %c0_i32_0 : i32, i32
  }
  func.func @transform_15(%arg0: i32) -> (i32, i32, i32) {
    %c0_i32 = arith.constant 0 : i32
    %c0_i32_0 = arith.constant 0 : i32
    %c0_i32_1 = arith.constant 0 : i32
    return %arg0, %c0_i32, %c0_i32_0 : i32, i32, i32
  }
  func.func @transform_16(%arg0: i32) -> (i32, i32, i32) {
    %c0_i32 = arith.constant 0 : i32
    %c0_i32_0 = arith.constant 0 : i32
    %c0_i32_1 = arith.constant 0 : i32
    return %arg0, %c0_i32, %c0_i32_0 : i32, i32, i32
  }
}

</mosaic_0001>

<llo_original>
// kernel: mamba_model_forward.3
$region0: #{mamba_model_forward.3}
  #allocation0 [shape = 'u32[]', space=smem, size = 0x4, offset = 0x4, fixed_abs, tag = 'smem constant byte address 0x4 - core index']
  #allocation1 [shape = 'u32[144,128]{1,0:T(1,128)}', space=vmem, size = 0x12000, scoped, tag = 'internal scratch']
  #allocation2 [shape = 'f32[2,8,16,64]{3,2,1,0:T(8,128)}', space=vmem, size = 0x20000, scoped, tag = 'scratch operand']
  #allocation3 [shape = 'f32[2,8,16,64]{3,2,1,0:T(8,128)}', space=vmem, size = 0x20000, scoped, tag = 'scratch operand']
  #allocation4 [shape = 'f32[2,8,16,64]{3,2,1,0:T(8,128)}', space=vmem, size = 0x20000, scoped, tag = 'scratch operand']
  %s0 = inlined_call_operand.vmem [shape: f32[2,8,32], index: 0, kind: input, shape index: {}]
  %s1 = inlined_call_operand.vmem [shape: f32[2,8,32], index: 1, kind: input, shape index: {}]
  %s2 = inlined_call_operand.vmem [shape: f32[1,32], index: 2, kind: input, shape index: {}]
  %s3 = inlined_call_operand.vmem [shape: f32[1,32], index: 3, kind: input, shape index: {}]
  %s4 = inlined_call_operand.vmem [shape: f32[32,64], index: 4, kind: input, shape index: {}]
  %s5 = inlined_call_operand.vmem [shape: f32[32,64], index: 5, kind: input, shape index: {}]
  %s6 = inlined_call_operand.vmem [shape: f32[4,64], index: 6, kind: input, shape index: {}]
  %s7 = inlined_call_operand.vmem [shape: f32[1,64], index: 7, kind: input, shape index: {}]
  %s8 = inlined_call_operand.vmem [shape: f32[64,64], index: 8, kind: input, shape index: {}]
  %s9 = inlined_call_operand.vmem [shape: f32[64,16], index: 9, kind: input, shape index: {}]
  %s10 = inlined_call_operand.vmem [shape: f32[64,16], index: 10, kind: input, shape index: {}]
  %s11 = inlined_call_operand.vmem [shape: f32[1,64], index: 11, kind: input, shape index: {}]
  %s12 = inlined_call_operand.vmem [shape: f32[16,64], index: 12, kind: input, shape index: {}]
  %s13 = inlined_call_operand.vmem [shape: f32[1,64], index: 13, kind: input, shape index: {}]
  %s14 = inlined_call_operand.vmem [shape: f32[64,32], index: 14, kind: input, shape index: {}]
  %s15 = inlined_call_operand.hbm [shape: f32[2,8,32], index: 15, kind: output, shape index: {0}]
  %s16 = inlined_call_operand.hbm [shape: f32[2,8,32], index: 16, kind: output, shape index: {1}]
  %17 = xla_tuple %s15, %s16
  %s18 = sld [smem:[#allocation0]]
  $region85: #{mamba_model_forward.3} parent=0
    _
  %s20 = ssub.s32 1, %s18
  %s21 = scalar_select 0, %s20, %s18
  $region1: #{mamba_model_forward.3} parent=0
    #allocation5 [shape = 'u8[8192]{0}', space=vmem, size = 0x2000, scoped, tag = 'output window, operand 0, single buffered']
    #allocation6 [shape = 's32[1]{0}', space=sflag, size = 0x4, scoped, tag = 'scoped memory for mamba_model_forward.3']
    #allocation7 [shape = 'u8[8192]{0}', space=vmem, size = 0x2000, scoped, tag = 'output window, operand 1, single buffered']
    #allocation8 [shape = 's32[1]{0}', space=sflag, size = 0x4, scoped, tag = 'scoped memory for mamba_model_forward.3']
    %22 = vsyncpa [#allocation6], 0
    %23 = vsyncpa [#allocation8], 0
    // Predicated region
    $region2: #{mamba_model_forward.3} parent=1 // pred_check
      _
    $region3: #{mamba_model_forward.3} parent=1 // pred_check_branch
      %25 = sbr.rel (0) target = $region5
    $region4: #{mamba_model_forward.3} parent=1 // pred_region
      _
    $region5: #{mamba_model_forward.3} parent=1 // pred_fallthru
      _
    // Predicated region
    $region6: #{mamba_model_forward.3} parent=1 // pred_check
      _
    $region7: #{mamba_model_forward.3} parent=1 // pred_check_branch
      %27 = sbr.rel (0) target = $region9
    $region8: #{mamba_model_forward.3} parent=1 // pred_region
      _
    $region9: #{mamba_model_forward.3} parent=1 // pred_fallthru
      _
    // Predicated region
    $region10: #{mamba_model_forward.3} parent=1 // pred_check
      _
    $region11: #{mamba_model_forward.3} parent=1 // pred_check_branch
      %29 = sbr.rel (0) target = $region13
    $region12: #{mamba_model_forward.3} parent=1 // pred_region
      _
    $region13: #{mamba_model_forward.3} parent=1 // pred_fallthru
      _
    // Predicated region
    $region14: #{mamba_model_forward.3} parent=1 // pred_check
      _
    $region15: #{mamba_model_forward.3} parent=1 // pred_check_branch
      %31 = sbr.rel (0) target = $region17
    $region16: #{mamba_model_forward.3} parent=1 // pred_region
      _
    $region17: #{mamba_model_forward.3} parent=1 // pred_fallthru
      _
    // Predicated region
    $region18: #{mamba_model_forward.3} parent=1 // pred_check
      _
    $region19: #{mamba_model_forward.3} parent=1 // pred_check_branch
      %33 = sbr.rel (0) target = $region21
    $region20: #{mamba_model_forward.3} parent=1 // pred_region
      _
    $region21: #{mamba_model_forward.3} parent=1 // pred_fallthru
      _
    // Predicated region
    $region22: #{mamba_model_forward.3} parent=1 // pred_check
      _
    $region23: #{mamba_model_forward.3} parent=1 // pred_check_branch
      %35 = sbr.rel (0) target = $region25
    $region24: #{mamba_model_forward.3} parent=1 // pred_region
      _
    $region25: #{mamba_model_forward.3} parent=1 // pred_fallthru
      _
    // Predicated region
    $region26: #{mamba_model_forward.3} parent=1 // pred_check
      _
    $region27: #{mamba_model_forward.3} parent=1 // pred_check_branch
      %37 = sbr.rel (0) target = $region29
    $region28: #{mamba_model_forward.3} parent=1 // pred_region
      _
    $region29: #{mamba_model_forward.3} parent=1 // pred_fallthru
      _
    // Predicated region
    $region30: #{mamba_model_forward.3} parent=1 // pred_check
      _
    $region31: #{mamba_model_forward.3} parent=1 // pred_check_branch
      %39 = sbr.rel (0) target = $region33
    $region32: #{mamba_model_forward.3} parent=1 // pred_region
      _
    $region33: #{mamba_model_forward.3} parent=1 // pred_fallthru
      _
    // Predicated region
    $region34: #{mamba_model_forward.3} parent=1 // pred_check
      _
    $region35: #{mamba_model_forward.3} parent=1 // pred_check_branch
      %41 = sbr.rel (0) target = $region37
    $region36: #{mamba_model_forward.3} parent=1 // pred_region
      _
    $region37: #{mamba_model_forward.3} parent=1 // pred_fallthru
      _
    // Predicated region
    $region38: #{mamba_model_forward.3} parent=1 // pred_check
      _
    $region39: #{mamba_model_forward.3} parent=1 // pred_check_branch
      %43 = sbr.rel (0) target = $region41
    $region40: #{mamba_model_forward.3} parent=1 // pred_region
      _
    $region41: #{mamba_model_forward.3} parent=1 // pred_fallthru
      _
    // Predicated region
    $region42: #{mamba_model_forward.3} parent=1 // pred_check
      _
    $region43: #{mamba_model_forward.3} parent=1 // pred_check_branch
      %45 = sbr.rel (0) target = $region45
    $region44: #{mamba_model_forward.3} parent=1 // pred_region
      _
    $region45: #{mamba_model_forward.3} parent=1 // pred_fallthru
      _
    // Predicated region
    $region46: #{mamba_model_forward.3} parent=1 // pred_check
      _
    $region47: #{mamba_model_forward.3} parent=1 // pred_check_branch
      %47 = sbr.rel (0) target = $region49
    $region48: #{mamba_model_forward.3} parent=1 // pred_region
      _
    $region49: #{mamba_model_forward.3} parent=1 // pred_fallthru
      _
    // Predicated region
    $region50: #{mamba_model_forward.3} parent=1 // pred_check
      _
    $region51: #{mamba_model_forward.3} parent=1 // pred_check_branch
      %49 = sbr.rel (0) target = $region53
    $region52: #{mamba_model_forward.3} parent=1 // pred_region
      _
    $region53: #{mamba_model_forward.3} parent=1 // pred_fallthru
      _
    // Predicated region
    $region54: #{mamba_model_forward.3} parent=1 // pred_check
      _
    $region55: #{mamba_model_forward.3} parent=1 // pred_check_branch
      %51 = sbr.rel (0) target = $region57
    $region56: #{mamba_model_forward.3} parent=1 // pred_region
      _
    $region57: #{mamba_model_forward.3} parent=1 // pred_fallthru
      _
    // Predicated region
    $region58: #{mamba_model_forward.3} parent=1 // pred_check
      _
    $region59: #{mamba_model_forward.3} parent=1 // pred_check_branch
      %53 = sbr.rel (0) target = $region61
    $region60: #{mamba_model_forward.3} parent=1 // pred_region
      _
    $region61: #{mamba_model_forward.3} parent=1 // pred_fallthru
      _
    %v54 = vld [vmem:[%s0] sm:$0xff]
    %v55 = vld [vmem:[%s0 + $0x8] sm:$0xff]
    %v56 = vld [vmem:[%s1] sm:$0xff]
    %v57 = vld [vmem:[%s1 + $0x8] sm:$0xff]
    %v58 = vadd.f32 %v54, %v56
    %v59 = vadd.f32 %v55, %v57
    %vm60 = vcmask 261120
    %v61 = vsel %vm60, %v58, 0.0
    %62 = vadd.xlane.f32.xlu0 %v61
    %v63 = vpop.xlane.xlu0 %62
    %v64 = vsel %vm60, %v59, 0.0
    %65 = vadd.xlane.f32.xlu0 %v64
    %v66 = vpop.xlane.xlu0 %65
    %v67 = vrcp.pop 32.0
    %v68 = vmul.f32 %v63, %v67
    %v69 = vmul.f32 %v66, %v67
    %v70 = vsub.f32 %v58, %v68
    %v71 = vsub.f32 %v59, %v69
    %v72 = vmul.f32 %v70, %v70
    %v73 = vmul.f32 %v71, %v71
    %v74 = vsel %vm60, %v72, 0.0
    %75 = vadd.xlane.f32.xlu0 %v74
    %v76 = vpop.xlane.xlu0 %75
    %v77 = vsel %vm60, %v73, 0.0
    %78 = vadd.xlane.f32.xlu0 %v77
    %v79 = vpop.xlane.xlu0 %78
    %v80 = vmul.f32 %v76, %v67
    %v81 = vmul.f32 %v79, %v67
    %v82 = vadd.f32 %v80, 1e-05
    %v83 = vadd.f32 %v81, 1e-05
    %v84 = vrsqrt.pop %v82
    %v85 = vrsqrt.pop %v83
    %v86 = vmul.f32 %v70, %v84
    %v87 = vmul.f32 %v71, %v85
    %v88 = vld [vmem:[%s2] sm:$0x1]
    %v90 = vlaneseq
    %v91 = vshrl.u32 %v90, 7
    %v92 = vsub.s32 0, %v91
    %v93 = vrot.slane %v88, %v92
    %v95 = vmul.f32 %v86, %v93
    %v96 = vmul.f32 %v87, %v93
    %v97 = vld [vmem:[%s3] sm:$0x1]
    %v99 = vlaneseq
    %v100 = vshrl.u32 %v99, 7
    %v101 = vsub.s32 0, %v100
    %v102 = vrot.slane %v97, %v101
    %v104 = vadd.f32 %v95, %v102
    %v105 = vadd.f32 %v96, %v102
    %v106 = vld [vmem:[%s4] sm:$0xff]
    %v107 = vld [vmem:[%s4 + $0x8] sm:$0xff]
    %v108 = vld [vmem:[%s4 + $0x10] sm:$0xff]
    %v109 = vld [vmem:[%s4 + $0x18] sm:$0xff]
    %v111 = vsel %vm60, %v104, 0
    %v114 = vsel %vm60, %v105, 0
    %116 = vmatprep.subr.mxu0 0.0
    %117 = vmatpush1.msra.mxu0 %v106
    %118 = vmatprep.subr.mxu0 0.0
    %119 = vmatpush1.msra.mxu0 %v107
    %120 = vmatprep.subr.mxu0 0.0
    %121 = vmatpush1.msra.mxu0 %v108
    %122 = vmatprep.subr.mxu0 0.0
    %123 = vmatpush1.msra.mxu0 %v109
    %124 = vmatprep.subr.mxu0 0.0
    %125 = vmatpush1.msra.mxu0 0.0
    %126 = vmatprep.subr.mxu0 0.0
    %127 = vmatpush1.msra.mxu0 0.0
    %128 = vmatprep.subr.mxu0 0.0
    %129 = vmatpush1.msra.mxu0 0.0
    %130 = vmatprep.subr.mxu0 0.0
    %131 = vmatpush1.msra.mxu0 0.0
    %132 = vmatprep.subr.mxu0 0.0
    %133 = vmatpush1.msra.mxu0 0.0
    %134 = vmatprep.subr.mxu0 0.0
    %135 = vmatpush1.msra.mxu0 0.0
    %136 = vmatprep.subr.mxu0 0.0
    %137 = vmatpush1.msra.mxu0 0.0
    %138 = vmatprep.subr.mxu0 0.0
    %139 = vmatpush1.msra.mxu0 0.0
    %140 = vmatprep.subr.mxu0 0.0
    %141 = vmatpush1.msra.mxu0 0.0
    %142 = vmatprep.subr.mxu0 0.0
    %143 = vmatpush1.msra.mxu0 0.0
    %144 = vmatprep.subr.mxu0 0.0
    %145 = vmatpush1.msra.mxu0 0.0
    %146 = vmatprep.subr.mxu0 0.0
    %147 = vmatpush1.msra.mxu0 0.0
    %148 = vmatprep.subr.mxu0 0.0
    %149 = vmatpush1.msra.mxu0 0.0
    %150 = vmatprep.subr.mxu0 0.0
    %151 = vmatpush1.msra.mxu0 0.0
    %152 = vmatprep.subr.mxu0 0.0
    %153 = vmatpush1.msra.mxu0 0.0
    %154 = vmatprep.subr.mxu0 0.0
    %155 = vmatpush1.msra.mxu0 0.0
    %156 = vmatprep.subr.mxu0 0.0
    %157 = vmatpush1.msra.mxu0 0.0
    %158 = vmatprep.subr.mxu0 0.0
    %159 = vmatpush1.msra.mxu0 0.0
    %160 = vmatprep.subr.mxu0 0.0
    %161 = vmatpush1.msra.mxu0 0.0
    %162 = vmatprep.subr.mxu0 0.0
    %163 = vmatpush1.msra.mxu0 0.0
    %164 = vmatprep.subr.mxu0 0.0
    %165 = vmatpush1.msra.mxu0 0.0
    %166 = vmatprep.subr.mxu0 0.0
    %167 = vmatpush1.msra.mxu0 0.0
    %168 = vmatprep.subr.mxu0 0.0
    %169 = vmatpush1.msra.mxu0 0.0
    %170 = vmatprep.subr.mxu0 0.0
    %171 = vmatpush1.msra.mxu0 0.0
    %172 = vmatprep.subr.mxu0 0.0
    %173 = vmatpush1.msra.mxu0 0.0
    %174 = vmatprep.subr.mxu0 0.0
    %175 = vmatpush1.msra.mxu0 0.0
    %176 = vmatprep.subr.mxu0 0.0
    %177 = vmatpush1.msra.mxu0 0.0
    %178 = vmatprep.subr.mxu0 0.0
    %179 = vmatpush1.msra.mxu0 0.0
    %180 = vmatprep.mubr.f32.mxu0 0.0
    %181 = vmatmul.mubr.f32.gmra.mrb[0].mxu0 %v111
    %v182 = vpop.f32.mrb[0].mxu0
    %v183 = vadd.f32 0.0, %v182
    %v184 = vpop.f32.mrb[0].mxu0
    %185 = vmatprep.mubr.f32.mxu0 0.0
    %186 = vmatmul.mubr.f32.gmra.mrb[0].mxu0 %v114
    %v187 = vpop.f32.mrb[0].mxu0
    %v188 = vadd.f32 0.0, %v187
    %v189 = vpop.f32.mrb[0].mxu0
    %190 = vdwg.mxu0
    %v191 = vld [vmem:[%s5] sm:$0xff]
    %v192 = vld [vmem:[%s5 + $0x8] sm:$0xff]
    %v193 = vld [vmem:[%s5 + $0x10] sm:$0xff]
    %v194 = vld [vmem:[%s5 + $0x18] sm:$0xff]
    %195 = vmatprep.subr.mxu0 0.0
    %196 = vmatpush1.msra.mxu0 %v191
    %197 = vmatprep.subr.mxu0 0.0
    %198 = vmatpush1.msra.mxu0 %v192
    %199 = vmatprep.subr.mxu0 0.0
    %200 = vmatpush1.msra.mxu0 %v193
    %201 = vmatprep.subr.mxu0 0.0
    %202 = vmatpush1.msra.mxu0 %v194
    %203 = vmatprep.subr.mxu0 0.0
    %204 = vmatpush1.msra.mxu0 0.0
    %205 = vmatprep.subr.mxu0 0.0
    %206 = vmatpush1.msra.mxu0 0.0
    %207 = vmatprep.subr.mxu0 0.0
    %208 = vmatpush1.msra.mxu0 0.0
    %209 = vmatprep.subr.mxu0 0.0
    %210 = vmatpush1.msra.mxu0 0.0
    %211 = vmatprep.subr.mxu0 0.0
    %212 = vmatpush1.msra.mxu0 0.0
    %213 = vmatprep.subr.mxu0 0.0
    %214 = vmatpush1.msra.mxu0 0.0
    %215 = vmatprep.subr.mxu0 0.0
    %216 = vmatpush1.msra.mxu0 0.0
    %217 = vmatprep.subr.mxu0 0.0
    %218 = vmatpush1.msra.mxu0 0.0
    %219 = vmatprep.subr.mxu0 0.0
    %220 = vmatpush1.msra.mxu0 0.0
    %221 = vmatprep.subr.mxu0 0.0
    %222 = vmatpush1.msra.mxu0 0.0
    %223 = vmatprep.subr.mxu0 0.0
    %224 = vmatpush1.msra.mxu0 0.0
    %225 = vmatprep.subr.mxu0 0.0
    %226 = vmatpush1.msra.mxu0 0.0
    %227 = vmatprep.subr.mxu0 0.0
    %228 = vmatpush1.msra.mxu0 0.0
    %229 = vmatprep.subr.mxu0 0.0
    %230 = vmatpush1.msra.mxu0 0.0
    %231 = vmatprep.subr.mxu0 0.0
    %232 = vmatpush1.msra.mxu0 0.0
    %233 = vmatprep.subr.mxu0 0.0
    %234 = vmatpush1.msra.mxu0 0.0
    %235 = vmatprep.subr.mxu0 0.0
    %236 = vmatpush1.msra.mxu0 0.0
    %237 = vmatprep.subr.mxu0 0.0
    %238 = vmatpush1.msra.mxu0 0.0
    %239 = vmatprep.subr.mxu0 0.0
    %240 = vmatpush1.msra.mxu0 0.0
    %241 = vmatprep.subr.mxu0 0.0
    %242 = vmatpush1.msra.mxu0 0.0
    %243 = vmatprep.subr.mxu0 0.0
    %244 = vmatpush1.msra.mxu0 0.0
    %245 = vmatprep.subr.mxu0 0.0
    %246 = vmatpush1.msra.mxu0 0.0
    %247 = vmatprep.subr.mxu0 0.0
    %248 = vmatpush1.msra.mxu0 0.0
    %249 = vmatprep.subr.mxu0 0.0
    %250 = vmatpush1.msra.mxu0 0.0
    %251 = vmatprep.subr.mxu0 0.0
    %252 = vmatpush1.msra.mxu0 0.0
    %253 = vmatprep.subr.mxu0 0.0
    %254 = vmatpush1.msra.mxu0 0.0
    %255 = vmatprep.subr.mxu0 0.0
    %256 = vmatpush1.msra.mxu0 0.0
    %257 = vmatprep.subr.mxu0 0.0
    %258 = vmatpush1.msra.mxu0 0.0
    %259 = vmatprep.mubr.f32.mxu0 0.0
    %260 = vmatmul.mubr.f32.gmra.mrb[0].mxu0 %v111
    %v261 = vpop.f32.mrb[0].mxu0
    %v262 = vadd.f32 0.0, %v261
    %v263 = vpop.f32.mrb[0].mxu0
    %264 = vmatprep.mubr.f32.mxu0 0.0
    %265 = vmatmul.mubr.f32.gmra.mrb[0].mxu0 %v114
    %v266 = vpop.f32.mrb[0].mxu0
    %v267 = vadd.f32 0.0, %v266
    %v268 = vpop.f32.mrb[0].mxu0
    %269 = vdwg.mxu0
    %v270 = vld [vmem:[%s7] sm:$0x1]
    %v272 = vlaneseq
    %v273 = vshrl.u32 %v272, 7
    %v274 = vsub.s32 0, %v273
    %v275 = vrot.slane %v270, %v274
    %v277 = vld [vmem:[%s6] sm:$0x1]
    %v280 = vrot.slane %v183, 5
    %v281 = vrot.slane %v188, 5
    %vm284 = vcmask 1042432
    %v285 = vsel %vm284, 0.0, %v280
    %v286 = vsel %vm284, 0.0, %v281
    %v287 = vlaneseq
    %v288 = vshrl.u32 %v287, 7
    %v289 = vsub.s32 0, %v288
    %v290 = vrot.slane %v277, %v289
    %v291 = vmul.f32 %v285, %v290
    %v292 = vmul.f32 %v286, %v290
    %v293 = vadd.f32 %v275, %v291
    %v294 = vadd.f32 %v275, %v292
    %v295 = vld [vmem:[%s6 + $0x1] sm:$0x1]
    %v296 = vrot.slane %v183, 6
    %v297 = vrot.slane %v188, 6
    %vm300 = vcmask 1041408
    %v301 = vsel %vm300, 0.0, %v296
    %v302 = vsel %vm300, 0.0, %v297
    %v303 = vlaneseq
    %v304 = vshrl.u32 %v303, 7
    %v305 = vsub.s32 0, %v304
    %v306 = vrot.slane %v295, %v305
    %v307 = vmul.f32 %v301, %v306
    %v308 = vmul.f32 %v302, %v306
    %v309 = vadd.f32 %v293, %v307
    %v310 = vadd.f32 %v294, %v308
    %v311 = vld [vmem:[%s6 + $0x2] sm:$0x1]
    %v312 = vrot.slane %v183, 7
    %v313 = vrot.slane %v188, 7
    %vm316 = vcmask 1040384
    %v317 = vsel %vm316, 0.0, %v312
    %v318 = vsel %vm316, 0.0, %v313
    %v319 = vlaneseq
    %v320 = vshrl.u32 %v319, 7
    %v321 = vsub.s32 0, %v320
    %v322 = vrot.slane %v311, %v321
    %v323 = vmul.f32 %v317, %v322
    %v324 = vmul.f32 %v318, %v322
    %v325 = vadd.f32 %v309, %v323
    %v326 = vadd.f32 %v310, %v324
    %v327 = vld [vmem:[%s6 + $0x3] sm:$0x1]
    %v328 = vlaneseq
    %v329 = vshrl.u32 %v328, 7
    %v330 = vsub.s32 0, %v329
    %v331 = vrot.slane %v327, %v330
    %v332 = vmul.f32 %v183, %v331
    %v333 = vmul.f32 %v188, %v331
    %v334 = vadd.f32 %v325, %v332
    %v335 = vadd.f32 %v326, %v333
    %v336 = vxor.u32 %v334, 2147483648
    %v337 = vxor.u32 %v335, 2147483648
    %v338 = vmul.f32 %v336, 1.442695
    %v339 = vpow.pop %v338
    %v340 = vmul.f32 %v337, 1.442695
    %v341 = vpow.pop %v340
    %v342 = vadd.f32 %v339, 1.0
    %v343 = vadd.f32 %v341, 1.0
    %v344 = vrcp.pop %v342
    %v345 = vmul.f32 1.0, %v344
    %v346 = vrcp.pop %v343
    %v347 = vmul.f32 1.0, %v346
    %v348 = vmul.f32 %v334, %v345
    %v349 = vmul.f32 %v335, %v347
    %v350 = vld [vmem:[%s8] sm:$0xff]
    %v351 = vld [vmem:[%s8 + $0x8] sm:$0xff]
    %v352 = vld [vmem:[%s8 + $0x10] sm:$0xff]
    %v353 = vld [vmem:[%s8 + $0x18] sm:$0xff]
    %v354 = vld [vmem:[%s8 + $0x20] sm:$0xff]
    %v355 = vld [vmem:[%s8 + $0x28] sm:$0xff]
    %v356 = vld [vmem:[%s8 + $0x30] sm:$0xff]
    %v357 = vld [vmem:[%s8 + $0x38] sm:$0xff]
    %v358 = vld [vmem:[%s11] sm:$0x1]
    %v360 = vlaneseq
    %v361 = vshrl.u32 %v360, 7
    %v362 = vsub.s32 0, %v361
    %v363 = vrot.slane %v358, %v362
    %vm365 = vcmask 523264
    %v367 = vsel %vm365, %v348, 0
    %v370 = vsel %vm365, %v349, 0
    %372 = vmatprep.subr.mxu0 0.0
    %373 = vmatpush1.msra.mxu0 %v350
    %374 = vmatprep.subr.mxu0 0.0
    %375 = vmatpush1.msra.mxu0 %v351
    %376 = vmatprep.subr.mxu0 0.0
    %377 = vmatpush1.msra.mxu0 %v352
    %378 = vmatprep.subr.mxu0 0.0
    %379 = vmatpush1.msra.mxu0 %v353
    %380 = vmatprep.subr.mxu0 0.0
    %381 = vmatpush1.msra.mxu0 %v354
    %382 = vmatprep.subr.mxu0 0.0
    %383 = vmatpush1.msra.mxu0 %v355
    %384 = vmatprep.subr.mxu0 0.0
    %385 = vmatpush1.msra.mxu0 %v356
    %386 = vmatprep.subr.mxu0 0.0
    %387 = vmatpush1.msra.mxu0 %v357
    %388 = vmatprep.subr.mxu0 0.0
    %389 = vmatpush1.msra.mxu0 0.0
    %390 = vmatprep.subr.mxu0 0.0
    %391 = vmatpush1.msra.mxu0 0.0
    %392 = vmatprep.subr.mxu0 0.0
    %393 = vmatpush1.msra.mxu0 0.0
    %394 = vmatprep.subr.mxu0 0.0
    %395 = vmatpush1.msra.mxu0 0.0
    %396 = vmatprep.subr.mxu0 0.0
    %397 = vmatpush1.msra.mxu0 0.0
    %398 = vmatprep.subr.mxu0 0.0
    %399 = vmatpush1.msra.mxu0 0.0
    %400 = vmatprep.subr.mxu0 0.0
    %401 = vmatpush1.msra.mxu0 0.0
    %402 = vmatprep.subr.mxu0 0.0
    %403 = vmatpush1.msra.mxu0 0.0
    %404 = vmatprep.subr.mxu0 0.0
    %405 = vmatpush1.msra.mxu0 0.0
    %406 = vmatprep.subr.mxu0 0.0
    %407 = vmatpush1.msra.mxu0 0.0
    %408 = vmatprep.subr.mxu0 0.0
    %409 = vmatpush1.msra.mxu0 0.0
    %410 = vmatprep.subr.mxu0 0.0
    %411 = vmatpush1.msra.mxu0 0.0
    %412 = vmatprep.subr.mxu0 0.0
    %413 = vmatpush1.msra.mxu0 0.0
    %414 = vmatprep.subr.mxu0 0.0
    %415 = vmatpush1.msra.mxu0 0.0
    %416 = vmatprep.subr.mxu0 0.0
    %417 = vmatpush1.msra.mxu0 0.0
    %418 = vmatprep.subr.mxu0 0.0
    %419 = vmatpush1.msra.mxu0 0.0
    %420 = vmatprep.subr.mxu0 0.0
    %421 = vmatpush1.msra.mxu0 0.0
    %422 = vmatprep.subr.mxu0 0.0
    %423 = vmatpush1.msra.mxu0 0.0
    %424 = vmatprep.subr.mxu0 0.0
    %425 = vmatpush1.msra.mxu0 0.0
    %426 = vmatprep.subr.mxu0 0.0
    %427 = vmatpush1.msra.mxu0 0.0
    %428 = vmatprep.subr.mxu0 0.0
    %429 = vmatpush1.msra.mxu0 0.0
    %430 = vmatprep.subr.mxu0 0.0
    %431 = vmatpush1.msra.mxu0 0.0
    %432 = vmatprep.subr.mxu0 0.0
    %433 = vmatpush1.msra.mxu0 0.0
    %434 = vmatprep.subr.mxu0 0.0
    %435 = vmatpush1.msra.mxu0 0.0
    %436 = vmatprep.mubr.f32.mxu0 0.0
    %437 = vmatmul.mubr.f32.gmra.mrb[0].mxu0 %v367
    %v438 = vpop.f32.mrb[0].mxu0
    %v439 = vadd.f32 %v363, %v438
    %v440 = vpop.f32.mrb[0].mxu0
    %441 = vmatprep.mubr.f32.mxu0 0.0
    %442 = vmatmul.mubr.f32.gmra.mrb[0].mxu0 %v370
    %v443 = vpop.f32.mrb[0].mxu0
    %v444 = vadd.f32 %v363, %v443
    %v445 = vpop.f32.mrb[0].mxu0
    %446 = vdwg.mxu0
    %v447 = vmax.f32 %v439, 0.0
    %v448 = vmax.f32 %v444, 0.0
    %v449 = vand.u32 2147483647, %v439
    %v450 = vand.u32 2147483647, %v444
    %v451 = vsub.f32 0.0, %v449
    %v452 = vsub.f32 0.0, %v450
    %v453 = vmul.f32 %v451, 1.442695
    %v454 = vpow.pop %v453
    %v455 = vmul.f32 %v452, 1.442695
    %v456 = vpow.pop %v455
    %v457 = vadd.f32 %v454, 1.0
    %v458 = vlog2.pop %v457
    %v459 = vmul.f32 %v458, 0.6931472
    %v460 = vmul.f32 -0.5, %v454
    %v461 = vadd.f32 %v460, 1.0
    %v462 = vmul.f32 %v461, %v454
    %v463 = vand.u32 2147483647, %v454
    %vm464 = vcmp.lt.f32.partialorder %v463, 0.0004427343
    %v465 = vsel %vm464, %v462, %v459
    %v466 = vadd.f32 %v456, 1.0
    %v467 = vlog2.pop %v466
    %v468 = vmul.f32 %v467, 0.6931472
    %v469 = vmul.f32 -0.5, %v456
    %v470 = vadd.f32 %v469, 1.0
    %v471 = vmul.f32 %v470, %v456
    %v472 = vand.u32 2147483647, %v456
    %vm473 = vcmp.lt.f32.partialorder %v472, 0.0004427343
    %v474 = vsel %vm473, %v471, %v468
    %v475 = vadd.f32 %v447, %v465
    %v476 = vadd.f32 %v448, %v474
    %v477 = vld [vmem:[%s9] sm:$0xff]
    %v478 = vld [vmem:[%s9 + $0x8] sm:$0xff]
    %v479 = vld [vmem:[%s9 + $0x10] sm:$0xff]
    %v480 = vld [vmem:[%s9 + $0x18] sm:$0xff]
    %v481 = vld [vmem:[%s9 + $0x20] sm:$0xff]
    %v482 = vld [vmem:[%s9 + $0x28] sm:$0xff]
    %v483 = vld [vmem:[%s9 + $0x30] sm:$0xff]
    %v484 = vld [vmem:[%s9 + $0x38] sm:$0xff]
    %485 = vmatprep.subr.mxu0 0.0
    %486 = vmatpush1.msra.mxu0 %v477
    %487 = vmatprep.subr.mxu0 0.0
    %488 = vmatpush1.msra.mxu0 %v478
    %489 = vmatprep.subr.mxu0 0.0
    %490 = vmatpush1.msra.mxu0 %v479
    %491 = vmatprep.subr.mxu0 0.0
    %492 = vmatpush1.msra.mxu0 %v480
    %493 = vmatprep.subr.mxu0 0.0
    %494 = vmatpush1.msra.mxu0 %v481
    %495 = vmatprep.subr.mxu0 0.0
    %496 = vmatpush1.msra.mxu0 %v482
    %497 = vmatprep.subr.mxu0 0.0
    %498 = vmatpush1.msra.mxu0 %v483
    %499 = vmatprep.subr.mxu0 0.0
    %500 = vmatpush1.msra.mxu0 %v484
    %501 = vmatprep.subr.mxu0 0.0
    %502 = vmatpush1.msra.mxu0 0.0
    %503 = vmatprep.subr.mxu0 0.0
    %504 = vmatpush1.msra.mxu0 0.0
    %505 = vmatprep.subr.mxu0 0.0
    %506 = vmatpush1.msra.mxu0 0.0
    %507 = vmatprep.subr.mxu0 0.0
    %508 = vmatpush1.msra.mxu0 0.0
    %509 = vmatprep.subr.mxu0 0.0
    %510 = vmatpush1.msra.mxu0 0.0
    %511 = vmatprep.subr.mxu0 0.0
    %512 = vmatpush1.msra.mxu0 0.0
    %513 = vmatprep.subr.mxu0 0.0
    %514 = vmatpush1.msra.mxu0 0.0
    %515 = vmatprep.subr.mxu0 0.0
    %516 = vmatpush1.msra.mxu0 0.0
    %517 = vmatprep.subr.mxu0 0.0
    %518 = vmatpush1.msra.mxu0 0.0
    %519 = vmatprep.subr.mxu0 0.0
    %520 = vmatpush1.msra.mxu0 0.0
    %521 = vmatprep.subr.mxu0 0.0
    %522 = vmatpush1.msra.mxu0 0.0
    %523 = vmatprep.subr.mxu0 0.0
    %524 = vmatpush1.msra.mxu0 0.0
    %525 = vmatprep.subr.mxu0 0.0
    %526 = vmatpush1.msra.mxu0 0.0
    %527 = vmatprep.subr.mxu0 0.0
    %528 = vmatpush1.msra.mxu0 0.0
    %529 = vmatprep.subr.mxu0 0.0
    %530 = vmatpush1.msra.mxu0 0.0
    %531 = vmatprep.subr.mxu0 0.0
    %532 = vmatpush1.msra.mxu0 0.0
    %533 = vmatprep.subr.mxu0 0.0
    %534 = vmatpush1.msra.mxu0 0.0
    %535 = vmatprep.subr.mxu0 0.0
    %536 = vmatpush1.msra.mxu0 0.0
    %537 = vmatprep.subr.mxu0 0.0
    %538 = vmatpush1.msra.mxu0 0.0
    %539 = vmatprep.subr.mxu0 0.0
    %540 = vmatpush1.msra.mxu0 0.0
    %541 = vmatprep.subr.mxu0 0.0
    %542 = vmatpush1.msra.mxu0 0.0
    %543 = vmatprep.subr.mxu0 0.0
    %544 = vmatpush1.msra.mxu0 0.0
    %545 = vmatprep.subr.mxu0 0.0
    %546 = vmatpush1.msra.mxu0 0.0
    %547 = vmatprep.subr.mxu0 0.0
    %548 = vmatpush1.msra.mxu0 0.0
    %549 = vmatprep.mubr.f32.mxu0 0.0
    %550 = vmatmul.mubr.f32.gmra.mrb[0].mxu0 %v367
    %v551 = vpop.f32.mrb[0].mxu0
    %v552 = vadd.f32 0.0, %v551
    %v553 = vpop.f32.mrb[0].mxu0
    %554 = vmatprep.mubr.f32.mxu0 0.0
    %555 = vmatmul.mubr.f32.gmra.mrb[0].mxu0 %v370
    %v556 = vpop.f32.mrb[0].mxu0
    %v557 = vadd.f32 0.0, %v556
    %v558 = vpop.f32.mrb[0].mxu0
    %559 = vdwg.mxu0
    %v560 = vld [vmem:[%s10] sm:$0xff]
    %v561 = vld [vmem:[%s10 + $0x8] sm:$0xff]
    %v562 = vld [vmem:[%s10 + $0x10] sm:$0xff]
    %v563 = vld [vmem:[%s10 + $0x18] sm:$0xff]
    %v564 = vld [vmem:[%s10 + $0x20] sm:$0xff]
    %v565 = vld [vmem:[%s10 + $0x28] sm:$0xff]
    %v566 = vld [vmem:[%s10 + $0x30] sm:$0xff]
    %v567 = vld [vmem:[%s10 + $0x38] sm:$0xff]
    %568 = vmatprep.subr.mxu0 0.0
    %569 = vmatpush1.msra.mxu0 %v560
    %570 = vmatprep.subr.mxu0 0.0
    %571 = vmatpush1.msra.mxu0 %v561
    %572 = vmatprep.subr.mxu0 0.0
    %573 = vmatpush1.msra.mxu0 %v562
    %574 = vmatprep.subr.mxu0 0.0
    %575 = vmatpush1.msra.mxu0 %v563
    %576 = vmatprep.subr.mxu0 0.0
    %577 = vmatpush1.msra.mxu0 %v564
    %578 = vmatprep.subr.mxu0 0.0
    %579 = vmatpush1.msra.mxu0 %v565
    %580 = vmatprep.subr.mxu0 0.0
    %581 = vmatpush1.msra.mxu0 %v566
    %582 = vmatprep.subr.mxu0 0.0
    %583 = vmatpush1.msra.mxu0 %v567
    %584 = vmatprep.subr.mxu0 0.0
    %585 = vmatpush1.msra.mxu0 0.0
    %586 = vmatprep.subr.mxu0 0.0
    %587 = vmatpush1.msra.mxu0 0.0
    %588 = vmatprep.subr.mxu0 0.0
    %589 = vmatpush1.msra.mxu0 0.0
    %590 = vmatprep.subr.mxu0 0.0
    %591 = vmatpush1.msra.mxu0 0.0
    %592 = vmatprep.subr.mxu0 0.0
    %593 = vmatpush1.msra.mxu0 0.0
    %594 = vmatprep.subr.mxu0 0.0
    %595 = vmatpush1.msra.mxu0 0.0
    %596 = vmatprep.subr.mxu0 0.0
    %597 = vmatpush1.msra.mxu0 0.0
    %598 = vmatprep.subr.mxu0 0.0
    %599 = vmatpush1.msra.mxu0 0.0
    %600 = vmatprep.subr.mxu0 0.0
    %601 = vmatpush1.msra.mxu0 0.0
    %602 = vmatprep.subr.mxu0 0.0
    %603 = vmatpush1.msra.mxu0 0.0
    %604 = vmatprep.subr.mxu0 0.0
    %605 = vmatpush1.msra.mxu0 0.0
    %606 = vmatprep.subr.mxu0 0.0
    %607 = vmatpush1.msra.mxu0 0.0
    %608 = vmatprep.subr.mxu0 0.0
    %609 = vmatpush1.msra.mxu0 0.0
    %610 = vmatprep.subr.mxu0 0.0
    %611 = vmatpush1.msra.mxu0 0.0
    %612 = vmatprep.subr.mxu0 0.0
    %613 = vmatpush1.msra.mxu0 0.0
    %614 = vmatprep.subr.mxu0 0.0
    %615 = vmatpush1.msra.mxu0 0.0
    %616 = vmatprep.subr.mxu0 0.0
    %617 = vmatpush1.msra.mxu0 0.0
    %618 = vmatprep.subr.mxu0 0.0
    %619 = vmatpush1.msra.mxu0 0.0
    %620 = vmatprep.subr.mxu0 0.0
    %621 = vmatpush1.msra.mxu0 0.0
    %622 = vmatprep.subr.mxu0 0.0
    %623 = vmatpush1.msra.mxu0 0.0
    %624 = vmatprep.subr.mxu0 0.0
    %625 = vmatpush1.msra.mxu0 0.0
    %626 = vmatprep.subr.mxu0 0.0
    %627 = vmatpush1.msra.mxu0 0.0
    %628 = vmatprep.subr.mxu0 0.0
    %629 = vmatpush1.msra.mxu0 0.0
    %630 = vmatprep.subr.mxu0 0.0
    %631 = vmatpush1.msra.mxu0 0.0
    %632 = vmatprep.mubr.f32.mxu0 0.0
    %633 = vmatmul.mubr.f32.gmra.mrb[0].mxu0 %v367
    %v634 = vpop.f32.mrb[0].mxu0
    %v635 = vadd.f32 0.0, %v634
    %v636 = vpop.f32.mrb[0].mxu0
    %637 = vmatprep.mubr.f32.mxu0 0.0
    %638 = vmatmul.mubr.f32.gmra.mrb[0].mxu0 %v370
    %v639 = vpop.f32.mrb[0].mxu0
    %v640 = vadd.f32 0.0, %v639
    %v641 = vpop.f32.mrb[0].mxu0
    %642 = vdwg.mxu0
    %v643 = vld [vmem:[%s12] sm:$0xff]
    %v644 = vld [vmem:[%s12 + $0x8] sm:$0xff]
    %v645 = vmul.f32 %v643, 1.442695
    %v646 = vpow.pop %v645
    %v647 = vmul.f32 %v644, 1.442695
    %v648 = vpow.pop %v647
    %v649 = vsub.f32 0.0, %v646
    %v650 = vsub.f32 0.0, %v648
    %v651 = vmul.f32 %v475, %v348
    %v652 = vmul.f32 %v476, %v349
    %v654 = vcombine.high %v475, %v475
    %v656 = vunpack.c.l.s4 1966171168
    %v657 = vunpack.c.0.s8 %v656
    %v658 = vlaneseq
    %v659 = vshrl.u32 %v658, 7
    %v660 = vsub.s32 %v657, %v659
    %v661 = vrot.slane %v475, %v660
    %v663 = vunpack.c.l.s4 1966171168
    %v664 = vunpack.c.0.s8 %v663
    %v665 = vlaneseq
    %v666 = vshrl.u32 %v665, 7
    %v667 = vsub.s32 %v664, %v666
    %v668 = vrot.slane %v654, %v667
    %v669 = vcombine.high %v661, %v661
    %v670 = vcombine.high %v668, %v668
    %v672 = vunpack.c.l.s4 1966171168
    %v673 = vunpack.c.0.s8 %v672
    %v674 = vlaneseq
    %v675 = vshrl.u32 %v674, 7
    %v676 = vsub.s32 %v673, %v675
    %v677 = vrot.slane %v661, %v676
    %v679 = vunpack.c.l.s4 1966171168
    %v680 = vunpack.c.0.s8 %v679
    %v681 = vlaneseq
    %v682 = vshrl.u32 %v681, 7
    %v683 = vsub.s32 %v680, %v682
    %v684 = vrot.slane %v668, %v683
    %v686 = vunpack.c.l.s4 1966171168
    %v687 = vunpack.c.0.s8 %v686
    %v688 = vlaneseq
    %v689 = vshrl.u32 %v688, 7
    %v690 = vsub.s32 %v687, %v689
    %v691 = vrot.slane %v669, %v690
    %v693 = vunpack.c.l.s4 1966171168
    %v694 = vunpack.c.0.s8 %v693
    %v695 = vlaneseq
    %v696 = vshrl.u32 %v695, 7
    %v697 = vsub.s32 %v694, %v696
    %v698 = vrot.slane %v670, %v697
    %v699 = vcombine.high %v677, %v677
    %v700 = vcombine.high %v684, %v684
    %v701 = vcombine.high %v691, %v691
    %v702 = vcombine.high %v698, %v698
    %v703 = vlaneseq
    %v704 = vshrl.u32 %v703, 7
    %v705 = vsub.s32 0, %v704
    %v706 = vrot.slane %v677, %v705
    %v707 = vlaneseq
    %v708 = vshrl.u32 %v707, 7
    %v709 = vsub.s32 0, %v708
    %v710 = vrot.slane %v691, %v709
    %v711 = vlaneseq
    %v712 = vshrl.u32 %v711, 7
    %v713 = vsub.s32 0, %v712
    %v714 = vrot.slane %v699, %v713
    %v715 = vlaneseq
    %v716 = vshrl.u32 %v715, 7
    %v717 = vsub.s32 0, %v716
    %v718 = vrot.slane %v701, %v717
    %v719 = vlaneseq
    %v720 = vshrl.u32 %v719, 7
    %v721 = vsub.s32 0, %v720
    %v722 = vrot.slane %v684, %v721
    %v723 = vlaneseq
    %v724 = vshrl.u32 %v723, 7
    %v725 = vsub.s32 0, %v724
    %v726 = vrot.slane %v698, %v725
    %v727 = vlaneseq
    %v728 = vshrl.u32 %v727, 7
    %v729 = vsub.s32 0, %v728
    %v730 = vrot.slane %v700, %v729
    %v731 = vlaneseq
    %v732 = vshrl.u32 %v731, 7
    %v733 = vsub.s32 0, %v732
    %v734 = vrot.slane %v702, %v733
    %v743 = vmul.f32 %v706, %v649
    %v744 = vmul.f32 %v706, %v650
    %v745 = vmul.f32 %v710, %v649
    %v746 = vmul.f32 %v710, %v650
    %v747 = vmul.f32 %v714, %v649
    %v748 = vmul.f32 %v714, %v650
    %v749 = vmul.f32 %v718, %v649
    %v750 = vmul.f32 %v718, %v650
    %v751 = vmul.f32 %v722, %v649
    %v752 = vmul.f32 %v722, %v650
    %v753 = vmul.f32 %v726, %v649
    %v754 = vmul.f32 %v726, %v650
    %v755 = vmul.f32 %v730, %v649
    %v756 = vmul.f32 %v730, %v650
    %v757 = vmul.f32 %v734, %v649
    %v758 = vmul.f32 %v734, %v650
    %v759 = vmul.f32 %v743, 1.442695
    %v760 = vpow.pop %v759
    %v761 = vmul.f32 %v744, 1.442695
    %v762 = vpow.pop %v761
    %v763 = vmul.f32 %v745, 1.442695
    %v764 = vpow.pop %v763
    %v765 = vmul.f32 %v746, 1.442695
    %v766 = vpow.pop %v765
    %v767 = vmul.f32 %v747, 1.442695
    %v768 = vpow.pop %v767
    %v769 = vmul.f32 %v748, 1.442695
    %v770 = vpow.pop %v769
    %v771 = vmul.f32 %v749, 1.442695
    %v772 = vpow.pop %v771
    %v773 = vmul.f32 %v750, 1.442695
    %v774 = vpow.pop %v773
    %v775 = vmul.f32 %v751, 1.442695
    %v776 = vpow.pop %v775
    %v777 = vmul.f32 %v752, 1.442695
    %v778 = vpow.pop %v777
    %v779 = vmul.f32 %v753, 1.442695
    %v780 = vpow.pop %v779
    %v781 = vmul.f32 %v754, 1.442695
    %v782 = vpow.pop %v781
    %v783 = vmul.f32 %v755, 1.442695
    %v784 = vpow.pop %v783
    %v785 = vmul.f32 %v756, 1.442695
    %v786 = vpow.pop %v785
    %v787 = vmul.f32 %v757, 1.442695
    %v788 = vpow.pop %v787
    %v789 = vmul.f32 %v758, 1.442695
    %v790 = vpow.pop %v789
    %791 = vst.msk [vmem:[#allocation2] sm:$0xff] %vm365, %v760
    %792 = vst.msk [vmem:[#allocation2 + $0x8] sm:$0xff] %vm365, %v762
    %793 = vst.msk [vmem:[#allocation2 + $0x10] sm:$0xff] %vm365, %v764
    %794 = vst.msk [vmem:[#allocation2 + $0x18] sm:$0xff] %vm365, %v766
    %795 = vst.msk [vmem:[#allocation2 + $0x20] sm:$0xff] %vm365, %v768
    %796 = vst.msk [vmem:[#allocation2 + $0x28] sm:$0xff] %vm365, %v770
    %797 = vst.msk [vmem:[#allocation2 + $0x30] sm:$0xff] %vm365, %v772
    %798 = vst.msk [vmem:[#allocation2 + $0x38] sm:$0xff] %vm365, %v774
    %799 = vst.msk [vmem:[#allocation2 + $0x40] sm:$0xff] %vm365, %v776
    %800 = vst.msk [vmem:[#allocation2 + $0x48] sm:$0xff] %vm365, %v778
    %801 = vst.msk [vmem:[#allocation2 + $0x50] sm:$0xff] %vm365, %v780
    %802 = vst.msk [vmem:[#allocation2 + $0x58] sm:$0xff] %vm365, %v782
    %803 = vst.msk [vmem:[#allocation2 + $0x60] sm:$0xff] %vm365, %v784
    %804 = vst.msk [vmem:[#allocation2 + $0x68] sm:$0xff] %vm365, %v786
    %805 = vst.msk [vmem:[#allocation2 + $0x70] sm:$0xff] %vm365, %v788
    %806 = vst.msk [vmem:[#allocation2 + $0x78] sm:$0xff] %vm365, %v790
    %v807 = vlaneseq
    %v808 = vshrl.u32 %v807, 7
    %v809 = vsub.s32 0, %v808
    %v810 = vrot.slane %v552, %v809
    %812 = vbcast.lane.b32.xlu0 %v810, 256
    %v813 = vpop.permute.xlu0 %812
    %s815 = sor.u32 256, 8
    %816 = vbcast.lane.b32.xlu0 %v810, %s815
    %v817 = vpop.permute.xlu0 %816
    %v818 = vlaneseq
    %v819 = vshrl.u32 %v818, 7
    %v820 = vsub.s32 1, %v819
    %v821 = vrot.slane %v552, %v820
    %823 = vbcast.lane.b32.xlu0 %v821, 256
    %v824 = vpop.permute.xlu0 %823
    %s826 = sor.u32 256, 8
    %827 = vbcast.lane.b32.xlu0 %v821, %s826
    %v828 = vpop.permute.xlu0 %827
    %v829 = vlaneseq
    %v830 = vshrl.u32 %v829, 7
    %v831 = vsub.s32 2, %v830
    %v832 = vrot.slane %v552, %v831
    %834 = vbcast.lane.b32.xlu0 %v832, 256
    %v835 = vpop.permute.xlu0 %834
    %s837 = sor.u32 256, 8
    %838 = vbcast.lane.b32.xlu0 %v832, %s837
    %v839 = vpop.permute.xlu0 %838
    %v840 = vlaneseq
    %v841 = vshrl.u32 %v840, 7
    %v842 = vsub.s32 3, %v841
    %v843 = vrot.slane %v552, %v842
    %845 = vbcast.lane.b32.xlu0 %v843, 256
    %v846 = vpop.permute.xlu0 %845
    %s848 = sor.u32 256, 8
    %849 = vbcast.lane.b32.xlu0 %v843, %s848
    %v850 = vpop.permute.xlu0 %849
    %v851 = vlaneseq
    %v852 = vshrl.u32 %v851, 7
    %v853 = vsub.s32 4, %v852
    %v854 = vrot.slane %v552, %v853
    %856 = vbcast.lane.b32.xlu0 %v854, 256
    %v857 = vpop.permute.xlu0 %856
    %s859 = sor.u32 256, 8
    %860 = vbcast.lane.b32.xlu0 %v854, %s859
    %v861 = vpop.permute.xlu0 %860
    %v862 = vlaneseq
    %v863 = vshrl.u32 %v862, 7
    %v864 = vsub.s32 5, %v863
    %v865 = vrot.slane %v552, %v864
    %867 = vbcast.lane.b32.xlu0 %v865, 256
    %v868 = vpop.permute.xlu0 %867
    %s870 = sor.u32 256, 8
    %871 = vbcast.lane.b32.xlu0 %v865, %s870
    %v872 = vpop.permute.xlu0 %871
    %v873 = vlaneseq
    %v874 = vshrl.u32 %v873, 7
    %v875 = vsub.s32 6, %v874
    %v876 = vrot.slane %v552, %v875
    %878 = vbcast.lane.b32.xlu0 %v876, 256
    %v879 = vpop.permute.xlu0 %878
    %s881 = sor.u32 256, 8
    %882 = vbcast.lane.b32.xlu0 %v876, %s881
    %v883 = vpop.permute.xlu0 %882
    %v884 = vlaneseq
    %v885 = vshrl.u32 %v884, 7
    %v886 = vsub.s32 7, %v885
    %v887 = vrot.slane %v552, %v886
    %889 = vbcast.lane.b32.xlu0 %v887, 256
    %v890 = vpop.permute.xlu0 %889
    %s892 = sor.u32 256, 8
    %893 = vbcast.lane.b32.xlu0 %v887, %s892
    %v894 = vpop.permute.xlu0 %893
    %v896 = vcombine.high %v651, %v651
    %v898 = vunpack.c.l.s4 1966171168
    %v899 = vunpack.c.0.s8 %v898
    %v900 = vlaneseq
    %v901 = vshrl.u32 %v900, 7
    %v902 = vsub.s32 %v899, %v901
    %v903 = vrot.slane %v651, %v902
    %v905 = vunpack.c.l.s4 1966171168
    %v906 = vunpack.c.0.s8 %v905
    %v907 = vlaneseq
    %v908 = vshrl.u32 %v907, 7
    %v909 = vsub.s32 %v906, %v908
    %v910 = vrot.slane %v896, %v909
    %v911 = vcombine.high %v903, %v903
    %v912 = vcombine.high %v910, %v910
    %v914 = vunpack.c.l.s4 1966171168
    %v915 = vunpack.c.0.s8 %v914
    %v916 = vlaneseq
    %v917 = vshrl.u32 %v916, 7
    %v918 = vsub.s32 %v915, %v917
    %v919 = vrot.slane %v903, %v918
    %v921 = vunpack.c.l.s4 1966171168
    %v922 = vunpack.c.0.s8 %v921
    %v923 = vlaneseq
    %v924 = vshrl.u32 %v923, 7
    %v925 = vsub.s32 %v922, %v924
    %v926 = vrot.slane %v910, %v925
    %v928 = vunpack.c.l.s4 1966171168
    %v929 = vunpack.c.0.s8 %v928
    %v930 = vlaneseq
    %v931 = vshrl.u32 %v930, 7
    %v932 = vsub.s32 %v929, %v931
    %v933 = vrot.slane %v911, %v932
    %v935 = vunpack.c.l.s4 1966171168
    %v936 = vunpack.c.0.s8 %v935
    %v937 = vlaneseq
    %v938 = vshrl.u32 %v937, 7
    %v939 = vsub.s32 %v936, %v938
    %v940 = vrot.slane %v912, %v939
    %v941 = vcombine.high %v919, %v919
    %v942 = vcombine.high %v926, %v926
    %v943 = vcombine.high %v933, %v933
    %v944 = vcombine.high %v940, %v940
    %v945 = vlaneseq
    %v946 = vshrl.u32 %v945, 7
    %v947 = vsub.s32 0, %v946
    %v948 = vrot.slane %v919, %v947
    %v949 = vlaneseq
    %v950 = vshrl.u32 %v949, 7
    %v951 = vsub.s32 0, %v950
    %v952 = vrot.slane %v933, %v951
    %v953 = vlaneseq
    %v954 = vshrl.u32 %v953, 7
    %v955 = vsub.s32 0, %v954
    %v956 = vrot.slane %v941, %v955
    %v957 = vlaneseq
    %v958 = vshrl.u32 %v957, 7
    %v959 = vsub.s32 0, %v958
    %v960 = vrot.slane %v943, %v959
    %v961 = vlaneseq
    %v962 = vshrl.u32 %v961, 7
    %v963 = vsub.s32 0, %v962
    %v964 = vrot.slane %v926, %v963
    %v965 = vlaneseq
    %v966 = vshrl.u32 %v965, 7
    %v967 = vsub.s32 0, %v966
    %v968 = vrot.slane %v940, %v967
    %v969 = vlaneseq
    %v970 = vshrl.u32 %v969, 7
    %v971 = vsub.s32 0, %v970
    %v972 = vrot.slane %v942, %v971
    %v973 = vlaneseq
    %v974 = vshrl.u32 %v973, 7
    %v975 = vsub.s32 0, %v974
    %v976 = vrot.slane %v944, %v975
    %v985 = vmul.f32 %v813, %v948
    %v986 = vmul.f32 %v817, %v948
    %v987 = vmul.f32 %v824, %v952
    %v988 = vmul.f32 %v828, %v952
    %v989 = vmul.f32 %v835, %v956
    %v990 = vmul.f32 %v839, %v956
    %v991 = vmul.f32 %v846, %v960
    %v992 = vmul.f32 %v850, %v960
    %v993 = vmul.f32 %v857, %v964
    %v994 = vmul.f32 %v861, %v964
    %v995 = vmul.f32 %v868, %v968
    %v996 = vmul.f32 %v872, %v968
    %v997 = vmul.f32 %v879, %v972
    %v998 = vmul.f32 %v883, %v972
    %v999 = vmul.f32 %v890, %v976
    %v1000 = vmul.f32 %v894, %v976
    %1001 = vst.msk [vmem:[#allocation3] sm:$0xff] %vm365, %v985
    %1002 = vst.msk [vmem:[#allocation3 + $0x8] sm:$0xff] %vm365, %v986
    %1003 = vst.msk [vmem:[#allocation3 + $0x10] sm:$0xff] %vm365, %v987
    %1004 = vst.msk [vmem:[#allocation3 + $0x18] sm:$0xff] %vm365, %v988
    %1005 = vst.msk [vmem:[#allocation3 + $0x20] sm:$0xff] %vm365, %v989
    %1006 = vst.msk [vmem:[#allocation3 + $0x28] sm:$0xff] %vm365, %v990
    %1007 = vst.msk [vmem:[#allocation3 + $0x30] sm:$0xff] %vm365, %v991
    %1008 = vst.msk [vmem:[#allocation3 + $0x38] sm:$0xff] %vm365, %v992
    %1009 = vst.msk [vmem:[#allocation3 + $0x40] sm:$0xff] %vm365, %v993
    %1010 = vst.msk [vmem:[#allocation3 + $0x48] sm:$0xff] %vm365, %v994
    %1011 = vst.msk [vmem:[#allocation3 + $0x50] sm:$0xff] %vm365, %v995
    %1012 = vst.msk [vmem:[#allocation3 + $0x58] sm:$0xff] %vm365, %v996
    %1013 = vst.msk [vmem:[#allocation3 + $0x60] sm:$0xff] %vm365, %v997
    %1014 = vst.msk [vmem:[#allocation3 + $0x68] sm:$0xff] %vm365, %v998
    %1015 = vst.msk [vmem:[#allocation3 + $0x70] sm:$0xff] %vm365, %v999
    %1016 = vst.msk [vmem:[#allocation3 + $0x78] sm:$0xff] %vm365, %v1000
    %v1018 = vcombine.high %v476, %v476
    %v1020 = vunpack.c.l.s4 1966171168
    %v1021 = vunpack.c.0.s8 %v1020
    %v1022 = vlaneseq
    %v1023 = vshrl.u32 %v1022, 7
    %v1024 = vsub.s32 %v1021, %v1023
    %v1025 = vrot.slane %v476, %v1024
    %v1027 = vunpack.c.l.s4 1966171168
    %v1028 = vunpack.c.0.s8 %v1027
    %v1029 = vlaneseq
    %v1030 = vshrl.u32 %v1029, 7
    %v1031 = vsub.s32 %v1028, %v1030
    %v1032 = vrot.slane %v1018, %v1031
    %v1033 = vcombine.high %v1025, %v1025
    %v1034 = vcombine.high %v1032, %v1032
    %v1036 = vunpack.c.l.s4 1966171168
    %v1037 = vunpack.c.0.s8 %v1036
    %v1038 = vlaneseq
    %v1039 = vshrl.u32 %v1038, 7
    %v1040 = vsub.s32 %v1037, %v1039
    %v1041 = vrot.slane %v1025, %v1040
    %v1043 = vunpack.c.l.s4 1966171168
    %v1044 = vunpack.c.0.s8 %v1043
    %v1045 = vlaneseq
    %v1046 = vshrl.u32 %v1045, 7
    %v1047 = vsub.s32 %v1044, %v1046
    %v1048 = vrot.slane %v1032, %v1047
    %v1050 = vunpack.c.l.s4 1966171168
    %v1051 = vunpack.c.0.s8 %v1050
    %v1052 = vlaneseq
    %v1053 = vshrl.u32 %v1052, 7
    %v1054 = vsub.s32 %v1051, %v1053
    %v1055 = vrot.slane %v1033, %v1054
    %v1057 = vunpack.c.l.s4 1966171168
    %v1058 = vunpack.c.0.s8 %v1057
    %v1059 = vlaneseq
    %v1060 = vshrl.u32 %v1059, 7
    %v1061 = vsub.s32 %v1058, %v1060
    %v1062 = vrot.slane %v1034, %v1061
    %v1063 = vcombine.high %v1041, %v1041
    %v1064 = vcombine.high %v1048, %v1048
    %v1065 = vcombine.high %v1055, %v1055
    %v1066 = vcombine.high %v1062, %v1062
    %v1067 = vlaneseq
    %v1068 = vshrl.u32 %v1067, 7
    %v1069 = vsub.s32 0, %v1068
    %v1070 = vrot.slane %v1041, %v1069
    %v1071 = vlaneseq
    %v1072 = vshrl.u32 %v1071, 7
    %v1073 = vsub.s32 0, %v1072
    %v1074 = vrot.slane %v1055, %v1073
    %v1075 = vlaneseq
    %v1076 = vshrl.u32 %v1075, 7
    %v1077 = vsub.s32 0, %v1076
    %v1078 = vrot.slane %v1063, %v1077
    %v1079 = vlaneseq
    %v1080 = vshrl.u32 %v1079, 7
    %v1081 = vsub.s32 0, %v1080
    %v1082 = vrot.slane %v1065, %v1081
    %v1083 = vlaneseq
    %v1084 = vshrl.u32 %v1083, 7
    %v1085 = vsub.s32 0, %v1084
    %v1086 = vrot.slane %v1048, %v1085
    %v1087 = vlaneseq
    %v1088 = vshrl.u32 %v1087, 7
    %v1089 = vsub.s32 0, %v1088
    %v1090 = vrot.slane %v1062, %v1089
    %v1091 = vlaneseq
    %v1092 = vshrl.u32 %v1091, 7
    %v1093 = vsub.s32 0, %v1092
    %v1094 = vrot.slane %v1064, %v1093
    %v1095 = vlaneseq
    %v1096 = vshrl.u32 %v1095, 7
    %v1097 = vsub.s32 0, %v1096
    %v1098 = vrot.slane %v1066, %v1097
    %v1107 = vmul.f32 %v1070, %v649
    %v1108 = vmul.f32 %v1070, %v650
    %v1109 = vmul.f32 %v1074, %v649
    %v1110 = vmul.f32 %v1074, %v650
    %v1111 = vmul.f32 %v1078, %v649
    %v1112 = vmul.f32 %v1078, %v650
    %v1113 = vmul.f32 %v1082, %v649
    %v1114 = vmul.f32 %v1082, %v650
    %v1115 = vmul.f32 %v1086, %v649
    %v1116 = vmul.f32 %v1086, %v650
    %v1117 = vmul.f32 %v1090, %v649
    %v1118 = vmul.f32 %v1090, %v650
    %v1119 = vmul.f32 %v1094, %v649
    %v1120 = vmul.f32 %v1094, %v650
    %v1121 = vmul.f32 %v1098, %v649
    %v1122 = vmul.f32 %v1098, %v650
    %v1123 = vmul.f32 %v1107, 1.442695
    %v1124 = vpow.pop %v1123
    %v1125 = vmul.f32 %v1108, 1.442695
    %v1126 = vpow.pop %v1125
    %v1127 = vmul.f32 %v1109, 1.442695
    %v1128 = vpow.pop %v1127
    %v1129 = vmul.f32 %v1110, 1.442695
    %v1130 = vpow.pop %v1129
    %v1131 = vmul.f32 %v1111, 1.442695
    %v1132 = vpow.pop %v1131
    %v1133 = vmul.f32 %v1112, 1.442695
    %v1134 = vpow.pop %v1133
    %v1135 = vmul.f32 %v1113, 1.442695
    %v1136 = vpow.pop %v1135
    %v1137 = vmul.f32 %v1114, 1.442695
    %v1138 = vpow.pop %v1137
    %v1139 = vmul.f32 %v1115, 1.442695
    %v1140 = vpow.pop %v1139
    %v1141 = vmul.f32 %v1116, 1.442695
    %v1142 = vpow.pop %v1141
    %v1143 = vmul.f32 %v1117, 1.442695
    %v1144 = vpow.pop %v1143
    %v1145 = vmul.f32 %v1118, 1.442695
    %v1146 = vpow.pop %v1145
    %v1147 = vmul.f32 %v1119, 1.442695
    %v1148 = vpow.pop %v1147
    %v1149 = vmul.f32 %v1120, 1.442695
    %v1150 = vpow.pop %v1149
    %v1151 = vmul.f32 %v1121, 1.442695
    %v1152 = vpow.pop %v1151
    %v1153 = vmul.f32 %v1122, 1.442695
    %v1154 = vpow.pop %v1153
    %s1155 = scalar_lea.vmem [#allocation2], 128
    %1156 = vst.msk [vmem:[%s1155] sm:$0xff] %vm365, %v1124
    %1157 = vst.msk [vmem:[%s1155 + $0x8] sm:$0xff] %vm365, %v1126
    %1158 = vst.msk [vmem:[%s1155 + $0x10] sm:$0xff] %vm365, %v1128
    %1159 = vst.msk [vmem:[%s1155 + $0x18] sm:$0xff] %vm365, %v1130
    %1160 = vst.msk [vmem:[%s1155 + $0x20] sm:$0xff] %vm365, %v1132
    %1161 = vst.msk [vmem:[%s1155 + $0x28] sm:$0xff] %vm365, %v1134
    %1162 = vst.msk [vmem:[%s1155 + $0x30] sm:$0xff] %vm365, %v1136
    %1163 = vst.msk [vmem:[%s1155 + $0x38] sm:$0xff] %vm365, %v1138
    %1164 = vst.msk [vmem:[%s1155 + $0x40] sm:$0xff] %vm365, %v1140
    %1165 = vst.msk [vmem:[%s1155 + $0x48] sm:$0xff] %vm365, %v1142
    %1166 = vst.msk [vmem:[%s1155 + $0x50] sm:$0xff] %vm365, %v1144
    %1167 = vst.msk [vmem:[%s1155 + $0x58] sm:$0xff] %vm365, %v1146
    %1168 = vst.msk [vmem:[%s1155 + $0x60] sm:$0xff] %vm365, %v1148
    %1169 = vst.msk [vmem:[%s1155 + $0x68] sm:$0xff] %vm365, %v1150
    %1170 = vst.msk [vmem:[%s1155 + $0x70] sm:$0xff] %vm365, %v1152
    %1171 = vst.msk [vmem:[%s1155 + $0x78] sm:$0xff] %vm365, %v1154
    %v1172 = vlaneseq
    %v1173 = vshrl.u32 %v1172, 7
    %v1174 = vsub.s32 0, %v1173
    %v1175 = vrot.slane %v557, %v1174
    %1177 = vbcast.lane.b32.xlu0 %v1175, 256
    %v1178 = vpop.permute.xlu0 %1177
    %s1180 = sor.u32 256, 8
    %1181 = vbcast.lane.b32.xlu0 %v1175, %s1180
    %v1182 = vpop.permute.xlu0 %1181
    %v1183 = vlaneseq
    %v1184 = vshrl.u32 %v1183, 7
    %v1185 = vsub.s32 1, %v1184
    %v1186 = vrot.slane %v557, %v1185
    %1188 = vbcast.lane.b32.xlu0 %v1186, 256
    %v1189 = vpop.permute.xlu0 %1188
    %s1191 = sor.u32 256, 8
    %1192 = vbcast.lane.b32.xlu0 %v1186, %s1191
    %v1193 = vpop.permute.xlu0 %1192
    %v1194 = vlaneseq
    %v1195 = vshrl.u32 %v1194, 7
    %v1196 = vsub.s32 2, %v1195
    %v1197 = vrot.slane %v557, %v1196
    %1199 = vbcast.lane.b32.xlu0 %v1197, 256
    %v1200 = vpop.permute.xlu0 %1199
    %s1202 = sor.u32 256, 8
    %1203 = vbcast.lane.b32.xlu0 %v1197, %s1202
    %v1204 = vpop.permute.xlu0 %1203
    %v1205 = vlaneseq
    %v1206 = vshrl.u32 %v1205, 7
    %v1207 = vsub.s32 3, %v1206
    %v1208 = vrot.slane %v557, %v1207
    %1210 = vbcast.lane.b32.xlu0 %v1208, 256
    %v1211 = vpop.permute.xlu0 %1210
    %s1213 = sor.u32 256, 8
    %1214 = vbcast.lane.b32.xlu0 %v1208, %s1213
    %v1215 = vpop.permute.xlu0 %1214
    %v1216 = vlaneseq
    %v1217 = vshrl.u32 %v1216, 7
    %v1218 = vsub.s32 4, %v1217
    %v1219 = vrot.slane %v557, %v1218
    %1221 = vbcast.lane.b32.xlu0 %v1219, 256
    %v1222 = vpop.permute.xlu0 %1221
    %s1224 = sor.u32 256, 8
    %1225 = vbcast.lane.b32.xlu0 %v1219, %s1224
    %v1226 = vpop.permute.xlu0 %1225
    %v1227 = vlaneseq
    %v1228 = vshrl.u32 %v1227, 7
    %v1229 = vsub.s32 5, %v1228
    %v1230 = vrot.slane %v557, %v1229
    %1232 = vbcast.lane.b32.xlu0 %v1230, 256
    %v1233 = vpop.permute.xlu0 %1232
    %s1235 = sor.u32 256, 8
    %1236 = vbcast.lane.b32.xlu0 %v1230, %s1235
    %v1237 = vpop.permute.xlu0 %1236
    %v1238 = vlaneseq
    %v1239 = vshrl.u32 %v1238, 7
    %v1240 = vsub.s32 6, %v1239
    %v1241 = vrot.slane %v557, %v1240
    %1243 = vbcast.lane.b32.xlu0 %v1241, 256
    %v1244 = vpop.permute.xlu0 %1243
    %s1246 = sor.u32 256, 8
    %1247 = vbcast.lane.b32.xlu0 %v1241, %s1246
    %v1248 = vpop.permute.xlu0 %1247
    %v1249 = vlaneseq
    %v1250 = vshrl.u32 %v1249, 7
    %v1251 = vsub.s32 7, %v1250
    %v1252 = vrot.slane %v557, %v1251
    %1254 = vbcast.lane.b32.xlu0 %v1252, 256
    %v1255 = vpop.permute.xlu0 %1254
    %s1257 = sor.u32 256, 8
    %1258 = vbcast.lane.b32.xlu0 %v1252, %s1257
    %v1259 = vpop.permute.xlu0 %1258
    %v1261 = vcombine.high %v652, %v652
    %v1263 = vunpack.c.l.s4 1966171168
    %v1264 = vunpack.c.0.s8 %v1263
    %v1265 = vlaneseq
    %v1266 = vshrl.u32 %v1265, 7
    %v1267 = vsub.s32 %v1264, %v1266
    %v1268 = vrot.slane %v652, %v1267
    %v1270 = vunpack.c.l.s4 1966171168
    %v1271 = vunpack.c.0.s8 %v1270
    %v1272 = vlaneseq
    %v1273 = vshrl.u32 %v1272, 7
    %v1274 = vsub.s32 %v1271, %v1273
    %v1275 = vrot.slane %v1261, %v1274
    %v1276 = vcombine.high %v1268, %v1268
    %v1277 = vcombine.high %v1275, %v1275
    %v1279 = vunpack.c.l.s4 1966171168
    %v1280 = vunpack.c.0.s8 %v1279
    %v1281 = vlaneseq
    %v1282 = vshrl.u32 %v1281, 7
    %v1283 = vsub.s32 %v1280, %v1282
    %v1284 = vrot.slane %v1268, %v1283
    %v1286 = vunpack.c.l.s4 1966171168
    %v1287 = vunpack.c.0.s8 %v1286
    %v1288 = vlaneseq
    %v1289 = vshrl.u32 %v1288, 7
    %v1290 = vsub.s32 %v1287, %v1289
    %v1291 = vrot.slane %v1275, %v1290
    %v1293 = vunpack.c.l.s4 1966171168
    %v1294 = vunpack.c.0.s8 %v1293
    %v1295 = vlaneseq
    %v1296 = vshrl.u32 %v1295, 7
    %v1297 = vsub.s32 %v1294, %v1296
    %v1298 = vrot.slane %v1276, %v1297
    %v1300 = vunpack.c.l.s4 1966171168
    %v1301 = vunpack.c.0.s8 %v1300
    %v1302 = vlaneseq
    %v1303 = vshrl.u32 %v1302, 7
    %v1304 = vsub.s32 %v1301, %v1303
    %v1305 = vrot.slane %v1277, %v1304
    %v1306 = vcombine.high %v1284, %v1284
    %v1307 = vcombine.high %v1291, %v1291
    %v1308 = vcombine.high %v1298, %v1298
    %v1309 = vcombine.high %v1305, %v1305
    %v1310 = vlaneseq
    %v1311 = vshrl.u32 %v1310, 7
    %v1312 = vsub.s32 0, %v1311
    %v1313 = vrot.slane %v1284, %v1312
    %v1314 = vlaneseq
    %v1315 = vshrl.u32 %v1314, 7
    %v1316 = vsub.s32 0, %v1315
    %v1317 = vrot.slane %v1298, %v1316
    %v1318 = vlaneseq
    %v1319 = vshrl.u32 %v1318, 7
    %v1320 = vsub.s32 0, %v1319
    %v1321 = vrot.slane %v1306, %v1320
    %v1322 = vlaneseq
    %v1323 = vshrl.u32 %v1322, 7
    %v1324 = vsub.s32 0, %v1323
    %v1325 = vrot.slane %v1308, %v1324
    %v1326 = vlaneseq
    %v1327 = vshrl.u32 %v1326, 7
    %v1328 = vsub.s32 0, %v1327
    %v1329 = vrot.slane %v1291, %v1328
    %v1330 = vlaneseq
    %v1331 = vshrl.u32 %v1330, 7
    %v1332 = vsub.s32 0, %v1331
    %v1333 = vrot.slane %v1305, %v1332
    %v1334 = vlaneseq
    %v1335 = vshrl.u32 %v1334, 7
    %v1336 = vsub.s32 0, %v1335
    %v1337 = vrot.slane %v1307, %v1336
    %v1338 = vlaneseq
    %v1339 = vshrl.u32 %v1338, 7
    %v1340 = vsub.s32 0, %v1339
    %v1341 = vrot.slane %v1309, %v1340
    %v1350 = vmul.f32 %v1178, %v1313
    %v1351 = vmul.f32 %v1182, %v1313
    %v1352 = vmul.f32 %v1189, %v1317
    %v1353 = vmul.f32 %v1193, %v1317
    %v1354 = vmul.f32 %v1200, %v1321
    %v1355 = vmul.f32 %v1204, %v1321
    %v1356 = vmul.f32 %v1211, %v1325
    %v1357 = vmul.f32 %v1215, %v1325
    %v1358 = vmul.f32 %v1222, %v1329
    %v1359 = vmul.f32 %v1226, %v1329
    %v1360 = vmul.f32 %v1233, %v1333
    %v1361 = vmul.f32 %v1237, %v1333
    %v1362 = vmul.f32 %v1244, %v1337
    %v1363 = vmul.f32 %v1248, %v1337
    %v1364 = vmul.f32 %v1255, %v1341
    %v1365 = vmul.f32 %v1259, %v1341
    %s1366 = scalar_lea.vmem [#allocation3], 128
    %1367 = vst.msk [vmem:[%s1366] sm:$0xff] %vm365, %v1350
    %1368 = vst.msk [vmem:[%s1366 + $0x8] sm:$0xff] %vm365, %v1351
    %1369 = vst.msk [vmem:[%s1366 + $0x10] sm:$0xff] %vm365, %v1352
    %1370 = vst.msk [vmem:[%s1366 + $0x18] sm:$0xff] %vm365, %v1353
    %1371 = vst.msk [vmem:[%s1366 + $0x20] sm:$0xff] %vm365, %v1354
    %1372 = vst.msk [vmem:[%s1366 + $0x28] sm:$0xff] %vm365, %v1355
    %1373 = vst.msk [vmem:[%s1366 + $0x30] sm:$0xff] %vm365, %v1356
    %1374 = vst.msk [vmem:[%s1366 + $0x38] sm:$0xff] %vm365, %v1357
    %1375 = vst.msk [vmem:[%s1366 + $0x40] sm:$0xff] %vm365, %v1358
    %1376 = vst.msk [vmem:[%s1366 + $0x48] sm:$0xff] %vm365, %v1359
    %1377 = vst.msk [vmem:[%s1366 + $0x50] sm:$0xff] %vm365, %v1360
    %1378 = vst.msk [vmem:[%s1366 + $0x58] sm:$0xff] %vm365, %v1361
    %1379 = vst.msk [vmem:[%s1366 + $0x60] sm:$0xff] %vm365, %v1362
    %1380 = vst.msk [vmem:[%s1366 + $0x68] sm:$0xff] %vm365, %v1363
    %1381 = vst.msk [vmem:[%s1366 + $0x70] sm:$0xff] %vm365, %v1364
    %1382 = vst.msk [vmem:[%s1366 + $0x78] sm:$0xff] %vm365, %v1365
    loop: start=0, step=1, limit=8
    $region62: #{mamba_model_forward.3} parent=1 // loop_pre_header
      _
    $region63: #{mamba_model_forward.3} parent=1 // loop_header
      %s1384 = sphi 0, %s1388
      %p1385 = scmp.ge.s32.totalorder %s1384, 8
      %v1389 = vphi 0.0, %v1408
      %v1390 = vphi 0.0, %v1409
      %v1391 = vphi 0.0, %v1410
      %v1392 = vphi 0.0, %v1411
    $region64: #{mamba_model_forward.3} parent=1 // loop_header_branch
      %1387 = sbr.rel (%p1385) target = $region68
    $region65: #{mamba_model_forward.3} parent=1 // loop_body
      %s1393 = smul.u32 %s1384, 16
      %s1394 = scalar_lea.vmem [#allocation2], %s1393
      %v1395 = vld [vmem:[%s1394] sm:$0xff]
      %v1396 = vld [vmem:[%s1394 + $0x8] sm:$0xff]
      %v1397 = vld [vmem:[%s1394 + $0x80] sm:$0xff]
      %v1398 = vld [vmem:[%s1394 + $0x88] sm:$0xff]
      %s1399 = scalar_lea.vmem [#allocation3], %s1393
      %v1400 = vld [vmem:[%s1399] sm:$0xff]
      %v1401 = vld [vmem:[%s1399 + $0x8] sm:$0xff]
      %v1402 = vld [vmem:[%s1399 + $0x80] sm:$0xff]
      %v1403 = vld [vmem:[%s1399 + $0x88] sm:$0xff]
      %v1404 = vmul.f32 %v1395, %v1389
      %v1405 = vmul.f32 %v1396, %v1390
      %v1406 = vmul.f32 %v1397, %v1391
      %v1407 = vmul.f32 %v1398, %v1392
      %v1408 = vadd.f32 %v1404, %v1400
      %v1409 = vadd.f32 %v1405, %v1401
      %v1410 = vadd.f32 %v1406, %v1402
      %v1411 = vadd.f32 %v1407, %v1403
      %s1412 = scalar_lea.vmem [#allocation4], %s1393
      %1413 = vst.msk [vmem:[%s1412] sm:$0xff] %vm365, %v1408
      %1414 = vst.msk [vmem:[%s1412 + $0x8] sm:$0xff] %vm365, %v1409
      %1415 = vst.msk [vmem:[%s1412 + $0x80] sm:$0xff] %vm365, %v1410
      %1416 = vst.msk [vmem:[%s1412 + $0x88] sm:$0xff] %vm365, %v1411
    $region66: #{mamba_model_forward.3} parent=1 // loop_footer
      %s1388 = sadd.s32 1, %s1384
    $region67: #{mamba_model_forward.3} parent=1 // loop_footer_branch
      %1383 = sbr.rel target = $region63
    $region68: #{mamba_model_forward.3} parent=1 // loop_exit
      _
    %v1417 = vld [vmem:[#allocation4] sm:$0xff]
    %v1418 = vld [vmem:[#allocation4 + $0x8] sm:$0xff]
    %v1419 = vld [vmem:[#allocation4 + $0x10] sm:$0xff]
    %v1420 = vld [vmem:[#allocation4 + $0x18] sm:$0xff]
    %v1421 = vld [vmem:[#allocation4 + $0x20] sm:$0xff]
    %v1422 = vld [vmem:[#allocation4 + $0x28] sm:$0xff]
    %v1423 = vld [vmem:[#allocation4 + $0x30] sm:$0xff]
    %v1424 = vld [vmem:[#allocation4 + $0x38] sm:$0xff]
    %v1425 = vld [vmem:[#allocation4 + $0x40] sm:$0xff]
    %v1426 = vld [vmem:[#allocation4 + $0x48] sm:$0xff]
    %v1427 = vld [vmem:[#allocation4 + $0x50] sm:$0xff]
    %v1428 = vld [vmem:[#allocation4 + $0x58] sm:$0xff]
    %v1429 = vld [vmem:[#allocation4 + $0x60] sm:$0xff]
    %v1430 = vld [vmem:[#allocation4 + $0x68] sm:$0xff]
    %v1431 = vld [vmem:[#allocation4 + $0x70] sm:$0xff]
    %v1432 = vld [vmem:[#allocation4 + $0x78] sm:$0xff]
    %v1433 = vlaneseq
    %v1434 = vshrl.u32 %v1433, 7
    %v1435 = vsub.s32 0, %v1434
    %v1436 = vrot.slane %v635, %v1435
    %1438 = vbcast.lane.b32.xlu0 %v1436, 256
    %v1439 = vpop.permute.xlu0 %1438
    %s1441 = sor.u32 256, 8
    %1442 = vbcast.lane.b32.xlu0 %v1436, %s1441
    %v1443 = vpop.permute.xlu0 %1442
    %v1444 = vlaneseq
    %v1445 = vshrl.u32 %v1444, 7
    %v1446 = vsub.s32 1, %v1445
    %v1447 = vrot.slane %v635, %v1446
    %1449 = vbcast.lane.b32.xlu0 %v1447, 256
    %v1450 = vpop.permute.xlu0 %1449
    %s1452 = sor.u32 256, 8
    %1453 = vbcast.lane.b32.xlu0 %v1447, %s1452
    %v1454 = vpop.permute.xlu0 %1453
    %v1455 = vlaneseq
    %v1456 = vshrl.u32 %v1455, 7
    %v1457 = vsub.s32 2, %v1456
    %v1458 = vrot.slane %v635, %v1457
    %1460 = vbcast.lane.b32.xlu0 %v1458, 256
    %v1461 = vpop.permute.xlu0 %1460
    %s1463 = sor.u32 256, 8
    %1464 = vbcast.lane.b32.xlu0 %v1458, %s1463
    %v1465 = vpop.permute.xlu0 %1464
    %v1466 = vlaneseq
    %v1467 = vshrl.u32 %v1466, 7
    %v1468 = vsub.s32 3, %v1467
    %v1469 = vrot.slane %v635, %v1468
    %1471 = vbcast.lane.b32.xlu0 %v1469, 256
    %v1472 = vpop.permute.xlu0 %1471
    %s1474 = sor.u32 256, 8
    %1475 = vbcast.lane.b32.xlu0 %v1469, %s1474
    %v1476 = vpop.permute.xlu0 %1475
    %v1477 = vlaneseq
    %v1478 = vshrl.u32 %v1477, 7
    %v1479 = vsub.s32 4, %v1478
    %v1480 = vrot.slane %v635, %v1479
    %1482 = vbcast.lane.b32.xlu0 %v1480, 256
    %v1483 = vpop.permute.xlu0 %1482
    %s1485 = sor.u32 256, 8
    %1486 = vbcast.lane.b32.xlu0 %v1480, %s1485
    %v1487 = vpop.permute.xlu0 %1486
    %v1488 = vlaneseq
    %v1489 = vshrl.u32 %v1488, 7
    %v1490 = vsub.s32 5, %v1489
    %v1491 = vrot.slane %v635, %v1490
    %1493 = vbcast.lane.b32.xlu0 %v1491, 256
    %v1494 = vpop.permute.xlu0 %1493
    %s1496 = sor.u32 256, 8
    %1497 = vbcast.lane.b32.xlu0 %v1491, %s1496
    %v1498 = vpop.permute.xlu0 %1497
    %v1499 = vlaneseq
    %v1500 = vshrl.u32 %v1499, 7
    %v1501 = vsub.s32 6, %v1500
    %v1502 = vrot.slane %v635, %v1501
    %1504 = vbcast.lane.b32.xlu0 %v1502, 256
    %v1505 = vpop.permute.xlu0 %1504
    %s1507 = sor.u32 256, 8
    %1508 = vbcast.lane.b32.xlu0 %v1502, %s1507
    %v1509 = vpop.permute.xlu0 %1508
    %v1510 = vlaneseq
    %v1511 = vshrl.u32 %v1510, 7
    %v1512 = vsub.s32 7, %v1511
    %v1513 = vrot.slane %v635, %v1512
    %1515 = vbcast.lane.b32.xlu0 %v1513, 256
    %v1516 = vpop.permute.xlu0 %1515
    %s1518 = sor.u32 256, 8
    %1519 = vbcast.lane.b32.xlu0 %v1513, %s1518
    %v1520 = vpop.permute.xlu0 %1519
    %v1521 = vmul.f32 %v1439, %v1417
    %v1522 = vmul.f32 %v1443, %v1418
    %v1523 = vmul.f32 %v1450, %v1419
    %v1524 = vmul.f32 %v1454, %v1420
    %v1525 = vmul.f32 %v1461, %v1421
    %v1526 = vmul.f32 %v1465, %v1422
    %v1527 = vmul.f32 %v1472, %v1423
    %v1528 = vmul.f32 %v1476, %v1424
    %v1529 = vmul.f32 %v1483, %v1425
    %v1530 = vmul.f32 %v1487, %v1426
    %v1531 = vmul.f32 %v1494, %v1427
    %v1532 = vmul.f32 %v1498, %v1428
    %v1533 = vmul.f32 %v1505, %v1429
    %v1534 = vmul.f32 %v1509, %v1430
    %v1535 = vmul.f32 %v1516, %v1431
    %v1536 = vmul.f32 %v1520, %v1432
    %v1537 = vsel %vm365, %v1521, 0.0
    %v1538 = vsel %vm365, %v1522, 0.0
    %v1539 = vadd.f32 %v1537, %v1538
    %v1540 = vrot.slane %v1539, 4
    %v1541 = vadd.f32 %v1539, %v1540
    %v1542 = vrot.slane %v1541, 2
    %v1543 = vadd.f32 %v1541, %v1542
    %v1544 = vrot.slane %v1543, 1
    %v1545 = vadd.f32 %v1543, %v1544
    %v1546 = vsel %vm365, %v1523, 0.0
    %v1547 = vsel %vm365, %v1524, 0.0
    %v1548 = vadd.f32 %v1546, %v1547
    %v1549 = vrot.slane %v1548, 4
    %v1550 = vadd.f32 %v1548, %v1549
    %v1551 = vrot.slane %v1550, 2
    %v1552 = vadd.f32 %v1550, %v1551
    %v1553 = vrot.slane %v1552, 1
    %v1554 = vadd.f32 %v1552, %v1553
    %v1555 = vsel %vm365, %v1525, 0.0
    %v1556 = vsel %vm365, %v1526, 0.0
    %v1557 = vadd.f32 %v1555, %v1556
    %v1558 = vrot.slane %v1557, 4
    %v1559 = vadd.f32 %v1557, %v1558
    %v1560 = vrot.slane %v1559, 2
    %v1561 = vadd.f32 %v1559, %v1560
    %v1562 = vrot.slane %v1561, 1
    %v1563 = vadd.f32 %v1561, %v1562
    %v1564 = vsel %vm365, %v1527, 0.0
    %v1565 = vsel %vm365, %v1528, 0.0
    %v1566 = vadd.f32 %v1564, %v1565
    %v1567 = vrot.slane %v1566, 4
    %v1568 = vadd.f32 %v1566, %v1567
    %v1569 = vrot.slane %v1568, 2
    %v1570 = vadd.f32 %v1568, %v1569
    %v1571 = vrot.slane %v1570, 1
    %v1572 = vadd.f32 %v1570, %v1571
    %v1573 = vsel %vm365, %v1529, 0.0
    %v1574 = vsel %vm365, %v1530, 0.0
    %v1575 = vadd.f32 %v1573, %v1574
    %v1576 = vrot.slane %v1575, 4
    %v1577 = vadd.f32 %v1575, %v1576
    %v1578 = vrot.slane %v1577, 2
    %v1579 = vadd.f32 %v1577, %v1578
    %v1580 = vrot.slane %v1579, 1
    %v1581 = vadd.f32 %v1579, %v1580
    %v1582 = vsel %vm365, %v1531, 0.0
    %v1583 = vsel %vm365, %v1532, 0.0
    %v1584 = vadd.f32 %v1582, %v1583
    %v1585 = vrot.slane %v1584, 4
    %v1586 = vadd.f32 %v1584, %v1585
    %v1587 = vrot.slane %v1586, 2
    %v1588 = vadd.f32 %v1586, %v1587
    %v1589 = vrot.slane %v1588, 1
    %v1590 = vadd.f32 %v1588, %v1589
    %v1591 = vsel %vm365, %v1533, 0.0
    %v1592 = vsel %vm365, %v1534, 0.0
    %v1593 = vadd.f32 %v1591, %v1592
    %v1594 = vrot.slane %v1593, 4
    %v1595 = vadd.f32 %v1593, %v1594
    %v1596 = vrot.slane %v1595, 2
    %v1597 = vadd.f32 %v1595, %v1596
    %v1598 = vrot.slane %v1597, 1
    %v1599 = vadd.f32 %v1597, %v1598
    %v1600 = vsel %vm365, %v1535, 0.0
    %v1601 = vsel %vm365, %v1536, 0.0
    %v1602 = vadd.f32 %v1600, %v1601
    %v1603 = vrot.slane %v1602, 4
    %v1604 = vadd.f32 %v1602, %v1603
    %v1605 = vrot.slane %v1604, 2
    %v1606 = vadd.f32 %v1604, %v1605
    %v1607 = vrot.slane %v1606, 1
    %v1608 = vadd.f32 %v1606, %v1607
    %s1609 = scalar_lea.vmem [#allocation4], 128
    %v1610 = vld [vmem:[%s1609] sm:$0xff]
    %v1611 = vld [vmem:[%s1609 + $0x8] sm:$0xff]
    %v1612 = vld [vmem:[%s1609 + $0x10] sm:$0xff]
    %v1613 = vld [vmem:[%s1609 + $0x18] sm:$0xff]
    %v1614 = vld [vmem:[%s1609 + $0x20] sm:$0xff]
    %v1615 = vld [vmem:[%s1609 + $0x28] sm:$0xff]
    %v1616 = vld [vmem:[%s1609 + $0x30] sm:$0xff]
    %v1617 = vld [vmem:[%s1609 + $0x38] sm:$0xff]
    %v1618 = vld [vmem:[%s1609 + $0x40] sm:$0xff]
    %v1619 = vld [vmem:[%s1609 + $0x48] sm:$0xff]
    %v1620 = vld [vmem:[%s1609 + $0x50] sm:$0xff]
    %v1621 = vld [vmem:[%s1609 + $0x58] sm:$0xff]
    %v1622 = vld [vmem:[%s1609 + $0x60] sm:$0xff]
    %v1623 = vld [vmem:[%s1609 + $0x68] sm:$0xff]
    %v1624 = vld [vmem:[%s1609 + $0x70] sm:$0xff]
    %v1625 = vld [vmem:[%s1609 + $0x78] sm:$0xff]
    %v1626 = vlaneseq
    %v1627 = vshrl.u32 %v1626, 7
    %v1628 = vsub.s32 0, %v1627
    %v1629 = vrot.slane %v640, %v1628
    %1631 = vbcast.lane.b32.xlu0 %v1629, 256
    %v1632 = vpop.permute.xlu0 %1631
    %s1634 = sor.u32 256, 8
    %1635 = vbcast.lane.b32.xlu0 %v1629, %s1634
    %v1636 = vpop.permute.xlu0 %1635
    %v1637 = vlaneseq
    %v1638 = vshrl.u32 %v1637, 7
    %v1639 = vsub.s32 1, %v1638
    %v1640 = vrot.slane %v640, %v1639
    %1642 = vbcast.lane.b32.xlu0 %v1640, 256
    %v1643 = vpop.permute.xlu0 %1642
    %s1645 = sor.u32 256, 8
    %1646 = vbcast.lane.b32.xlu0 %v1640, %s1645
    %v1647 = vpop.permute.xlu0 %1646
    %v1648 = vlaneseq
    %v1649 = vshrl.u32 %v1648, 7
    %v1650 = vsub.s32 2, %v1649
    %v1651 = vrot.slane %v640, %v1650
    %1653 = vbcast.lane.b32.xlu0 %v1651, 256
    %v1654 = vpop.permute.xlu0 %1653
    %s1656 = sor.u32 256, 8
    %1657 = vbcast.lane.b32.xlu0 %v1651, %s1656
    %v1658 = vpop.permute.xlu0 %1657
    %v1659 = vlaneseq
    %v1660 = vshrl.u32 %v1659, 7
    %v1661 = vsub.s32 3, %v1660
    %v1662 = vrot.slane %v640, %v1661
    %1664 = vbcast.lane.b32.xlu0 %v1662, 256
    %v1665 = vpop.permute.xlu0 %1664
    %s1667 = sor.u32 256, 8
    %1668 = vbcast.lane.b32.xlu0 %v1662, %s1667
    %v1669 = vpop.permute.xlu0 %1668
    %v1670 = vlaneseq
    %v1671 = vshrl.u32 %v1670, 7
    %v1672 = vsub.s32 4, %v1671
    %v1673 = vrot.slane %v640, %v1672
    %1675 = vbcast.lane.b32.xlu0 %v1673, 256
    %v1676 = vpop.permute.xlu0 %1675
    %s1678 = sor.u32 256, 8
    %1679 = vbcast.lane.b32.xlu0 %v1673, %s1678
    %v1680 = vpop.permute.xlu0 %1679
    %v1681 = vlaneseq
    %v1682 = vshrl.u32 %v1681, 7
    %v1683 = vsub.s32 5, %v1682
    %v1684 = vrot.slane %v640, %v1683
    %1686 = vbcast.lane.b32.xlu0 %v1684, 256
    %v1687 = vpop.permute.xlu0 %1686
    %s1689 = sor.u32 256, 8
    %1690 = vbcast.lane.b32.xlu0 %v1684, %s1689
    %v1691 = vpop.permute.xlu0 %1690
    %v1692 = vlaneseq
    %v1693 = vshrl.u32 %v1692, 7
    %v1694 = vsub.s32 6, %v1693
    %v1695 = vrot.slane %v640, %v1694
    %1697 = vbcast.lane.b32.xlu0 %v1695, 256
    %v1698 = vpop.permute.xlu0 %1697
    %s1700 = sor.u32 256, 8
    %1701 = vbcast.lane.b32.xlu0 %v1695, %s1700
    %v1702 = vpop.permute.xlu0 %1701
    %v1703 = vlaneseq
    %v1704 = vshrl.u32 %v1703, 7
    %v1705 = vsub.s32 7, %v1704
    %v1706 = vrot.slane %v640, %v1705
    %1708 = vbcast.lane.b32.xlu0 %v1706, 256
    %v1709 = vpop.permute.xlu0 %1708
    %s1711 = sor.u32 256, 8
    %1712 = vbcast.lane.b32.xlu0 %v1706, %s1711
    %v1713 = vpop.permute.xlu0 %1712
    %v1714 = vmul.f32 %v1632, %v1610
    %v1715 = vmul.f32 %v1636, %v1611
    %v1716 = vmul.f32 %v1643, %v1612
    %v1717 = vmul.f32 %v1647, %v1613
    %v1718 = vmul.f32 %v1654, %v1614
    %v1719 = vmul.f32 %v1658, %v1615
    %v1720 = vmul.f32 %v1665, %v1616
    %v1721 = vmul.f32 %v1669, %v1617
    %v1722 = vmul.f32 %v1676, %v1618
    %v1723 = vmul.f32 %v1680, %v1619
    %v1724 = vmul.f32 %v1687, %v1620
    %v1725 = vmul.f32 %v1691, %v1621
    %v1726 = vmul.f32 %v1698, %v1622
    %v1727 = vmul.f32 %v1702, %v1623
    %v1728 = vmul.f32 %v1709, %v1624
    %v1729 = vmul.f32 %v1713, %v1625
    %v1730 = vsel %vm365, %v1714, 0.0
    %v1731 = vsel %vm365, %v1715, 0.0
    %v1732 = vadd.f32 %v1730, %v1731
    %v1733 = vrot.slane %v1732, 4
    %v1734 = vadd.f32 %v1732, %v1733
    %v1735 = vrot.slane %v1734, 2
    %v1736 = vadd.f32 %v1734, %v1735
    %v1737 = vrot.slane %v1736, 1
    %v1738 = vadd.f32 %v1736, %v1737
    %v1739 = vsel %vm365, %v1716, 0.0
    %v1740 = vsel %vm365, %v1717, 0.0
    %v1741 = vadd.f32 %v1739, %v1740
    %v1742 = vrot.slane %v1741, 4
    %v1743 = vadd.f32 %v1741, %v1742
    %v1744 = vrot.slane %v1743, 2
    %v1745 = vadd.f32 %v1743, %v1744
    %v1746 = vrot.slane %v1745, 1
    %v1747 = vadd.f32 %v1745, %v1746
    %v1748 = vsel %vm365, %v1718, 0.0
    %v1749 = vsel %vm365, %v1719, 0.0
    %v1750 = vadd.f32 %v1748, %v1749
    %v1751 = vrot.slane %v1750, 4
    %v1752 = vadd.f32 %v1750, %v1751
    %v1753 = vrot.slane %v1752, 2
    %v1754 = vadd.f32 %v1752, %v1753
    %v1755 = vrot.slane %v1754, 1
    %v1756 = vadd.f32 %v1754, %v1755
    %v1757 = vsel %vm365, %v1720, 0.0
    %v1758 = vsel %vm365, %v1721, 0.0
    %v1759 = vadd.f32 %v1757, %v1758
    %v1760 = vrot.slane %v1759, 4
    %v1761 = vadd.f32 %v1759, %v1760
    %v1762 = vrot.slane %v1761, 2
    %v1763 = vadd.f32 %v1761, %v1762
    %v1764 = vrot.slane %v1763, 1
    %v1765 = vadd.f32 %v1763, %v1764
    %v1766 = vsel %vm365, %v1722, 0.0
    %v1767 = vsel %vm365, %v1723, 0.0
    %v1768 = vadd.f32 %v1766, %v1767
    %v1769 = vrot.slane %v1768, 4
    %v1770 = vadd.f32 %v1768, %v1769
    %v1771 = vrot.slane %v1770, 2
    %v1772 = vadd.f32 %v1770, %v1771
    %v1773 = vrot.slane %v1772, 1
    %v1774 = vadd.f32 %v1772, %v1773
    %v1775 = vsel %vm365, %v1724, 0.0
    %v1776 = vsel %vm365, %v1725, 0.0
    %v1777 = vadd.f32 %v1775, %v1776
    %v1778 = vrot.slane %v1777, 4
    %v1779 = vadd.f32 %v1777, %v1778
    %v1780 = vrot.slane %v1779, 2
    %v1781 = vadd.f32 %v1779, %v1780
    %v1782 = vrot.slane %v1781, 1
    %v1783 = vadd.f32 %v1781, %v1782
    %v1784 = vsel %vm365, %v1726, 0.0
    %v1785 = vsel %vm365, %v1727, 0.0
    %v1786 = vadd.f32 %v1784, %v1785
    %v1787 = vrot.slane %v1786, 4
    %v1788 = vadd.f32 %v1786, %v1787
    %v1789 = vrot.slane %v1788, 2
    %v1790 = vadd.f32 %v1788, %v1789
    %v1791 = vrot.slane %v1790, 1
    %v1792 = vadd.f32 %v1790, %v1791
    %v1793 = vsel %vm365, %v1728, 0.0
    %v1794 = vsel %vm365, %v1729, 0.0
    %v1795 = vadd.f32 %v1793, %v1794
    %v1796 = vrot.slane %v1795, 4
    %v1797 = vadd.f32 %v1795, %v1796
    %v1798 = vrot.slane %v1797, 2
    %v1799 = vadd.f32 %v1797, %v1798
    %v1800 = vrot.slane %v1799, 1
    %v1801 = vadd.f32 %v1799, %v1800
    %vm1810 = vcmask 1041409
    %v1811 = vsel %vm1810, %v1554, %v1545
    %vm1812 = vcmask 1042434
    %v1813 = vsel %vm1812, %v1563, %v1811
    %vm1814 = vcmask 1043459
    %v1815 = vsel %vm1814, %v1572, %v1813
    %vm1816 = vcmask 1044484
    %v1817 = vsel %vm1816, %v1581, %v1815
    %vm1818 = vcmask 1045509
    %v1819 = vsel %vm1818, %v1590, %v1817
    %vm1820 = vcmask 1046534
    %v1821 = vsel %vm1820, %v1599, %v1819
    %vm1822 = vcmask 1047559
    %v1823 = vsel %vm1822, %v1608, %v1821
    %v1833 = vsel %vm1810, %v1747, %v1738
    %v1834 = vsel %vm1812, %v1756, %v1833
    %v1835 = vsel %vm1814, %v1765, %v1834
    %v1836 = vsel %vm1816, %v1774, %v1835
    %v1837 = vsel %vm1818, %v1783, %v1836
    %v1838 = vsel %vm1820, %v1792, %v1837
    %v1839 = vsel %vm1822, %v1801, %v1838
    %v1841 = vld [vmem:[%s13] sm:$0x1]
    %v1843 = vlaneseq
    %v1844 = vshrl.u32 %v1843, 7
    %v1845 = vsub.s32 0, %v1844
    %v1846 = vrot.slane %v1841, %v1845
    %v1848 = vmul.f32 %v348, %v1846
    %v1849 = vmul.f32 %v349, %v1846
    %v1850 = vadd.f32 %v1823, %v1848
    %v1851 = vadd.f32 %v1839, %v1849
    %v1852 = vxor.u32 %v262, 2147483648
    %v1853 = vxor.u32 %v267, 2147483648
    %v1854 = vmul.f32 %v1852, 1.442695
    %v1855 = vpow.pop %v1854
    %v1856 = vmul.f32 %v1853, 1.442695
    %v1857 = vpow.pop %v1856
    %v1858 = vadd.f32 %v1855, 1.0
    %v1859 = vadd.f32 %v1857, 1.0
    %v1860 = vrcp.pop %v1858
    %v1861 = vmul.f32 1.0, %v1860
    %v1862 = vrcp.pop %v1859
    %v1863 = vmul.f32 1.0, %v1862
    %v1864 = vmul.f32 %v262, %v1861
    %v1865 = vmul.f32 %v267, %v1863
    %v1866 = vmul.f32 %v1850, %v1864
    %v1867 = vmul.f32 %v1851, %v1865
    %v1868 = vld [vmem:[%s14] sm:$0xff]
    %v1869 = vld [vmem:[%s14 + $0x8] sm:$0xff]
    %v1870 = vld [vmem:[%s14 + $0x10] sm:$0xff]
    %v1871 = vld [vmem:[%s14 + $0x18] sm:$0xff]
    %v1872 = vld [vmem:[%s14 + $0x20] sm:$0xff]
    %v1873 = vld [vmem:[%s14 + $0x28] sm:$0xff]
    %v1874 = vld [vmem:[%s14 + $0x30] sm:$0xff]
    %v1875 = vld [vmem:[%s14 + $0x38] sm:$0xff]
    %v1877 = vsel %vm365, %v1866, 0
    %v1880 = vsel %vm365, %v1867, 0
    %1882 = vmatprep.subr.mxu0 0.0
    %1883 = vmatpush1.msra.mxu0 %v1868
    %1884 = vmatprep.subr.mxu0 0.0
    %1885 = vmatpush1.msra.mxu0 %v1869
    %1886 = vmatprep.subr.mxu0 0.0
    %1887 = vmatpush1.msra.mxu0 %v1870
    %1888 = vmatprep.subr.mxu0 0.0
    %1889 = vmatpush1.msra.mxu0 %v1871
    %1890 = vmatprep.subr.mxu0 0.0
    %1891 = vmatpush1.msra.mxu0 %v1872
    %1892 = vmatprep.subr.mxu0 0.0
    %1893 = vmatpush1.msra.mxu0 %v1873
    %1894 = vmatprep.subr.mxu0 0.0
    %1895 = vmatpush1.msra.mxu0 %v1874
    %1896 = vmatprep.subr.mxu0 0.0
    %1897 = vmatpush1.msra.mxu0 %v1875
    %1898 = vmatprep.subr.mxu0 0.0
    %1899 = vmatpush1.msra.mxu0 0.0
    %1900 = vmatprep.subr.mxu0 0.0
    %1901 = vmatpush1.msra.mxu0 0.0
    %1902 = vmatprep.subr.mxu0 0.0
    %1903 = vmatpush1.msra.mxu0 0.0
    %1904 = vmatprep.subr.mxu0 0.0
    %1905 = vmatpush1.msra.mxu0 0.0
    %1906 = vmatprep.subr.mxu0 0.0
    %1907 = vmatpush1.msra.mxu0 0.0
    %1908 = vmatprep.subr.mxu0 0.0
    %1909 = vmatpush1.msra.mxu0 0.0
    %1910 = vmatprep.subr.mxu0 0.0
    %1911 = vmatpush1.msra.mxu0 0.0
    %1912 = vmatprep.subr.mxu0 0.0
    %1913 = vmatpush1.msra.mxu0 0.0
    %1914 = vmatprep.subr.mxu0 0.0
    %1915 = vmatpush1.msra.mxu0 0.0
    %1916 = vmatprep.subr.mxu0 0.0
    %1917 = vmatpush1.msra.mxu0 0.0
    %1918 = vmatprep.subr.mxu0 0.0
    %1919 = vmatpush1.msra.mxu0 0.0
    %1920 = vmatprep.subr.mxu0 0.0
    %1921 = vmatpush1.msra.mxu0 0.0
    %1922 = vmatprep.subr.mxu0 0.0
    %1923 = vmatpush1.msra.mxu0 0.0
    %1924 = vmatprep.subr.mxu0 0.0
    %1925 = vmatpush1.msra.mxu0 0.0
    %1926 = vmatprep.subr.mxu0 0.0
    %1927 = vmatpush1.msra.mxu0 0.0
    %1928 = vmatprep.subr.mxu0 0.0
    %1929 = vmatpush1.msra.mxu0 0.0
    %1930 = vmatprep.subr.mxu0 0.0
    %1931 = vmatpush1.msra.mxu0 0.0
    %1932 = vmatprep.subr.mxu0 0.0
    %1933 = vmatpush1.msra.mxu0 0.0
    %1934 = vmatprep.subr.mxu0 0.0
    %1935 = vmatpush1.msra.mxu0 0.0
    %1936 = vmatprep.subr.mxu0 0.0
    %1937 = vmatpush1.msra.mxu0 0.0
    %1938 = vmatprep.subr.mxu0 0.0
    %1939 = vmatpush1.msra.mxu0 0.0
    %1940 = vmatprep.subr.mxu0 0.0
    %1941 = vmatpush1.msra.mxu0 0.0
    %1942 = vmatprep.subr.mxu0 0.0
    %1943 = vmatpush1.msra.mxu0 0.0
    %1944 = vmatprep.subr.mxu0 0.0
    %1945 = vmatpush1.msra.mxu0 0.0
    %1946 = vmatprep.mubr.f32.mxu0 0.0
    %1947 = vmatmul.mubr.f32.gmra.mrb[0].mxu0 %v1877
    %v1948 = vpop.f32.mrb[0].mxu0
    %v1949 = vadd.f32 0.0, %v1948
    %v1950 = vpop.f32.mrb[0].mxu0
    %1951 = vmatprep.mubr.f32.mxu0 0.0
    %1952 = vmatmul.mubr.f32.gmra.mrb[0].mxu0 %v1880
    %v1953 = vpop.f32.mrb[0].mxu0
    %v1954 = vadd.f32 0.0, %v1953
    %v1955 = vpop.f32.mrb[0].mxu0
    %1956 = vdwg.mxu0
    %1957 = vst.msk [vmem:[#allocation5] sm:$0xff] %vm60, %v1949
    %1958 = vst.msk [vmem:[#allocation5 + $0x8] sm:$0xff] %vm60, %v1954
    %1959 = vst.msk [vmem:[#allocation7] sm:$0xff] %vm60, %v58
    %1960 = vst.msk [vmem:[#allocation7 + $0x8] sm:$0xff] %vm60, %v59
    // Predicated region
    $region69: #{mamba_model_forward.3} parent=1 // pred_check
      _
    $region70: #{mamba_model_forward.3} parent=1 // pred_check_branch
      %1962 = sbr.rel (0) target = $region72
    $region71: #{mamba_model_forward.3} parent=1 // pred_region
      %s1964 = ssub.s32 256, 256
      %1965 = vsyncadd [#allocation6], %s1964
      %s1966 = sshll.u32 [#allocation5], 4
      %s1967 = int_to_ptr.vmem [resolvable:$true] %s1966
      %1972 = dma.vmem_to_hbm [thread:$0]  %s1967, 256, %s15, [#allocation6], 128, 128, 8
    $region72: #{mamba_model_forward.3} parent=1 // pred_fallthru
      _
    // Predicated region
    $region73: #{mamba_model_forward.3} parent=1 // pred_check
      _
    $region74: #{mamba_model_forward.3} parent=1 // pred_check_branch
      %1974 = sbr.rel (0) target = $region76
    $region75: #{mamba_model_forward.3} parent=1 // pred_region
      %s1976 = ssub.s32 256, 256
      %1977 = vsyncadd [#allocation8], %s1976
      %s1978 = sshll.u32 [#allocation7], 4
      %s1979 = int_to_ptr.vmem [resolvable:$true] %s1978
      %1984 = dma.vmem_to_hbm [thread:$0]  %s1979, 256, %s16, [#allocation8], 128, 128, 8
    $region76: #{mamba_model_forward.3} parent=1 // pred_fallthru
      _
    // Predicated region
    $region77: #{mamba_model_forward.3} parent=1 // pred_check
      _
    $region78: #{mamba_model_forward.3} parent=1 // pred_check_branch
      %1986 = sbr.rel (0) target = $region80
    $region79: #{mamba_model_forward.3} parent=1 // pred_region
      %1987 = dma.done [#allocation6], 256
    $region80: #{mamba_model_forward.3} parent=1 // pred_fallthru
      _
    // Predicated region
    $region81: #{mamba_model_forward.3} parent=1 // pred_check
      _
    $region82: #{mamba_model_forward.3} parent=1 // pred_check_branch
      %1989 = sbr.rel (0) target = $region84
    $region83: #{mamba_model_forward.3} parent=1 // pred_region
      %1990 = dma.done [#allocation8], 256
    $region84: #{mamba_model_forward.3} parent=1 // pred_fallthru
      _
    %1991 = vsyncpa [#allocation6], 1
    %1992 = vsyncpa [#allocation8], 1

// kernel: mamba_model_forward.2
$region0: #{mamba_model_forward.2}
  #allocation0 [shape = 'u32[]', space=smem, size = 0x4, offset = 0x4, fixed_abs, tag = 'smem constant byte address 0x4 - core index']
  #allocation1 [shape = 'u32[144,128]{1,0:T(1,128)}', space=vmem, size = 0x12000, scoped, tag = 'internal scratch']
  #allocation2 [shape = 'f32[2,8,16,64]{3,2,1,0:T(8,128)}', space=vmem, size = 0x20000, scoped, tag = 'scratch operand']
  #allocation3 [shape = 'f32[2,8,16,64]{3,2,1,0:T(8,128)}', space=vmem, size = 0x20000, scoped, tag = 'scratch operand']
  #allocation4 [shape = 'f32[2,8,16,64]{3,2,1,0:T(8,128)}', space=vmem, size = 0x20000, scoped, tag = 'scratch operand']
  %s0 = inlined_call_operand.vmem [shape: f32[2,8,32], index: 0, kind: input, shape index: {}, may-alias: {0,1}]
  %s1 = inlined_call_operand.vmem [shape: f32[2,8,32], index: 1, kind: input, shape index: {}, may-alias: {0,1}]
  %s2 = inlined_call_operand.vmem [shape: f32[1,32], index: 2, kind: input, shape index: {}]
  %s3 = inlined_call_operand.vmem [shape: f32[1,32], index: 3, kind: input, shape index: {}]
  %s4 = inlined_call_operand.vmem [shape: f32[32,64], index: 4, kind: input, shape index: {}]
  %s5 = inlined_call_operand.vmem [shape: f32[32,64], index: 5, kind: input, shape index: {}]
  %s6 = inlined_call_operand.vmem [shape: f32[4,64], index: 6, kind: input, shape index: {}]
  %s7 = inlined_call_operand.vmem [shape: f32[1,64], index: 7, kind: input, shape index: {}]
  %s8 = inlined_call_operand.vmem [shape: f32[64,64], index: 8, kind: input, shape index: {}]
  %s9 = inlined_call_operand.vmem [shape: f32[64,16], index: 9, kind: input, shape index: {}]
  %s10 = inlined_call_operand.vmem [shape: f32[64,16], index: 10, kind: input, shape index: {}]
  %s11 = inlined_call_operand.vmem [shape: f32[1,64], index: 11, kind: input, shape index: {}]
  %s12 = inlined_call_operand.vmem [shape: f32[16,64], index: 12, kind: input, shape index: {}]
  %s13 = inlined_call_operand.vmem [shape: f32[1,64], index: 13, kind: input, shape index: {}]
  %s14 = inlined_call_operand.vmem [shape: f32[64,32], index: 14, kind: input, shape index: {}]
  %s15 = inlined_call_operand.hbm [shape: f32[2,8,32], index: 15, kind: output, shape index: {0}]
  %s16 = inlined_call_operand.vmem [shape: f32[2,8,32], index: 16, kind: output, shape index: {1}]
  %17 = xla_tuple %s15, %s16
  %s18 = sld [smem:[#allocation0]]
  $region85: #{mamba_model_forward.2} parent=0
    _
  %s20 = ssub.s32 1, %s18
  %s21 = scalar_select 0, %s20, %s18
  $region1: #{mamba_model_forward.2} parent=0
    #allocation5 [shape = 'u8[8192]{0}', space=vmem, size = 0x2000, scoped, tag = 'output window, operand 0, single buffered']
    #allocation6 [shape = 's32[1]{0}', space=sflag, size = 0x4, scoped, tag = 'scoped memory for mamba_model_forward.2']
    %22 = vsyncpa [#allocation6], 0
    // Predicated region
    $region2: #{mamba_model_forward.2} parent=1 // pred_check
      _
    $region3: #{mamba_model_forward.2} parent=1 // pred_check_branch
      %24 = sbr.rel (0) target = $region5
    $region4: #{mamba_model_forward.2} parent=1 // pred_region
      _
    $region5: #{mamba_model_forward.2} parent=1 // pred_fallthru
      _
    // Predicated region
    $region6: #{mamba_model_forward.2} parent=1 // pred_check
      _
    $region7: #{mamba_model_forward.2} parent=1 // pred_check_branch
      %26 = sbr.rel (0) target = $region9
    $region8: #{mamba_model_forward.2} parent=1 // pred_region
      _
    $region9: #{mamba_model_forward.2} parent=1 // pred_fallthru
      _
    // Predicated region
    $region10: #{mamba_model_forward.2} parent=1 // pred_check
      _
    $region11: #{mamba_model_forward.2} parent=1 // pred_check_branch
      %28 = sbr.rel (0) target = $region13
    $region12: #{mamba_model_forward.2} parent=1 // pred_region
      _
    $region13: #{mamba_model_forward.2} parent=1 // pred_fallthru
      _
    // Predicated region
    $region14: #{mamba_model_forward.2} parent=1 // pred_check
      _
    $region15: #{mamba_model_forward.2} parent=1 // pred_check_branch
      %30 = sbr.rel (0) target = $region17
    $region16: #{mamba_model_forward.2} parent=1 // pred_region
      _
    $region17: #{mamba_model_forward.2} parent=1 // pred_fallthru
      _
    // Predicated region
    $region18: #{mamba_model_forward.2} parent=1 // pred_check
      _
    $region19: #{mamba_model_forward.2} parent=1 // pred_check_branch
      %32 = sbr.rel (0) target = $region21
    $region20: #{mamba_model_forward.2} parent=1 // pred_region
      _
    $region21: #{mamba_model_forward.2} parent=1 // pred_fallthru
      _
    // Predicated region
    $region22: #{mamba_model_forward.2} parent=1 // pred_check
      _
    $region23: #{mamba_model_forward.2} parent=1 // pred_check_branch
      %34 = sbr.rel (0) target = $region25
    $region24: #{mamba_model_forward.2} parent=1 // pred_region
      _
    $region25: #{mamba_model_forward.2} parent=1 // pred_fallthru
      _
    // Predicated region
    $region26: #{mamba_model_forward.2} parent=1 // pred_check
      _
    $region27: #{mamba_model_forward.2} parent=1 // pred_check_branch
      %36 = sbr.rel (0) target = $region29
    $region28: #{mamba_model_forward.2} parent=1 // pred_region
      _
    $region29: #{mamba_model_forward.2} parent=1 // pred_fallthru
      _
    // Predicated region
    $region30: #{mamba_model_forward.2} parent=1 // pred_check
      _
    $region31: #{mamba_model_forward.2} parent=1 // pred_check_branch
      %38 = sbr.rel (0) target = $region33
    $region32: #{mamba_model_forward.2} parent=1 // pred_region
      _
    $region33: #{mamba_model_forward.2} parent=1 // pred_fallthru
      _
    // Predicated region
    $region34: #{mamba_model_forward.2} parent=1 // pred_check
      _
    $region35: #{mamba_model_forward.2} parent=1 // pred_check_branch
      %40 = sbr.rel (0) target = $region37
    $region36: #{mamba_model_forward.2} parent=1 // pred_region
      _
    $region37: #{mamba_model_forward.2} parent=1 // pred_fallthru
      _
    // Predicated region
    $region38: #{mamba_model_forward.2} parent=1 // pred_check
      _
    $region39: #{mamba_model_forward.2} parent=1 // pred_check_branch
      %42 = sbr.rel (0) target = $region41
    $region40: #{mamba_model_forward.2} parent=1 // pred_region
      _
    $region41: #{mamba_model_forward.2} parent=1 // pred_fallthru
      _
    // Predicated region
    $region42: #{mamba_model_forward.2} parent=1 // pred_check
      _
    $region43: #{mamba_model_forward.2} parent=1 // pred_check_branch
      %44 = sbr.rel (0) target = $region45
    $region44: #{mamba_model_forward.2} parent=1 // pred_region
      _
    $region45: #{mamba_model_forward.2} parent=1 // pred_fallthru
      _
    // Predicated region
    $region46: #{mamba_model_forward.2} parent=1 // pred_check
      _
    $region47: #{mamba_model_forward.2} parent=1 // pred_check_branch
      %46 = sbr.rel (0) target = $region49
    $region48: #{mamba_model_forward.2} parent=1 // pred_region
      _
    $region49: #{mamba_model_forward.2} parent=1 // pred_fallthru
      _
    // Predicated region
    $region50: #{mamba_model_forward.2} parent=1 // pred_check
      _
    $region51: #{mamba_model_forward.2} parent=1 // pred_check_branch
      %48 = sbr.rel (0) target = $region53
    $region52: #{mamba_model_forward.2} parent=1 // pred_region
      _
    $region53: #{mamba_model_forward.2} parent=1 // pred_fallthru
      _
    // Predicated region
    $region54: #{mamba_model_forward.2} parent=1 // pred_check
      _
    $region55: #{mamba_model_forward.2} parent=1 // pred_check_branch
      %50 = sbr.rel (0) target = $region57
    $region56: #{mamba_model_forward.2} parent=1 // pred_region
      _
    $region57: #{mamba_model_forward.2} parent=1 // pred_fallthru
      _
    // Predicated region
    $region58: #{mamba_model_forward.2} parent=1 // pred_check
      _
    $region59: #{mamba_model_forward.2} parent=1 // pred_check_branch
      %52 = sbr.rel (0) target = $region61
    $region60: #{mamba_model_forward.2} parent=1 // pred_region
      _
    $region61: #{mamba_model_forward.2} parent=1 // pred_fallthru
      _
    %v53 = vld [vmem:[%s0] sm:$0xff]
    %v54 = vld [vmem:[%s0 + $0x8] sm:$0xff]
    %v55 = vld [vmem:[%s1] sm:$0xff]
    %v56 = vld [vmem:[%s1 + $0x8] sm:$0xff]
    %v57 = vadd.f32 %v53, %v55
    %v58 = vadd.f32 %v54, %v56
    %vm59 = vcmask 261120
    %v60 = vsel %vm59, %v57, 0.0
    %61 = vadd.xlane.f32.xlu0 %v60
    %v62 = vpop.xlane.xlu0 %61
    %v63 = vsel %vm59, %v58, 0.0
    %64 = vadd.xlane.f32.xlu0 %v63
    %v65 = vpop.xlane.xlu0 %64
    %v66 = vrcp.pop 32.0
    %v67 = vmul.f32 %v62, %v66
    %v68 = vmul.f32 %v65, %v66
    %v69 = vsub.f32 %v57, %v67
    %v70 = vsub.f32 %v58, %v68
    %v71 = vmul.f32 %v69, %v69
    %v72 = vmul.f32 %v70, %v70
    %v73 = vsel %vm59, %v71, 0.0
    %74 = vadd.xlane.f32.xlu0 %v73
    %v75 = vpop.xlane.xlu0 %74
    %v76 = vsel %vm59, %v72, 0.0
    %77 = vadd.xlane.f32.xlu0 %v76
    %v78 = vpop.xlane.xlu0 %77
    %v79 = vmul.f32 %v75, %v66
    %v80 = vmul.f32 %v78, %v66
    %v81 = vadd.f32 %v79, 1e-05
    %v82 = vadd.f32 %v80, 1e-05
    %v83 = vrsqrt.pop %v81
    %v84 = vrsqrt.pop %v82
    %v85 = vmul.f32 %v69, %v83
    %v86 = vmul.f32 %v70, %v84
    %v87 = vld [vmem:[%s2] sm:$0x1]
    %v89 = vlaneseq
    %v90 = vshrl.u32 %v89, 7
    %v91 = vsub.s32 0, %v90
    %v92 = vrot.slane %v87, %v91
    %v94 = vmul.f32 %v85, %v92
    %v95 = vmul.f32 %v86, %v92
    %v96 = vld [vmem:[%s3] sm:$0x1]
    %v98 = vlaneseq
    %v99 = vshrl.u32 %v98, 7
    %v100 = vsub.s32 0, %v99
    %v101 = vrot.slane %v96, %v100
    %v103 = vadd.f32 %v94, %v101
    %v104 = vadd.f32 %v95, %v101
    %v105 = vld [vmem:[%s4] sm:$0xff]
    %v106 = vld [vmem:[%s4 + $0x8] sm:$0xff]
    %v107 = vld [vmem:[%s4 + $0x10] sm:$0xff]
    %v108 = vld [vmem:[%s4 + $0x18] sm:$0xff]
    %v110 = vsel %vm59, %v103, 0
    %v113 = vsel %vm59, %v104, 0
    %115 = vmatprep.subr.mxu0 0.0
    %116 = vmatpush1.msra.mxu0 %v105
    %117 = vmatprep.subr.mxu0 0.0
    %118 = vmatpush1.msra.mxu0 %v106
    %119 = vmatprep.subr.mxu0 0.0
    %120 = vmatpush1.msra.mxu0 %v107
    %121 = vmatprep.subr.mxu0 0.0
    %122 = vmatpush1.msra.mxu0 %v108
    %123 = vmatprep.subr.mxu0 0.0
    %124 = vmatpush1.msra.mxu0 0.0
    %125 = vmatprep.subr.mxu0 0.0
    %126 = vmatpush1.msra.mxu0 0.0
    %127 = vmatprep.subr.mxu0 0.0
    %128 = vmatpush1.msra.mxu0 0.0
    %129 = vmatprep.subr.mxu0 0.0
    %130 = vmatpush1.msra.mxu0 0.0
    %131 = vmatprep.subr.mxu0 0.0
    %132 = vmatpush1.msra.mxu0 0.0
    %133 = vmatprep.subr.mxu0 0.0
    %134 = vmatpush1.msra.mxu0 0.0
    %135 = vmatprep.subr.mxu0 0.0
    %136 = vmatpush1.msra.mxu0 0.0
    %137 = vmatprep.subr.mxu0 0.0
    %138 = vmatpush1.msra.mxu0 0.0
    %139 = vmatprep.subr.mxu0 0.0
    %140 = vmatpush1.msra.mxu0 0.0
    %141 = vmatprep.subr.mxu0 0.0
    %142 = vmatpush1.msra.mxu0 0.0
    %143 = vmatprep.subr.mxu0 0.0
    %144 = vmatpush1.msra.mxu0 0.0
    %145 = vmatprep.subr.mxu0 0.0
    %146 = vmatpush1.msra.mxu0 0.0
    %147 = vmatprep.subr.mxu0 0.0
    %148 = vmatpush1.msra.mxu0 0.0
    %149 = vmatprep.subr.mxu0 0.0
    %150 = vmatpush1.msra.mxu0 0.0
    %151 = vmatprep.subr.mxu0 0.0
    %152 = vmatpush1.msra.mxu0 0.0
    %153 = vmatprep.subr.mxu0 0.0
    %154 = vmatpush1.msra.mxu0 0.0
    %155 = vmatprep.subr.mxu0 0.0
    %156 = vmatpush1.msra.mxu0 0.0
    %157 = vmatprep.subr.mxu0 0.0
    %158 = vmatpush1.msra.mxu0 0.0
    %159 = vmatprep.subr.mxu0 0.0
    %160 = vmatpush1.msra.mxu0 0.0
    %161 = vmatprep.subr.mxu0 0.0
    %162 = vmatpush1.msra.mxu0 0.0
    %163 = vmatprep.subr.mxu0 0.0
    %164 = vmatpush1.msra.mxu0 0.0
    %165 = vmatprep.subr.mxu0 0.0
    %166 = vmatpush1.msra.mxu0 0.0
    %167 = vmatprep.subr.mxu0 0.0
    %168 = vmatpush1.msra.mxu0 0.0
    %169 = vmatprep.subr.mxu0 0.0
    %170 = vmatpush1.msra.mxu0 0.0
    %171 = vmatprep.subr.mxu0 0.0
    %172 = vmatpush1.msra.mxu0 0.0
    %173 = vmatprep.subr.mxu0 0.0
    %174 = vmatpush1.msra.mxu0 0.0
    %175 = vmatprep.subr.mxu0 0.0
    %176 = vmatpush1.msra.mxu0 0.0
    %177 = vmatprep.subr.mxu0 0.0
    %178 = vmatpush1.msra.mxu0 0.0
    %179 = vmatprep.mubr.f32.mxu0 0.0
    %180 = vmatmul.mubr.f32.gmra.mrb[0].mxu0 %v110
    %v181 = vpop.f32.mrb[0].mxu0
    %v182 = vadd.f32 0.0, %v181
    %v183 = vpop.f32.mrb[0].mxu0
    %184 = vmatprep.mubr.f32.mxu0 0.0
    %185 = vmatmul.mubr.f32.gmra.mrb[0].mxu0 %v113
    %v186 = vpop.f32.mrb[0].mxu0
    %v187 = vadd.f32 0.0, %v186
    %v188 = vpop.f32.mrb[0].mxu0
    %189 = vdwg.mxu0
    %v190 = vld [vmem:[%s5] sm:$0xff]
    %v191 = vld [vmem:[%s5 + $0x8] sm:$0xff]
    %v192 = vld [vmem:[%s5 + $0x10] sm:$0xff]
    %v193 = vld [vmem:[%s5 + $0x18] sm:$0xff]
    %194 = vmatprep.subr.mxu0 0.0
    %195 = vmatpush1.msra.mxu0 %v190
    %196 = vmatprep.subr.mxu0 0.0
    %197 = vmatpush1.msra.mxu0 %v191
    %198 = vmatprep.subr.mxu0 0.0
    %199 = vmatpush1.msra.mxu0 %v192
    %200 = vmatprep.subr.mxu0 0.0
    %201 = vmatpush1.msra.mxu0 %v193
    %202 = vmatprep.subr.mxu0 0.0
    %203 = vmatpush1.msra.mxu0 0.0
    %204 = vmatprep.subr.mxu0 0.0
    %205 = vmatpush1.msra.mxu0 0.0
    %206 = vmatprep.subr.mxu0 0.0
    %207 = vmatpush1.msra.mxu0 0.0
    %208 = vmatprep.subr.mxu0 0.0
    %209 = vmatpush1.msra.mxu0 0.0
    %210 = vmatprep.subr.mxu0 0.0
    %211 = vmatpush1.msra.mxu0 0.0
    %212 = vmatprep.subr.mxu0 0.0
    %213 = vmatpush1.msra.mxu0 0.0
    %214 = vmatprep.subr.mxu0 0.0
    %215 = vmatpush1.msra.mxu0 0.0
    %216 = vmatprep.subr.mxu0 0.0
    %217 = vmatpush1.msra.mxu0 0.0
    %218 = vmatprep.subr.mxu0 0.0
    %219 = vmatpush1.msra.mxu0 0.0
    %220 = vmatprep.subr.mxu0 0.0
    %221 = vmatpush1.msra.mxu0 0.0
    %222 = vmatprep.subr.mxu0 0.0
    %223 = vmatpush1.msra.mxu0 0.0
    %224 = vmatprep.subr.mxu0 0.0
    %225 = vmatpush1.msra.mxu0 0.0
    %226 = vmatprep.subr.mxu0 0.0
    %227 = vmatpush1.msra.mxu0 0.0
    %228 = vmatprep.subr.mxu0 0.0
    %229 = vmatpush1.msra.mxu0 0.0
    %230 = vmatprep.subr.mxu0 0.0
    %231 = vmatpush1.msra.mxu0 0.0
    %232 = vmatprep.subr.mxu0 0.0
    %233 = vmatpush1.msra.mxu0 0.0
    %234 = vmatprep.subr.mxu0 0.0
    %235 = vmatpush1.msra.mxu0 0.0
    %236 = vmatprep.subr.mxu0 0.0
    %237 = vmatpush1.msra.mxu0 0.0
    %238 = vmatprep.subr.mxu0 0.0
    %239 = vmatpush1.msra.mxu0 0.0
    %240 = vmatprep.subr.mxu0 0.0
    %241 = vmatpush1.msra.mxu0 0.0
    %242 = vmatprep.subr.mxu0 0.0
    %243 = vmatpush1.msra.mxu0 0.0
    %244 = vmatprep.subr.mxu0 0.0
    %245 = vmatpush1.msra.mxu0 0.0
    %246 = vmatprep.subr.mxu0 0.0
    %247 = vmatpush1.msra.mxu0 0.0
    %248 = vmatprep.subr.mxu0 0.0
    %249 = vmatpush1.msra.mxu0 0.0
    %250 = vmatprep.subr.mxu0 0.0
    %251 = vmatpush1.msra.mxu0 0.0
    %252 = vmatprep.subr.mxu0 0.0
    %253 = vmatpush1.msra.mxu0 0.0
    %254 = vmatprep.subr.mxu0 0.0
    %255 = vmatpush1.msra.mxu0 0.0
    %256 = vmatprep.subr.mxu0 0.0
    %257 = vmatpush1.msra.mxu0 0.0
    %258 = vmatprep.mubr.f32.mxu0 0.0
    %259 = vmatmul.mubr.f32.gmra.mrb[0].mxu0 %v110
    %v260 = vpop.f32.mrb[0].mxu0
    %v261 = vadd.f32 0.0, %v260
    %v262 = vpop.f32.mrb[0].mxu0
    %263 = vmatprep.mubr.f32.mxu0 0.0
    %264 = vmatmul.mubr.f32.gmra.mrb[0].mxu0 %v113
    %v265 = vpop.f32.mrb[0].mxu0
    %v266 = vadd.f32 0.0, %v265
    %v267 = vpop.f32.mrb[0].mxu0
    %268 = vdwg.mxu0
    %v269 = vld [vmem:[%s7] sm:$0x1]
    %v271 = vlaneseq
    %v272 = vshrl.u32 %v271, 7
    %v273 = vsub.s32 0, %v272
    %v274 = vrot.slane %v269, %v273
    %v276 = vld [vmem:[%s6] sm:$0x1]
    %v279 = vrot.slane %v182, 5
    %v280 = vrot.slane %v187, 5
    %vm283 = vcmask 1042432
    %v284 = vsel %vm283, 0.0, %v279
    %v285 = vsel %vm283, 0.0, %v280
    %v286 = vlaneseq
    %v287 = vshrl.u32 %v286, 7
    %v288 = vsub.s32 0, %v287
    %v289 = vrot.slane %v276, %v288
    %v290 = vmul.f32 %v284, %v289
    %v291 = vmul.f32 %v285, %v289
    %v292 = vadd.f32 %v274, %v290
    %v293 = vadd.f32 %v274, %v291
    %v294 = vld [vmem:[%s6 + $0x1] sm:$0x1]
    %v295 = vrot.slane %v182, 6
    %v296 = vrot.slane %v187, 6
    %vm299 = vcmask 1041408
    %v300 = vsel %vm299, 0.0, %v295
    %v301 = vsel %vm299, 0.0, %v296
    %v302 = vlaneseq
    %v303 = vshrl.u32 %v302, 7
    %v304 = vsub.s32 0, %v303
    %v305 = vrot.slane %v294, %v304
    %v306 = vmul.f32 %v300, %v305
    %v307 = vmul.f32 %v301, %v305
    %v308 = vadd.f32 %v292, %v306
    %v309 = vadd.f32 %v293, %v307
    %v310 = vld [vmem:[%s6 + $0x2] sm:$0x1]
    %v311 = vrot.slane %v182, 7
    %v312 = vrot.slane %v187, 7
    %vm315 = vcmask 1040384
    %v316 = vsel %vm315, 0.0, %v311
    %v317 = vsel %vm315, 0.0, %v312
    %v318 = vlaneseq
    %v319 = vshrl.u32 %v318, 7
    %v320 = vsub.s32 0, %v319
    %v321 = vrot.slane %v310, %v320
    %v322 = vmul.f32 %v316, %v321
    %v323 = vmul.f32 %v317, %v321
    %v324 = vadd.f32 %v308, %v322
    %v325 = vadd.f32 %v309, %v323
    %v326 = vld [vmem:[%s6 + $0x3] sm:$0x1]
    %v327 = vlaneseq
    %v328 = vshrl.u32 %v327, 7
    %v329 = vsub.s32 0, %v328
    %v330 = vrot.slane %v326, %v329
    %v331 = vmul.f32 %v182, %v330
    %v332 = vmul.f32 %v187, %v330
    %v333 = vadd.f32 %v324, %v331
    %v334 = vadd.f32 %v325, %v332
    %v335 = vxor.u32 %v333, 2147483648
    %v336 = vxor.u32 %v334, 2147483648
    %v337 = vmul.f32 %v335, 1.442695
    %v338 = vpow.pop %v337
    %v339 = vmul.f32 %v336, 1.442695
    %v340 = vpow.pop %v339
    %v341 = vadd.f32 %v338, 1.0
    %v342 = vadd.f32 %v340, 1.0
    %v343 = vrcp.pop %v341
    %v344 = vmul.f32 1.0, %v343
    %v345 = vrcp.pop %v342
    %v346 = vmul.f32 1.0, %v345
    %v347 = vmul.f32 %v333, %v344
    %v348 = vmul.f32 %v334, %v346
    %v349 = vld [vmem:[%s8] sm:$0xff]
    %v350 = vld [vmem:[%s8 + $0x8] sm:$0xff]
    %v351 = vld [vmem:[%s8 + $0x10] sm:$0xff]
    %v352 = vld [vmem:[%s8 + $0x18] sm:$0xff]
    %v353 = vld [vmem:[%s8 + $0x20] sm:$0xff]
    %v354 = vld [vmem:[%s8 + $0x28] sm:$0xff]
    %v355 = vld [vmem:[%s8 + $0x30] sm:$0xff]
    %v356 = vld [vmem:[%s8 + $0x38] sm:$0xff]
    %v357 = vld [vmem:[%s11] sm:$0x1]
    %v359 = vlaneseq
    %v360 = vshrl.u32 %v359, 7
    %v361 = vsub.s32 0, %v360
    %v362 = vrot.slane %v357, %v361
    %vm364 = vcmask 523264
    %v366 = vsel %vm364, %v347, 0
    %v369 = vsel %vm364, %v348, 0
    %371 = vmatprep.subr.mxu0 0.0
    %372 = vmatpush1.msra.mxu0 %v349
    %373 = vmatprep.subr.mxu0 0.0
    %374 = vmatpush1.msra.mxu0 %v350
    %375 = vmatprep.subr.mxu0 0.0
    %376 = vmatpush1.msra.mxu0 %v351
    %377 = vmatprep.subr.mxu0 0.0
    %378 = vmatpush1.msra.mxu0 %v352
    %379 = vmatprep.subr.mxu0 0.0
    %380 = vmatpush1.msra.mxu0 %v353
    %381 = vmatprep.subr.mxu0 0.0
    %382 = vmatpush1.msra.mxu0 %v354
    %383 = vmatprep.subr.mxu0 0.0
    %384 = vmatpush1.msra.mxu0 %v355
    %385 = vmatprep.subr.mxu0 0.0
    %386 = vmatpush1.msra.mxu0 %v356
    %387 = vmatprep.subr.mxu0 0.0
    %388 = vmatpush1.msra.mxu0 0.0
    %389 = vmatprep.subr.mxu0 0.0
    %390 = vmatpush1.msra.mxu0 0.0
    %391 = vmatprep.subr.mxu0 0.0
    %392 = vmatpush1.msra.mxu0 0.0
    %393 = vmatprep.subr.mxu0 0.0
    %394 = vmatpush1.msra.mxu0 0.0
    %395 = vmatprep.subr.mxu0 0.0
    %396 = vmatpush1.msra.mxu0 0.0
    %397 = vmatprep.subr.mxu0 0.0
    %398 = vmatpush1.msra.mxu0 0.0
    %399 = vmatprep.subr.mxu0 0.0
    %400 = vmatpush1.msra.mxu0 0.0
    %401 = vmatprep.subr.mxu0 0.0
    %402 = vmatpush1.msra.mxu0 0.0
    %403 = vmatprep.subr.mxu0 0.0
    %404 = vmatpush1.msra.mxu0 0.0
    %405 = vmatprep.subr.mxu0 0.0
    %406 = vmatpush1.msra.mxu0 0.0
    %407 = vmatprep.subr.mxu0 0.0
    %408 = vmatpush1.msra.mxu0 0.0
    %409 = vmatprep.subr.mxu0 0.0
    %410 = vmatpush1.msra.mxu0 0.0
    %411 = vmatprep.subr.mxu0 0.0
    %412 = vmatpush1.msra.mxu0 0.0
    %413 = vmatprep.subr.mxu0 0.0
    %414 = vmatpush1.msra.mxu0 0.0
    %415 = vmatprep.subr.mxu0 0.0
    %416 = vmatpush1.msra.mxu0 0.0
    %417 = vmatprep.subr.mxu0 0.0
    %418 = vmatpush1.msra.mxu0 0.0
    %419 = vmatprep.subr.mxu0 0.0
    %420 = vmatpush1.msra.mxu0 0.0
    %421 = vmatprep.subr.mxu0 0.0
    %422 = vmatpush1.msra.mxu0 0.0
    %423 = vmatprep.subr.mxu0 0.0
    %424 = vmatpush1.msra.mxu0 0.0
    %425 = vmatprep.subr.mxu0 0.0
    %426 = vmatpush1.msra.mxu0 0.0
    %427 = vmatprep.subr.mxu0 0.0
    %428 = vmatpush1.msra.mxu0 0.0
    %429 = vmatprep.subr.mxu0 0.0
    %430 = vmatpush1.msra.mxu0 0.0
    %431 = vmatprep.subr.mxu0 0.0
    %432 = vmatpush1.msra.mxu0 0.0
    %433 = vmatprep.subr.mxu0 0.0
    %434 = vmatpush1.msra.mxu0 0.0
    %435 = vmatprep.mubr.f32.mxu0 0.0
    %436 = vmatmul.mubr.f32.gmra.mrb[0].mxu0 %v366
    %v437 = vpop.f32.mrb[0].mxu0
    %v438 = vadd.f32 %v362, %v437
    %v439 = vpop.f32.mrb[0].mxu0
    %440 = vmatprep.mubr.f32.mxu0 0.0
    %441 = vmatmul.mubr.f32.gmra.mrb[0].mxu0 %v369
    %v442 = vpop.f32.mrb[0].mxu0
    %v443 = vadd.f32 %v362, %v442
    %v444 = vpop.f32.mrb[0].mxu0
    %445 = vdwg.mxu0
    %v446 = vmax.f32 %v438, 0.0
    %v447 = vmax.f32 %v443, 0.0
    %v448 = vand.u32 2147483647, %v438
    %v449 = vand.u32 2147483647, %v443
    %v450 = vsub.f32 0.0, %v448
    %v451 = vsub.f32 0.0, %v449
    %v452 = vmul.f32 %v450, 1.442695
    %v453 = vpow.pop %v452
    %v454 = vmul.f32 %v451, 1.442695
    %v455 = vpow.pop %v454
    %v456 = vadd.f32 %v453, 1.0
    %v457 = vlog2.pop %v456
    %v458 = vmul.f32 %v457, 0.6931472
    %v459 = vmul.f32 -0.5, %v453
    %v460 = vadd.f32 %v459, 1.0
    %v461 = vmul.f32 %v460, %v453
    %v462 = vand.u32 2147483647, %v453
    %vm463 = vcmp.lt.f32.partialorder %v462, 0.0004427343
    %v464 = vsel %vm463, %v461, %v458
    %v465 = vadd.f32 %v455, 1.0
    %v466 = vlog2.pop %v465
    %v467 = vmul.f32 %v466, 0.6931472
    %v468 = vmul.f32 -0.5, %v455
    %v469 = vadd.f32 %v468, 1.0
    %v470 = vmul.f32 %v469, %v455
    %v471 = vand.u32 2147483647, %v455
    %vm472 = vcmp.lt.f32.partialorder %v471, 0.0004427343
    %v473 = vsel %vm472, %v470, %v467
    %v474 = vadd.f32 %v446, %v464
    %v475 = vadd.f32 %v447, %v473
    %v476 = vld [vmem:[%s9] sm:$0xff]
    %v477 = vld [vmem:[%s9 + $0x8] sm:$0xff]
    %v478 = vld [vmem:[%s9 + $0x10] sm:$0xff]
    %v479 = vld [vmem:[%s9 + $0x18] sm:$0xff]
    %v480 = vld [vmem:[%s9 + $0x20] sm:$0xff]
    %v481 = vld [vmem:[%s9 + $0x28] sm:$0xff]
    %v482 = vld [vmem:[%s9 + $0x30] sm:$0xff]
    %v483 = vld [vmem:[%s9 + $0x38] sm:$0xff]
    %484 = vmatprep.subr.mxu0 0.0
    %485 = vmatpush1.msra.mxu0 %v476
    %486 = vmatprep.subr.mxu0 0.0
    %487 = vmatpush1.msra.mxu0 %v477
    %488 = vmatprep.subr.mxu0 0.0
    %489 = vmatpush1.msra.mxu0 %v478
    %490 = vmatprep.subr.mxu0 0.0
    %491 = vmatpush1.msra.mxu0 %v479
    %492 = vmatprep.subr.mxu0 0.0
    %493 = vmatpush1.msra.mxu0 %v480
    %494 = vmatprep.subr.mxu0 0.0
    %495 = vmatpush1.msra.mxu0 %v481
    %496 = vmatprep.subr.mxu0 0.0
    %497 = vmatpush1.msra.mxu0 %v482
    %498 = vmatprep.subr.mxu0 0.0
    %499 = vmatpush1.msra.mxu0 %v483
    %500 = vmatprep.subr.mxu0 0.0
    %501 = vmatpush1.msra.mxu0 0.0
    %502 = vmatprep.subr.mxu0 0.0
    %503 = vmatpush1.msra.mxu0 0.0
    %504 = vmatprep.subr.mxu0 0.0
    %505 = vmatpush1.msra.mxu0 0.0
    %506 = vmatprep.subr.mxu0 0.0
    %507 = vmatpush1.msra.mxu0 0.0
    %508 = vmatprep.subr.mxu0 0.0
    %509 = vmatpush1.msra.mxu0 0.0
    %510 = vmatprep.subr.mxu0 0.0
    %511 = vmatpush1.msra.mxu0 0.0
    %512 = vmatprep.subr.mxu0 0.0
    %513 = vmatpush1.msra.mxu0 0.0
    %514 = vmatprep.subr.mxu0 0.0
    %515 = vmatpush1.msra.mxu0 0.0
    %516 = vmatprep.subr.mxu0 0.0
    %517 = vmatpush1.msra.mxu0 0.0
    %518 = vmatprep.subr.mxu0 0.0
    %519 = vmatpush1.msra.mxu0 0.0
    %520 = vmatprep.subr.mxu0 0.0
    %521 = vmatpush1.msra.mxu0 0.0
    %522 = vmatprep.subr.mxu0 0.0
    %523 = vmatpush1.msra.mxu0 0.0
    %524 = vmatprep.subr.mxu0 0.0
    %525 = vmatpush1.msra.mxu0 0.0
    %526 = vmatprep.subr.mxu0 0.0
    %527 = vmatpush1.msra.mxu0 0.0
    %528 = vmatprep.subr.mxu0 0.0
    %529 = vmatpush1.msra.mxu0 0.0
    %530 = vmatprep.subr.mxu0 0.0
    %531 = vmatpush1.msra.mxu0 0.0
    %532 = vmatprep.subr.mxu0 0.0
    %533 = vmatpush1.msra.mxu0 0.0
    %534 = vmatprep.subr.mxu0 0.0
    %535 = vmatpush1.msra.mxu0 0.0
    %536 = vmatprep.subr.mxu0 0.0
    %537 = vmatpush1.msra.mxu0 0.0
    %538 = vmatprep.subr.mxu0 0.0
    %539 = vmatpush1.msra.mxu0 0.0
    %540 = vmatprep.subr.mxu0 0.0
    %541 = vmatpush1.msra.mxu0 0.0
    %542 = vmatprep.subr.mxu0 0.0
    %543 = vmatpush1.msra.mxu0 0.0
    %544 = vmatprep.subr.mxu0 0.0
    %545 = vmatpush1.msra.mxu0 0.0
    %546 = vmatprep.subr.mxu0 0.0
    %547 = vmatpush1.msra.mxu0 0.0
    %548 = vmatprep.mubr.f32.mxu0 0.0
    %549 = vmatmul.mubr.f32.gmra.mrb[0].mxu0 %v366
    %v550 = vpop.f32.mrb[0].mxu0
    %v551 = vadd.f32 0.0, %v550
    %v552 = vpop.f32.mrb[0].mxu0
    %553 = vmatprep.mubr.f32.mxu0 0.0
    %554 = vmatmul.mubr.f32.gmra.mrb[0].mxu0 %v369
    %v555 = vpop.f32.mrb[0].mxu0
    %v556 = vadd.f32 0.0, %v555
    %v557 = vpop.f32.mrb[0].mxu0
    %558 = vdwg.mxu0
    %v559 = vld [vmem:[%s10] sm:$0xff]
    %v560 = vld [vmem:[%s10 + $0x8] sm:$0xff]
    %v561 = vld [vmem:[%s10 + $0x10] sm:$0xff]
    %v562 = vld [vmem:[%s10 + $0x18] sm:$0xff]
    %v563 = vld [vmem:[%s10 + $0x20] sm:$0xff]
    %v564 = vld [vmem:[%s10 + $0x28] sm:$0xff]
    %v565 = vld [vmem:[%s10 + $0x30] sm:$0xff]
    %v566 = vld [vmem:[%s10 + $0x38] sm:$0xff]
    %567 = vmatprep.subr.mxu0 0.0
    %568 = vmatpush1.msra.mxu0 %v559
    %569 = vmatprep.subr.mxu0 0.0
    %570 = vmatpush1.msra.mxu0 %v560
    %571 = vmatprep.subr.mxu0 0.0
    %572 = vmatpush1.msra.mxu0 %v561
    %573 = vmatprep.subr.mxu0 0.0
    %574 = vmatpush1.msra.mxu0 %v562
    %575 = vmatprep.subr.mxu0 0.0
    %576 = vmatpush1.msra.mxu0 %v563
    %577 = vmatprep.subr.mxu0 0.0
    %578 = vmatpush1.msra.mxu0 %v564
    %579 = vmatprep.subr.mxu0 0.0
    %580 = vmatpush1.msra.mxu0 %v565
    %581 = vmatprep.subr.mxu0 0.0
    %582 = vmatpush1.msra.mxu0 %v566
    %583 = vmatprep.subr.mxu0 0.0
    %584 = vmatpush1.msra.mxu0 0.0
    %585 = vmatprep.subr.mxu0 0.0
    %586 = vmatpush1.msra.mxu0 0.0
    %587 = vmatprep.subr.mxu0 0.0
    %588 = vmatpush1.msra.mxu0 0.0
    %589 = vmatprep.subr.mxu0 0.0
    %590 = vmatpush1.msra.mxu0 0.0
    %591 = vmatprep.subr.mxu0 0.0
    %592 = vmatpush1.msra.mxu0 0.0
    %593 = vmatprep.subr.mxu0 0.0
    %594 = vmatpush1.msra.mxu0 0.0
    %595 = vmatprep.subr.mxu0 0.0
    %596 = vmatpush1.msra.mxu0 0.0
    %597 = vmatprep.subr.mxu0 0.0
    %598 = vmatpush1.msra.mxu0 0.0
    %599 = vmatprep.subr.mxu0 0.0
    %600 = vmatpush1.msra.mxu0 0.0
    %601 = vmatprep.subr.mxu0 0.0
    %602 = vmatpush1.msra.mxu0 0.0
    %603 = vmatprep.subr.mxu0 0.0
    %604 = vmatpush1.msra.mxu0 0.0
    %605 = vmatprep.subr.mxu0 0.0
    %606 = vmatpush1.msra.mxu0 0.0
    %607 = vmatprep.subr.mxu0 0.0
    %608 = vmatpush1.msra.mxu0 0.0
    %609 = vmatprep.subr.mxu0 0.0
    %610 = vmatpush1.msra.mxu0 0.0
    %611 = vmatprep.subr.mxu0 0.0
    %612 = vmatpush1.msra.mxu0 0.0
    %613 = vmatprep.subr.mxu0 0.0
    %614 = vmatpush1.msra.mxu0 0.0
    %615 = vmatprep.subr.mxu0 0.0
    %616 = vmatpush1.msra.mxu0 0.0
    %617 = vmatprep.subr.mxu0 0.0
    %618 = vmatpush1.msra.mxu0 0.0
    %619 = vmatprep.subr.mxu0 0.0
    %620 = vmatpush1.msra.mxu0 0.0
    %621 = vmatprep.subr.mxu0 0.0
    %622 = vmatpush1.msra.mxu0 0.0
    %623 = vmatprep.subr.mxu0 0.0
    %624 = vmatpush1.msra.mxu0 0.0
    %625 = vmatprep.subr.mxu0 0.0
    %626 = vmatpush1.msra.mxu0 0.0
    %627 = vmatprep.subr.mxu0 0.0
    %628 = vmatpush1.msra.mxu0 0.0
    %629 = vmatprep.subr.mxu0 0.0
    %630 = vmatpush1.msra.mxu0 0.0
    %631 = vmatprep.mubr.f32.mxu0 0.0
    %632 = vmatmul.mubr.f32.gmra.mrb[0].mxu0 %v366
    %v633 = vpop.f32.mrb[0].mxu0
    %v634 = vadd.f32 0.0, %v633
    %v635 = vpop.f32.mrb[0].mxu0
    %636 = vmatprep.mubr.f32.mxu0 0.0
    %637 = vmatmul.mubr.f32.gmra.mrb[0].mxu0 %v369
    %v638 = vpop.f32.mrb[0].mxu0
    %v639 = vadd.f32 0.0, %v638
    %v640 = vpop.f32.mrb[0].mxu0
    %641 = vdwg.mxu0
    %v642 = vld [vmem:[%s12] sm:$0xff]
    %v643 = vld [vmem:[%s12 + $0x8] sm:$0xff]
    %v644 = vmul.f32 %v642, 1.442695
    %v645 = vpow.pop %v644
    %v646 = vmul.f32 %v643, 1.442695
    %v647 = vpow.pop %v646
    %v648 = vsub.f32 0.0, %v645
    %v649 = vsub.f32 0.0, %v647
    %v650 = vmul.f32 %v474, %v347
    %v651 = vmul.f32 %v475, %v348
    %v653 = vcombine.high %v474, %v474
    %v655 = vunpack.c.l.s4 1966171168
    %v656 = vunpack.c.0.s8 %v655
    %v657 = vlaneseq
    %v658 = vshrl.u32 %v657, 7
    %v659 = vsub.s32 %v656, %v658
    %v660 = vrot.slane %v474, %v659
    %v662 = vunpack.c.l.s4 1966171168
    %v663 = vunpack.c.0.s8 %v662
    %v664 = vlaneseq
    %v665 = vshrl.u32 %v664, 7
    %v666 = vsub.s32 %v663, %v665
    %v667 = vrot.slane %v653, %v666
    %v668 = vcombine.high %v660, %v660
    %v669 = vcombine.high %v667, %v667
    %v671 = vunpack.c.l.s4 1966171168
    %v672 = vunpack.c.0.s8 %v671
    %v673 = vlaneseq
    %v674 = vshrl.u32 %v673, 7
    %v675 = vsub.s32 %v672, %v674
    %v676 = vrot.slane %v660, %v675
    %v678 = vunpack.c.l.s4 1966171168
    %v679 = vunpack.c.0.s8 %v678
    %v680 = vlaneseq
    %v681 = vshrl.u32 %v680, 7
    %v682 = vsub.s32 %v679, %v681
    %v683 = vrot.slane %v667, %v682
    %v685 = vunpack.c.l.s4 1966171168
    %v686 = vunpack.c.0.s8 %v685
    %v687 = vlaneseq
    %v688 = vshrl.u32 %v687, 7
    %v689 = vsub.s32 %v686, %v688
    %v690 = vrot.slane %v668, %v689
    %v692 = vunpack.c.l.s4 1966171168
    %v693 = vunpack.c.0.s8 %v692
    %v694 = vlaneseq
    %v695 = vshrl.u32 %v694, 7
    %v696 = vsub.s32 %v693, %v695
    %v697 = vrot.slane %v669, %v696
    %v698 = vcombine.high %v676, %v676
    %v699 = vcombine.high %v683, %v683
    %v700 = vcombine.high %v690, %v690
    %v701 = vcombine.high %v697, %v697
    %v702 = vlaneseq
    %v703 = vshrl.u32 %v702, 7
    %v704 = vsub.s32 0, %v703
    %v705 = vrot.slane %v676, %v704
    %v706 = vlaneseq
    %v707 = vshrl.u32 %v706, 7
    %v708 = vsub.s32 0, %v707
    %v709 = vrot.slane %v690, %v708
    %v710 = vlaneseq
    %v711 = vshrl.u32 %v710, 7
    %v712 = vsub.s32 0, %v711
    %v713 = vrot.slane %v698, %v712
    %v714 = vlaneseq
    %v715 = vshrl.u32 %v714, 7
    %v716 = vsub.s32 0, %v715
    %v717 = vrot.slane %v700, %v716
    %v718 = vlaneseq
    %v719 = vshrl.u32 %v718, 7
    %v720 = vsub.s32 0, %v719
    %v721 = vrot.slane %v683, %v720
    %v722 = vlaneseq
    %v723 = vshrl.u32 %v722, 7
    %v724 = vsub.s32 0, %v723
    %v725 = vrot.slane %v697, %v724
    %v726 = vlaneseq
    %v727 = vshrl.u32 %v726, 7
    %v728 = vsub.s32 0, %v727
    %v729 = vrot.slane %v699, %v728
    %v730 = vlaneseq
    %v731 = vshrl.u32 %v730, 7
    %v732 = vsub.s32 0, %v731
    %v733 = vrot.slane %v701, %v732
    %v742 = vmul.f32 %v705, %v648
    %v743 = vmul.f32 %v705, %v649
    %v744 = vmul.f32 %v709, %v648
    %v745 = vmul.f32 %v709, %v649
    %v746 = vmul.f32 %v713, %v648
    %v747 = vmul.f32 %v713, %v649
    %v748 = vmul.f32 %v717, %v648
    %v749 = vmul.f32 %v717, %v649
    %v750 = vmul.f32 %v721, %v648
    %v751 = vmul.f32 %v721, %v649
    %v752 = vmul.f32 %v725, %v648
    %v753 = vmul.f32 %v725, %v649
    %v754 = vmul.f32 %v729, %v648
    %v755 = vmul.f32 %v729, %v649
    %v756 = vmul.f32 %v733, %v648
    %v757 = vmul.f32 %v733, %v649
    %v758 = vmul.f32 %v742, 1.442695
    %v759 = vpow.pop %v758
    %v760 = vmul.f32 %v743, 1.442695
    %v761 = vpow.pop %v760
    %v762 = vmul.f32 %v744, 1.442695
    %v763 = vpow.pop %v762
    %v764 = vmul.f32 %v745, 1.442695
    %v765 = vpow.pop %v764
    %v766 = vmul.f32 %v746, 1.442695
    %v767 = vpow.pop %v766
    %v768 = vmul.f32 %v747, 1.442695
    %v769 = vpow.pop %v768
    %v770 = vmul.f32 %v748, 1.442695
    %v771 = vpow.pop %v770
    %v772 = vmul.f32 %v749, 1.442695
    %v773 = vpow.pop %v772
    %v774 = vmul.f32 %v750, 1.442695
    %v775 = vpow.pop %v774
    %v776 = vmul.f32 %v751, 1.442695
    %v777 = vpow.pop %v776
    %v778 = vmul.f32 %v752, 1.442695
    %v779 = vpow.pop %v778
    %v780 = vmul.f32 %v753, 1.442695
    %v781 = vpow.pop %v780
    %v782 = vmul.f32 %v754, 1.442695
    %v783 = vpow.pop %v782
    %v784 = vmul.f32 %v755, 1.442695
    %v785 = vpow.pop %v784
    %v786 = vmul.f32 %v756, 1.442695
    %v787 = vpow.pop %v786
    %v788 = vmul.f32 %v757, 1.442695
    %v789 = vpow.pop %v788
    %790 = vst.msk [vmem:[#allocation2] sm:$0xff] %vm364, %v759
    %791 = vst.msk [vmem:[#allocation2 + $0x8] sm:$0xff] %vm364, %v761
    %792 = vst.msk [vmem:[#allocation2 + $0x10] sm:$0xff] %vm364, %v763
    %793 = vst.msk [vmem:[#allocation2 + $0x18] sm:$0xff] %vm364, %v765
    %794 = vst.msk [vmem:[#allocation2 + $0x20] sm:$0xff] %vm364, %v767
    %795 = vst.msk [vmem:[#allocation2 + $0x28] sm:$0xff] %vm364, %v769
    %796 = vst.msk [vmem:[#allocation2 + $0x30] sm:$0xff] %vm364, %v771
    %797 = vst.msk [vmem:[#allocation2 + $0x38] sm:$0xff] %vm364, %v773
    %798 = vst.msk [vmem:[#allocation2 + $0x40] sm:$0xff] %vm364, %v775
    %799 = vst.msk [vmem:[#allocation2 + $0x48] sm:$0xff] %vm364, %v777
    %800 = vst.msk [vmem:[#allocation2 + $0x50] sm:$0xff] %vm364, %v779
    %801 = vst.msk [vmem:[#allocation2 + $0x58] sm:$0xff] %vm364, %v781
    %802 = vst.msk [vmem:[#allocation2 + $0x60] sm:$0xff] %vm364, %v783
    %803 = vst.msk [vmem:[#allocation2 + $0x68] sm:$0xff] %vm364, %v785
    %804 = vst.msk [vmem:[#allocation2 + $0x70] sm:$0xff] %vm364, %v787
    %805 = vst.msk [vmem:[#allocation2 + $0x78] sm:$0xff] %vm364, %v789
    %v806 = vlaneseq
    %v807 = vshrl.u32 %v806, 7
    %v808 = vsub.s32 0, %v807
    %v809 = vrot.slane %v551, %v808
    %811 = vbcast.lane.b32.xlu0 %v809, 256
    %v812 = vpop.permute.xlu0 %811
    %s814 = sor.u32 256, 8
    %815 = vbcast.lane.b32.xlu0 %v809, %s814
    %v816 = vpop.permute.xlu0 %815
    %v817 = vlaneseq
    %v818 = vshrl.u32 %v817, 7
    %v819 = vsub.s32 1, %v818
    %v820 = vrot.slane %v551, %v819
    %822 = vbcast.lane.b32.xlu0 %v820, 256
    %v823 = vpop.permute.xlu0 %822
    %s825 = sor.u32 256, 8
    %826 = vbcast.lane.b32.xlu0 %v820, %s825
    %v827 = vpop.permute.xlu0 %826
    %v828 = vlaneseq
    %v829 = vshrl.u32 %v828, 7
    %v830 = vsub.s32 2, %v829
    %v831 = vrot.slane %v551, %v830
    %833 = vbcast.lane.b32.xlu0 %v831, 256
    %v834 = vpop.permute.xlu0 %833
    %s836 = sor.u32 256, 8
    %837 = vbcast.lane.b32.xlu0 %v831, %s836
    %v838 = vpop.permute.xlu0 %837
    %v839 = vlaneseq
    %v840 = vshrl.u32 %v839, 7
    %v841 = vsub.s32 3, %v840
    %v842 = vrot.slane %v551, %v841
    %844 = vbcast.lane.b32.xlu0 %v842, 256
    %v845 = vpop.permute.xlu0 %844
    %s847 = sor.u32 256, 8
    %848 = vbcast.lane.b32.xlu0 %v842, %s847
    %v849 = vpop.permute.xlu0 %848
    %v850 = vlaneseq
    %v851 = vshrl.u32 %v850, 7
    %v852 = vsub.s32 4, %v851
    %v853 = vrot.slane %v551, %v852
    %855 = vbcast.lane.b32.xlu0 %v853, 256
    %v856 = vpop.permute.xlu0 %855
    %s858 = sor.u32 256, 8
    %859 = vbcast.lane.b32.xlu0 %v853, %s858
    %v860 = vpop.permute.xlu0 %859
    %v861 = vlaneseq
    %v862 = vshrl.u32 %v861, 7
    %v863 = vsub.s32 5, %v862
    %v864 = vrot.slane %v551, %v863
    %866 = vbcast.lane.b32.xlu0 %v864, 256
    %v867 = vpop.permute.xlu0 %866
    %s869 = sor.u32 256, 8
    %870 = vbcast.lane.b32.xlu0 %v864, %s869
    %v871 = vpop.permute.xlu0 %870
    %v872 = vlaneseq
    %v873 = vshrl.u32 %v872, 7
    %v874 = vsub.s32 6, %v873
    %v875 = vrot.slane %v551, %v874
    %877 = vbcast.lane.b32.xlu0 %v875, 256
    %v878 = vpop.permute.xlu0 %877
    %s880 = sor.u32 256, 8
    %881 = vbcast.lane.b32.xlu0 %v875, %s880
    %v882 = vpop.permute.xlu0 %881
    %v883 = vlaneseq
    %v884 = vshrl.u32 %v883, 7
    %v885 = vsub.s32 7, %v884
    %v886 = vrot.slane %v551, %v885
    %888 = vbcast.lane.b32.xlu0 %v886, 256
    %v889 = vpop.permute.xlu0 %888
    %s891 = sor.u32 256, 8
    %892 = vbcast.lane.b32.xlu0 %v886, %s891
    %v893 = vpop.permute.xlu0 %892
    %v895 = vcombine.high %v650, %v650
    %v897 = vunpack.c.l.s4 1966171168
    %v898 = vunpack.c.0.s8 %v897
    %v899 = vlaneseq
    %v900 = vshrl.u32 %v899, 7
    %v901 = vsub.s32 %v898, %v900
    %v902 = vrot.slane %v650, %v901
    %v904 = vunpack.c.l.s4 1966171168
    %v905 = vunpack.c.0.s8 %v904
    %v906 = vlaneseq
    %v907 = vshrl.u32 %v906, 7
    %v908 = vsub.s32 %v905, %v907
    %v909 = vrot.slane %v895, %v908
    %v910 = vcombine.high %v902, %v902
    %v911 = vcombine.high %v909, %v909
    %v913 = vunpack.c.l.s4 1966171168
    %v914 = vunpack.c.0.s8 %v913
    %v915 = vlaneseq
    %v916 = vshrl.u32 %v915, 7
    %v917 = vsub.s32 %v914, %v916
    %v918 = vrot.slane %v902, %v917
    %v920 = vunpack.c.l.s4 1966171168
    %v921 = vunpack.c.0.s8 %v920
    %v922 = vlaneseq
    %v923 = vshrl.u32 %v922, 7
    %v924 = vsub.s32 %v921, %v923
    %v925 = vrot.slane %v909, %v924
    %v927 = vunpack.c.l.s4 1966171168
    %v928 = vunpack.c.0.s8 %v927
    %v929 = vlaneseq
    %v930 = vshrl.u32 %v929, 7
    %v931 = vsub.s32 %v928, %v930
    %v932 = vrot.slane %v910, %v931
    %v934 = vunpack.c.l.s4 1966171168
    %v935 = vunpack.c.0.s8 %v934
    %v936 = vlaneseq
    %v937 = vshrl.u32 %v936, 7
    %v938 = vsub.s32 %v935, %v937
    %v939 = vrot.slane %v911, %v938
    %v940 = vcombine.high %v918, %v918
    %v941 = vcombine.high %v925, %v925
    %v942 = vcombine.high %v932, %v932
    %v943 = vcombine.high %v939, %v939
    %v944 = vlaneseq
    %v945 = vshrl.u32 %v944, 7
    %v946 = vsub.s32 0, %v945
    %v947 = vrot.slane %v918, %v946
    %v948 = vlaneseq
    %v949 = vshrl.u32 %v948, 7
    %v950 = vsub.s32 0, %v949
    %v951 = vrot.slane %v932, %v950
    %v952 = vlaneseq
    %v953 = vshrl.u32 %v952, 7
    %v954 = vsub.s32 0, %v953
    %v955 = vrot.slane %v940, %v954
    %v956 = vlaneseq
    %v957 = vshrl.u32 %v956, 7
    %v958 = vsub.s32 0, %v957
    %v959 = vrot.slane %v942, %v958
    %v960 = vlaneseq
    %v961 = vshrl.u32 %v960, 7
    %v962 = vsub.s32 0, %v961
    %v963 = vrot.slane %v925, %v962
    %v964 = vlaneseq
    %v965 = vshrl.u32 %v964, 7
    %v966 = vsub.s32 0, %v965
    %v967 = vrot.slane %v939, %v966
    %v968 = vlaneseq
    %v969 = vshrl.u32 %v968, 7
    %v970 = vsub.s32 0, %v969
    %v971 = vrot.slane %v941, %v970
    %v972 = vlaneseq
    %v973 = vshrl.u32 %v972, 7
    %v974 = vsub.s32 0, %v973
    %v975 = vrot.slane %v943, %v974
    %v984 = vmul.f32 %v812, %v947
    %v985 = vmul.f32 %v816, %v947
    %v986 = vmul.f32 %v823, %v951
    %v987 = vmul.f32 %v827, %v951
    %v988 = vmul.f32 %v834, %v955
    %v989 = vmul.f32 %v838, %v955
    %v990 = vmul.f32 %v845, %v959
    %v991 = vmul.f32 %v849, %v959
    %v992 = vmul.f32 %v856, %v963
    %v993 = vmul.f32 %v860, %v963
    %v994 = vmul.f32 %v867, %v967
    %v995 = vmul.f32 %v871, %v967
    %v996 = vmul.f32 %v878, %v971
    %v997 = vmul.f32 %v882, %v971
    %v998 = vmul.f32 %v889, %v975
    %v999 = vmul.f32 %v893, %v975
    %1000 = vst.msk [vmem:[#allocation3] sm:$0xff] %vm364, %v984
    %1001 = vst.msk [vmem:[#allocation3 + $0x8] sm:$0xff] %vm364, %v985
    %1002 = vst.msk [vmem:[#allocation3 + $0x10] sm:$0xff] %vm364, %v986
    %1003 = vst.msk [vmem:[#allocation3 + $0x18] sm:$0xff] %vm364, %v987
    %1004 = vst.msk [vmem:[#allocation3 + $0x20] sm:$0xff] %vm364, %v988
    %1005 = vst.msk [vmem:[#allocation3 + $0x28] sm:$0xff] %vm364, %v989
    %1006 = vst.msk [vmem:[#allocation3 + $0x30] sm:$0xff] %vm364, %v990
    %1007 = vst.msk [vmem:[#allocation3 + $0x38] sm:$0xff] %vm364, %v991
    %1008 = vst.msk [vmem:[#allocation3 + $0x40] sm:$0xff] %vm364, %v992
    %1009 = vst.msk [vmem:[#allocation3 + $0x48] sm:$0xff] %vm364, %v993
    %1010 = vst.msk [vmem:[#allocation3 + $0x50] sm:$0xff] %vm364, %v994
    %1011 = vst.msk [vmem:[#allocation3 + $0x58] sm:$0xff] %vm364, %v995
    %1012 = vst.msk [vmem:[#allocation3 + $0x60] sm:$0xff] %vm364, %v996
    %1013 = vst.msk [vmem:[#allocation3 + $0x68] sm:$0xff] %vm364, %v997
    %1014 = vst.msk [vmem:[#allocation3 + $0x70] sm:$0xff] %vm364, %v998
    %1015 = vst.msk [vmem:[#allocation3 + $0x78] sm:$0xff] %vm364, %v999
    %v1017 = vcombine.high %v475, %v475
    %v1019 = vunpack.c.l.s4 1966171168
    %v1020 = vunpack.c.0.s8 %v1019
    %v1021 = vlaneseq
    %v1022 = vshrl.u32 %v1021, 7
    %v1023 = vsub.s32 %v1020, %v1022
    %v1024 = vrot.slane %v475, %v1023
    %v1026 = vunpack.c.l.s4 1966171168
    %v1027 = vunpack.c.0.s8 %v1026
    %v1028 = vlaneseq
    %v1029 = vshrl.u32 %v1028, 7
    %v1030 = vsub.s32 %v1027, %v1029
    %v1031 = vrot.slane %v1017, %v1030
    %v1032 = vcombine.high %v1024, %v1024
    %v1033 = vcombine.high %v1031, %v1031
    %v1035 = vunpack.c.l.s4 1966171168
    %v1036 = vunpack.c.0.s8 %v1035
    %v1037 = vlaneseq
    %v1038 = vshrl.u32 %v1037, 7
    %v1039 = vsub.s32 %v1036, %v1038
    %v1040 = vrot.slane %v1024, %v1039
    %v1042 = vunpack.c.l.s4 1966171168
    %v1043 = vunpack.c.0.s8 %v1042
    %v1044 = vlaneseq
    %v1045 = vshrl.u32 %v1044, 7
    %v1046 = vsub.s32 %v1043, %v1045
    %v1047 = vrot.slane %v1031, %v1046
    %v1049 = vunpack.c.l.s4 1966171168
    %v1050 = vunpack.c.0.s8 %v1049
    %v1051 = vlaneseq
    %v1052 = vshrl.u32 %v1051, 7
    %v1053 = vsub.s32 %v1050, %v1052
    %v1054 = vrot.slane %v1032, %v1053
    %v1056 = vunpack.c.l.s4 1966171168
    %v1057 = vunpack.c.0.s8 %v1056
    %v1058 = vlaneseq
    %v1059 = vshrl.u32 %v1058, 7
    %v1060 = vsub.s32 %v1057, %v1059
    %v1061 = vrot.slane %v1033, %v1060
    %v1062 = vcombine.high %v1040, %v1040
    %v1063 = vcombine.high %v1047, %v1047
    %v1064 = vcombine.high %v1054, %v1054
    %v1065 = vcombine.high %v1061, %v1061
    %v1066 = vlaneseq
    %v1067 = vshrl.u32 %v1066, 7
    %v1068 = vsub.s32 0, %v1067
    %v1069 = vrot.slane %v1040, %v1068
    %v1070 = vlaneseq
    %v1071 = vshrl.u32 %v1070, 7
    %v1072 = vsub.s32 0, %v1071
    %v1073 = vrot.slane %v1054, %v1072
    %v1074 = vlaneseq
    %v1075 = vshrl.u32 %v1074, 7
    %v1076 = vsub.s32 0, %v1075
    %v1077 = vrot.slane %v1062, %v1076
    %v1078 = vlaneseq
    %v1079 = vshrl.u32 %v1078, 7
    %v1080 = vsub.s32 0, %v1079
    %v1081 = vrot.slane %v1064, %v1080
    %v1082 = vlaneseq
    %v1083 = vshrl.u32 %v1082, 7
    %v1084 = vsub.s32 0, %v1083
    %v1085 = vrot.slane %v1047, %v1084
    %v1086 = vlaneseq
    %v1087 = vshrl.u32 %v1086, 7
    %v1088 = vsub.s32 0, %v1087
    %v1089 = vrot.slane %v1061, %v1088
    %v1090 = vlaneseq
    %v1091 = vshrl.u32 %v1090, 7
    %v1092 = vsub.s32 0, %v1091
    %v1093 = vrot.slane %v1063, %v1092
    %v1094 = vlaneseq
    %v1095 = vshrl.u32 %v1094, 7
    %v1096 = vsub.s32 0, %v1095
    %v1097 = vrot.slane %v1065, %v1096
    %v1106 = vmul.f32 %v1069, %v648
    %v1107 = vmul.f32 %v1069, %v649
    %v1108 = vmul.f32 %v1073, %v648
    %v1109 = vmul.f32 %v1073, %v649
    %v1110 = vmul.f32 %v1077, %v648
    %v1111 = vmul.f32 %v1077, %v649
    %v1112 = vmul.f32 %v1081, %v648
    %v1113 = vmul.f32 %v1081, %v649
    %v1114 = vmul.f32 %v1085, %v648
    %v1115 = vmul.f32 %v1085, %v649
    %v1116 = vmul.f32 %v1089, %v648
    %v1117 = vmul.f32 %v1089, %v649
    %v1118 = vmul.f32 %v1093, %v648
    %v1119 = vmul.f32 %v1093, %v649
    %v1120 = vmul.f32 %v1097, %v648
    %v1121 = vmul.f32 %v1097, %v649
    %v1122 = vmul.f32 %v1106, 1.442695
    %v1123 = vpow.pop %v1122
    %v1124 = vmul.f32 %v1107, 1.442695
    %v1125 = vpow.pop %v1124
    %v1126 = vmul.f32 %v1108, 1.442695
    %v1127 = vpow.pop %v1126
    %v1128 = vmul.f32 %v1109, 1.442695
    %v1129 = vpow.pop %v1128
    %v1130 = vmul.f32 %v1110, 1.442695
    %v1131 = vpow.pop %v1130
    %v1132 = vmul.f32 %v1111, 1.442695
    %v1133 = vpow.pop %v1132
    %v1134 = vmul.f32 %v1112, 1.442695
    %v1135 = vpow.pop %v1134
    %v1136 = vmul.f32 %v1113, 1.442695
    %v1137 = vpow.pop %v1136
    %v1138 = vmul.f32 %v1114, 1.442695
    %v1139 = vpow.pop %v1138
    %v1140 = vmul.f32 %v1115, 1.442695
    %v1141 = vpow.pop %v1140
    %v1142 = vmul.f32 %v1116, 1.442695
    %v1143 = vpow.pop %v1142
    %v1144 = vmul.f32 %v1117, 1.442695
    %v1145 = vpow.pop %v1144
    %v1146 = vmul.f32 %v1118, 1.442695
    %v1147 = vpow.pop %v1146
    %v1148 = vmul.f32 %v1119, 1.442695
    %v1149 = vpow.pop %v1148
    %v1150 = vmul.f32 %v1120, 1.442695
    %v1151 = vpow.pop %v1150
    %v1152 = vmul.f32 %v1121, 1.442695
    %v1153 = vpow.pop %v1152
    %s1154 = scalar_lea.vmem [#allocation2], 128
    %1155 = vst.msk [vmem:[%s1154] sm:$0xff] %vm364, %v1123
    %1156 = vst.msk [vmem:[%s1154 + $0x8] sm:$0xff] %vm364, %v1125
    %1157 = vst.msk [vmem:[%s1154 + $0x10] sm:$0xff] %vm364, %v1127
    %1158 = vst.msk [vmem:[%s1154 + $0x18] sm:$0xff] %vm364, %v1129
    %1159 = vst.msk [vmem:[%s1154 + $0x20] sm:$0xff] %vm364, %v1131
    %1160 = vst.msk [vmem:[%s1154 + $0x28] sm:$0xff] %vm364, %v1133
    %1161 = vst.msk [vmem:[%s1154 + $0x30] sm:$0xff] %vm364, %v1135
    %1162 = vst.msk [vmem:[%s1154 + $0x38] sm:$0xff] %vm364, %v1137
    %1163 = vst.msk [vmem:[%s1154 + $0x40] sm:$0xff] %vm364, %v1139
    %1164 = vst.msk [vmem:[%s1154 + $0x48] sm:$0xff] %vm364, %v1141
    %1165 = vst.msk [vmem:[%s1154 + $0x50] sm:$0xff] %vm364, %v1143
    %1166 = vst.msk [vmem:[%s1154 + $0x58] sm:$0xff] %vm364, %v1145
    %1167 = vst.msk [vmem:[%s1154 + $0x60] sm:$0xff] %vm364, %v1147
    %1168 = vst.msk [vmem:[%s1154 + $0x68] sm:$0xff] %vm364, %v1149
    %1169 = vst.msk [vmem:[%s1154 + $0x70] sm:$0xff] %vm364, %v1151
    %1170 = vst.msk [vmem:[%s1154 + $0x78] sm:$0xff] %vm364, %v1153
    %v1171 = vlaneseq
    %v1172 = vshrl.u32 %v1171, 7
    %v1173 = vsub.s32 0, %v1172
    %v1174 = vrot.slane %v556, %v1173
    %1176 = vbcast.lane.b32.xlu0 %v1174, 256
    %v1177 = vpop.permute.xlu0 %1176
    %s1179 = sor.u32 256, 8
    %1180 = vbcast.lane.b32.xlu0 %v1174, %s1179
    %v1181 = vpop.permute.xlu0 %1180
    %v1182 = vlaneseq
    %v1183 = vshrl.u32 %v1182, 7
    %v1184 = vsub.s32 1, %v1183
    %v1185 = vrot.slane %v556, %v1184
    %1187 = vbcast.lane.b32.xlu0 %v1185, 256
    %v1188 = vpop.permute.xlu0 %1187
    %s1190 = sor.u32 256, 8
    %1191 = vbcast.lane.b32.xlu0 %v1185, %s1190
    %v1192 = vpop.permute.xlu0 %1191
    %v1193 = vlaneseq
    %v1194 = vshrl.u32 %v1193, 7
    %v1195 = vsub.s32 2, %v1194
    %v1196 = vrot.slane %v556, %v1195
    %1198 = vbcast.lane.b32.xlu0 %v1196, 256
    %v1199 = vpop.permute.xlu0 %1198
    %s1201 = sor.u32 256, 8
    %1202 = vbcast.lane.b32.xlu0 %v1196, %s1201
    %v1203 = vpop.permute.xlu0 %1202
    %v1204 = vlaneseq
    %v1205 = vshrl.u32 %v1204, 7
    %v1206 = vsub.s32 3, %v1205
    %v1207 = vrot.slane %v556, %v1206
    %1209 = vbcast.lane.b32.xlu0 %v1207, 256
    %v1210 = vpop.permute.xlu0 %1209
    %s1212 = sor.u32 256, 8
    %1213 = vbcast.lane.b32.xlu0 %v1207, %s1212
    %v1214 = vpop.permute.xlu0 %1213
    %v1215 = vlaneseq
    %v1216 = vshrl.u32 %v1215, 7
    %v1217 = vsub.s32 4, %v1216
    %v1218 = vrot.slane %v556, %v1217
    %1220 = vbcast.lane.b32.xlu0 %v1218, 256
    %v1221 = vpop.permute.xlu0 %1220
    %s1223 = sor.u32 256, 8
    %1224 = vbcast.lane.b32.xlu0 %v1218, %s1223
    %v1225 = vpop.permute.xlu0 %1224
    %v1226 = vlaneseq
    %v1227 = vshrl.u32 %v1226, 7
    %v1228 = vsub.s32 5, %v1227
    %v1229 = vrot.slane %v556, %v1228
    %1231 = vbcast.lane.b32.xlu0 %v1229, 256
    %v1232 = vpop.permute.xlu0 %1231
    %s1234 = sor.u32 256, 8
    %1235 = vbcast.lane.b32.xlu0 %v1229, %s1234
    %v1236 = vpop.permute.xlu0 %1235
    %v1237 = vlaneseq
    %v1238 = vshrl.u32 %v1237, 7
    %v1239 = vsub.s32 6, %v1238
    %v1240 = vrot.slane %v556, %v1239
    %1242 = vbcast.lane.b32.xlu0 %v1240, 256
    %v1243 = vpop.permute.xlu0 %1242
    %s1245 = sor.u32 256, 8
    %1246 = vbcast.lane.b32.xlu0 %v1240, %s1245
    %v1247 = vpop.permute.xlu0 %1246
    %v1248 = vlaneseq
    %v1249 = vshrl.u32 %v1248, 7
    %v1250 = vsub.s32 7, %v1249
    %v1251 = vrot.slane %v556, %v1250
    %1253 = vbcast.lane.b32.xlu0 %v1251, 256
    %v1254 = vpop.permute.xlu0 %1253
    %s1256 = sor.u32 256, 8
    %1257 = vbcast.lane.b32.xlu0 %v1251, %s1256
    %v1258 = vpop.permute.xlu0 %1257
    %v1260 = vcombine.high %v651, %v651
    %v1262 = vunpack.c.l.s4 1966171168
    %v1263 = vunpack.c.0.s8 %v1262
    %v1264 = vlaneseq
    %v1265 = vshrl.u32 %v1264, 7
    %v1266 = vsub.s32 %v1263, %v1265
    %v1267 = vrot.slane %v651, %v1266
    %v1269 = vunpack.c.l.s4 1966171168
    %v1270 = vunpack.c.0.s8 %v1269
    %v1271 = vlaneseq
    %v1272 = vshrl.u32 %v1271, 7
    %v1273 = vsub.s32 %v1270, %v1272
    %v1274 = vrot.slane %v1260, %v1273
    %v1275 = vcombine.high %v1267, %v1267
    %v1276 = vcombine.high %v1274, %v1274
    %v1278 = vunpack.c.l.s4 1966171168
    %v1279 = vunpack.c.0.s8 %v1278
    %v1280 = vlaneseq
    %v1281 = vshrl.u32 %v1280, 7
    %v1282 = vsub.s32 %v1279, %v1281
    %v1283 = vrot.slane %v1267, %v1282
    %v1285 = vunpack.c.l.s4 1966171168
    %v1286 = vunpack.c.0.s8 %v1285
    %v1287 = vlaneseq
    %v1288 = vshrl.u32 %v1287, 7
    %v1289 = vsub.s32 %v1286, %v1288
    %v1290 = vrot.slane %v1274, %v1289
    %v1292 = vunpack.c.l.s4 1966171168
    %v1293 = vunpack.c.0.s8 %v1292
    %v1294 = vlaneseq
    %v1295 = vshrl.u32 %v1294, 7
    %v1296 = vsub.s32 %v1293, %v1295
    %v1297 = vrot.slane %v1275, %v1296
    %v1299 = vunpack.c.l.s4 1966171168
    %v1300 = vunpack.c.0.s8 %v1299
    %v1301 = vlaneseq
    %v1302 = vshrl.u32 %v1301, 7
    %v1303 = vsub.s32 %v1300, %v1302
    %v1304 = vrot.slane %v1276, %v1303
    %v1305 = vcombine.high %v1283, %v1283
    %v1306 = vcombine.high %v1290, %v1290
    %v1307 = vcombine.high %v1297, %v1297
    %v1308 = vcombine.high %v1304, %v1304
    %v1309 = vlaneseq
    %v1310 = vshrl.u32 %v1309, 7
    %v1311 = vsub.s32 0, %v1310
    %v1312 = vrot.slane %v1283, %v1311
    %v1313 = vlaneseq
    %v1314 = vshrl.u32 %v1313, 7
    %v1315 = vsub.s32 0, %v1314
    %v1316 = vrot.slane %v1297, %v1315
    %v1317 = vlaneseq
    %v1318 = vshrl.u32 %v1317, 7
    %v1319 = vsub.s32 0, %v1318
    %v1320 = vrot.slane %v1305, %v1319
    %v1321 = vlaneseq
    %v1322 = vshrl.u32 %v1321, 7
    %v1323 = vsub.s32 0, %v1322
    %v1324 = vrot.slane %v1307, %v1323
    %v1325 = vlaneseq
    %v1326 = vshrl.u32 %v1325, 7
    %v1327 = vsub.s32 0, %v1326
    %v1328 = vrot.slane %v1290, %v1327
    %v1329 = vlaneseq
    %v1330 = vshrl.u32 %v1329, 7
    %v1331 = vsub.s32 0, %v1330
    %v1332 = vrot.slane %v1304, %v1331
    %v1333 = vlaneseq
    %v1334 = vshrl.u32 %v1333, 7
    %v1335 = vsub.s32 0, %v1334
    %v1336 = vrot.slane %v1306, %v1335
    %v1337 = vlaneseq
    %v1338 = vshrl.u32 %v1337, 7
    %v1339 = vsub.s32 0, %v1338
    %v1340 = vrot.slane %v1308, %v1339
    %v1349 = vmul.f32 %v1177, %v1312
    %v1350 = vmul.f32 %v1181, %v1312
    %v1351 = vmul.f32 %v1188, %v1316
    %v1352 = vmul.f32 %v1192, %v1316
    %v1353 = vmul.f32 %v1199, %v1320
    %v1354 = vmul.f32 %v1203, %v1320
    %v1355 = vmul.f32 %v1210, %v1324
    %v1356 = vmul.f32 %v1214, %v1324
    %v1357 = vmul.f32 %v1221, %v1328
    %v1358 = vmul.f32 %v1225, %v1328
    %v1359 = vmul.f32 %v1232, %v1332
    %v1360 = vmul.f32 %v1236, %v1332
    %v1361 = vmul.f32 %v1243, %v1336
    %v1362 = vmul.f32 %v1247, %v1336
    %v1363 = vmul.f32 %v1254, %v1340
    %v1364 = vmul.f32 %v1258, %v1340
    %s1365 = scalar_lea.vmem [#allocation3], 128
    %1366 = vst.msk [vmem:[%s1365] sm:$0xff] %vm364, %v1349
    %1367 = vst.msk [vmem:[%s1365 + $0x8] sm:$0xff] %vm364, %v1350
    %1368 = vst.msk [vmem:[%s1365 + $0x10] sm:$0xff] %vm364, %v1351
    %1369 = vst.msk [vmem:[%s1365 + $0x18] sm:$0xff] %vm364, %v1352
    %1370 = vst.msk [vmem:[%s1365 + $0x20] sm:$0xff] %vm364, %v1353
    %1371 = vst.msk [vmem:[%s1365 + $0x28] sm:$0xff] %vm364, %v1354
    %1372 = vst.msk [vmem:[%s1365 + $0x30] sm:$0xff] %vm364, %v1355
    %1373 = vst.msk [vmem:[%s1365 + $0x38] sm:$0xff] %vm364, %v1356
    %1374 = vst.msk [vmem:[%s1365 + $0x40] sm:$0xff] %vm364, %v1357
    %1375 = vst.msk [vmem:[%s1365 + $0x48] sm:$0xff] %vm364, %v1358
    %1376 = vst.msk [vmem:[%s1365 + $0x50] sm:$0xff] %vm364, %v1359
    %1377 = vst.msk [vmem:[%s1365 + $0x58] sm:$0xff] %vm364, %v1360
    %1378 = vst.msk [vmem:[%s1365 + $0x60] sm:$0xff] %vm364, %v1361
    %1379 = vst.msk [vmem:[%s1365 + $0x68] sm:$0xff] %vm364, %v1362
    %1380 = vst.msk [vmem:[%s1365 + $0x70] sm:$0xff] %vm364, %v1363
    %1381 = vst.msk [vmem:[%s1365 + $0x78] sm:$0xff] %vm364, %v1364
    loop: start=0, step=1, limit=8
    $region62: #{mamba_model_forward.2} parent=1 // loop_pre_header
      _
    $region63: #{mamba_model_forward.2} parent=1 // loop_header
      %s1383 = sphi 0, %s1387
      %p1384 = scmp.ge.s32.totalorder %s1383, 8
      %v1388 = vphi 0.0, %v1407
      %v1389 = vphi 0.0, %v1408
      %v1390 = vphi 0.0, %v1409
      %v1391 = vphi 0.0, %v1410
    $region64: #{mamba_model_forward.2} parent=1 // loop_header_branch
      %1386 = sbr.rel (%p1384) target = $region68
    $region65: #{mamba_model_forward.2} parent=1 // loop_body
      %s1392 = smul.u32 %s1383, 16
      %s1393 = scalar_lea.vmem [#allocation2], %s1392
      %v1394 = vld [vmem:[%s1393] sm:$0xff]
      %v1395 = vld [vmem:[%s1393 + $0x8] sm:$0xff]
      %v1396 = vld [vmem:[%s1393 + $0x80] sm:$0xff]
      %v1397 = vld [vmem:[%s1393 + $0x88] sm:$0xff]
      %s1398 = scalar_lea.vmem [#allocation3], %s1392
      %v1399 = vld [vmem:[%s1398] sm:$0xff]
      %v1400 = vld [vmem:[%s1398 + $0x8] sm:$0xff]
      %v1401 = vld [vmem:[%s1398 + $0x80] sm:$0xff]
      %v1402 = vld [vmem:[%s1398 + $0x88] sm:$0xff]
      %v1403 = vmul.f32 %v1394, %v1388
      %v1404 = vmul.f32 %v1395, %v1389
      %v1405 = vmul.f32 %v1396, %v1390
      %v1406 = vmul.f32 %v1397, %v1391
      %v1407 = vadd.f32 %v1403, %v1399
      %v1408 = vadd.f32 %v1404, %v1400
      %v1409 = vadd.f32 %v1405, %v1401
      %v1410 = vadd.f32 %v1406, %v1402
      %s1411 = scalar_lea.vmem [#allocation4], %s1392
      %1412 = vst.msk [vmem:[%s1411] sm:$0xff] %vm364, %v1407
      %1413 = vst.msk [vmem:[%s1411 + $0x8] sm:$0xff] %vm364, %v1408
      %1414 = vst.msk [vmem:[%s1411 + $0x80] sm:$0xff] %vm364, %v1409
      %1415 = vst.msk [vmem:[%s1411 + $0x88] sm:$0xff] %vm364, %v1410
    $region66: #{mamba_model_forward.2} parent=1 // loop_footer
      %s1387 = sadd.s32 1, %s1383
    $region67: #{mamba_model_forward.2} parent=1 // loop_footer_branch
      %1382 = sbr.rel target = $region63
    $region68: #{mamba_model_forward.2} parent=1 // loop_exit
      _
    %v1416 = vld [vmem:[#allocation4] sm:$0xff]
    %v1417 = vld [vmem:[#allocation4 + $0x8] sm:$0xff]
    %v1418 = vld [vmem:[#allocation4 + $0x10] sm:$0xff]
    %v1419 = vld [vmem:[#allocation4 + $0x18] sm:$0xff]
    %v1420 = vld [vmem:[#allocation4 + $0x20] sm:$0xff]
    %v1421 = vld [vmem:[#allocation4 + $0x28] sm:$0xff]
    %v1422 = vld [vmem:[#allocation4 + $0x30] sm:$0xff]
    %v1423 = vld [vmem:[#allocation4 + $0x38] sm:$0xff]
    %v1424 = vld [vmem:[#allocation4 + $0x40] sm:$0xff]
    %v1425 = vld [vmem:[#allocation4 + $0x48] sm:$0xff]
    %v1426 = vld [vmem:[#allocation4 + $0x50] sm:$0xff]
    %v1427 = vld [vmem:[#allocation4 + $0x58] sm:$0xff]
    %v1428 = vld [vmem:[#allocation4 + $0x60] sm:$0xff]
    %v1429 = vld [vmem:[#allocation4 + $0x68] sm:$0xff]
    %v1430 = vld [vmem:[#allocation4 + $0x70] sm:$0xff]
    %v1431 = vld [vmem:[#allocation4 + $0x78] sm:$0xff]
    %v1432 = vlaneseq
    %v1433 = vshrl.u32 %v1432, 7
    %v1434 = vsub.s32 0, %v1433
    %v1435 = vrot.slane %v634, %v1434
    %1437 = vbcast.lane.b32.xlu0 %v1435, 256
    %v1438 = vpop.permute.xlu0 %1437
    %s1440 = sor.u32 256, 8
    %1441 = vbcast.lane.b32.xlu0 %v1435, %s1440
    %v1442 = vpop.permute.xlu0 %1441
    %v1443 = vlaneseq
    %v1444 = vshrl.u32 %v1443, 7
    %v1445 = vsub.s32 1, %v1444
    %v1446 = vrot.slane %v634, %v1445
    %1448 = vbcast.lane.b32.xlu0 %v1446, 256
    %v1449 = vpop.permute.xlu0 %1448
    %s1451 = sor.u32 256, 8
    %1452 = vbcast.lane.b32.xlu0 %v1446, %s1451
    %v1453 = vpop.permute.xlu0 %1452
    %v1454 = vlaneseq
    %v1455 = vshrl.u32 %v1454, 7
    %v1456 = vsub.s32 2, %v1455
    %v1457 = vrot.slane %v634, %v1456
    %1459 = vbcast.lane.b32.xlu0 %v1457, 256
    %v1460 = vpop.permute.xlu0 %1459
    %s1462 = sor.u32 256, 8
    %1463 = vbcast.lane.b32.xlu0 %v1457, %s1462
    %v1464 = vpop.permute.xlu0 %1463
    %v1465 = vlaneseq
    %v1466 = vshrl.u32 %v1465, 7
    %v1467 = vsub.s32 3, %v1466
    %v1468 = vrot.slane %v634, %v1467
    %1470 = vbcast.lane.b32.xlu0 %v1468, 256
    %v1471 = vpop.permute.xlu0 %1470
    %s1473 = sor.u32 256, 8
    %1474 = vbcast.lane.b32.xlu0 %v1468, %s1473
    %v1475 = vpop.permute.xlu0 %1474
    %v1476 = vlaneseq
    %v1477 = vshrl.u32 %v1476, 7
    %v1478 = vsub.s32 4, %v1477
    %v1479 = vrot.slane %v634, %v1478
    %1481 = vbcast.lane.b32.xlu0 %v1479, 256
    %v1482 = vpop.permute.xlu0 %1481
    %s1484 = sor.u32 256, 8
    %1485 = vbcast.lane.b32.xlu0 %v1479, %s1484
    %v1486 = vpop.permute.xlu0 %1485
    %v1487 = vlaneseq
    %v1488 = vshrl.u32 %v1487, 7
    %v1489 = vsub.s32 5, %v1488
    %v1490 = vrot.slane %v634, %v1489
    %1492 = vbcast.lane.b32.xlu0 %v1490, 256
    %v1493 = vpop.permute.xlu0 %1492
    %s1495 = sor.u32 256, 8
    %1496 = vbcast.lane.b32.xlu0 %v1490, %s1495
    %v1497 = vpop.permute.xlu0 %1496
    %v1498 = vlaneseq
    %v1499 = vshrl.u32 %v1498, 7
    %v1500 = vsub.s32 6, %v1499
    %v1501 = vrot.slane %v634, %v1500
    %1503 = vbcast.lane.b32.xlu0 %v1501, 256
    %v1504 = vpop.permute.xlu0 %1503
    %s1506 = sor.u32 256, 8
    %1507 = vbcast.lane.b32.xlu0 %v1501, %s1506
    %v1508 = vpop.permute.xlu0 %1507
    %v1509 = vlaneseq
    %v1510 = vshrl.u32 %v1509, 7
    %v1511 = vsub.s32 7, %v1510
    %v1512 = vrot.slane %v634, %v1511
    %1514 = vbcast.lane.b32.xlu0 %v1512, 256
    %v1515 = vpop.permute.xlu0 %1514
    %s1517 = sor.u32 256, 8
    %1518 = vbcast.lane.b32.xlu0 %v1512, %s1517
    %v1519 = vpop.permute.xlu0 %1518
    %v1520 = vmul.f32 %v1438, %v1416
    %v1521 = vmul.f32 %v1442, %v1417
    %v1522 = vmul.f32 %v1449, %v1418
    %v1523 = vmul.f32 %v1453, %v1419
    %v1524 = vmul.f32 %v1460, %v1420
    %v1525 = vmul.f32 %v1464, %v1421
    %v1526 = vmul.f32 %v1471, %v1422
    %v1527 = vmul.f32 %v1475, %v1423
    %v1528 = vmul.f32 %v1482, %v1424
    %v1529 = vmul.f32 %v1486, %v1425
    %v1530 = vmul.f32 %v1493, %v1426
    %v1531 = vmul.f32 %v1497, %v1427
    %v1532 = vmul.f32 %v1504, %v1428
    %v1533 = vmul.f32 %v1508, %v1429
    %v1534 = vmul.f32 %v1515, %v1430
    %v1535 = vmul.f32 %v1519, %v1431
    %v1536 = vsel %vm364, %v1520, 0.0
    %v1537 = vsel %vm364, %v1521, 0.0
    %v1538 = vadd.f32 %v1536, %v1537
    %v1539 = vrot.slane %v1538, 4
    %v1540 = vadd.f32 %v1538, %v1539
    %v1541 = vrot.slane %v1540, 2
    %v1542 = vadd.f32 %v1540, %v1541
    %v1543 = vrot.slane %v1542, 1
    %v1544 = vadd.f32 %v1542, %v1543
    %v1545 = vsel %vm364, %v1522, 0.0
    %v1546 = vsel %vm364, %v1523, 0.0
    %v1547 = vadd.f32 %v1545, %v1546
    %v1548 = vrot.slane %v1547, 4
    %v1549 = vadd.f32 %v1547, %v1548
    %v1550 = vrot.slane %v1549, 2
    %v1551 = vadd.f32 %v1549, %v1550
    %v1552 = vrot.slane %v1551, 1
    %v1553 = vadd.f32 %v1551, %v1552
    %v1554 = vsel %vm364, %v1524, 0.0
    %v1555 = vsel %vm364, %v1525, 0.0
    %v1556 = vadd.f32 %v1554, %v1555
    %v1557 = vrot.slane %v1556, 4
    %v1558 = vadd.f32 %v1556, %v1557
    %v1559 = vrot.slane %v1558, 2
    %v1560 = vadd.f32 %v1558, %v1559
    %v1561 = vrot.slane %v1560, 1
    %v1562 = vadd.f32 %v1560, %v1561
    %v1563 = vsel %vm364, %v1526, 0.0
    %v1564 = vsel %vm364, %v1527, 0.0
    %v1565 = vadd.f32 %v1563, %v1564
    %v1566 = vrot.slane %v1565, 4
    %v1567 = vadd.f32 %v1565, %v1566
    %v1568 = vrot.slane %v1567, 2
    %v1569 = vadd.f32 %v1567, %v1568
    %v1570 = vrot.slane %v1569, 1
    %v1571 = vadd.f32 %v1569, %v1570
    %v1572 = vsel %vm364, %v1528, 0.0
    %v1573 = vsel %vm364, %v1529, 0.0
    %v1574 = vadd.f32 %v1572, %v1573
    %v1575 = vrot.slane %v1574, 4
    %v1576 = vadd.f32 %v1574, %v1575
    %v1577 = vrot.slane %v1576, 2
    %v1578 = vadd.f32 %v1576, %v1577
    %v1579 = vrot.slane %v1578, 1
    %v1580 = vadd.f32 %v1578, %v1579
    %v1581 = vsel %vm364, %v1530, 0.0
    %v1582 = vsel %vm364, %v1531, 0.0
    %v1583 = vadd.f32 %v1581, %v1582
    %v1584 = vrot.slane %v1583, 4
    %v1585 = vadd.f32 %v1583, %v1584
    %v1586 = vrot.slane %v1585, 2
    %v1587 = vadd.f32 %v1585, %v1586
    %v1588 = vrot.slane %v1587, 1
    %v1589 = vadd.f32 %v1587, %v1588
    %v1590 = vsel %vm364, %v1532, 0.0
    %v1591 = vsel %vm364, %v1533, 0.0
    %v1592 = vadd.f32 %v1590, %v1591
    %v1593 = vrot.slane %v1592, 4
    %v1594 = vadd.f32 %v1592, %v1593
    %v1595 = vrot.slane %v1594, 2
    %v1596 = vadd.f32 %v1594, %v1595
    %v1597 = vrot.slane %v1596, 1
    %v1598 = vadd.f32 %v1596, %v1597
    %v1599 = vsel %vm364, %v1534, 0.0
    %v1600 = vsel %vm364, %v1535, 0.0
    %v1601 = vadd.f32 %v1599, %v1600
    %v1602 = vrot.slane %v1601, 4
    %v1603 = vadd.f32 %v1601, %v1602
    %v1604 = vrot.slane %v1603, 2
    %v1605 = vadd.f32 %v1603, %v1604
    %v1606 = vrot.slane %v1605, 1
    %v1607 = vadd.f32 %v1605, %v1606
    %s1608 = scalar_lea.vmem [#allocation4], 128
    %v1609 = vld [vmem:[%s1608] sm:$0xff]
    %v1610 = vld [vmem:[%s1608 + $0x8] sm:$0xff]
    %v1611 = vld [vmem:[%s1608 + $0x10] sm:$0xff]
    %v1612 = vld [vmem:[%s1608 + $0x18] sm:$0xff]
    %v1613 = vld [vmem:[%s1608 + $0x20] sm:$0xff]
    %v1614 = vld [vmem:[%s1608 + $0x28] sm:$0xff]
    %v1615 = vld [vmem:[%s1608 + $0x30] sm:$0xff]
    %v1616 = vld [vmem:[%s1608 + $0x38] sm:$0xff]
    %v1617 = vld [vmem:[%s1608 + $0x40] sm:$0xff]
    %v1618 = vld [vmem:[%s1608 + $0x48] sm:$0xff]
    %v1619 = vld [vmem:[%s1608 + $0x50] sm:$0xff]
    %v1620 = vld [vmem:[%s1608 + $0x58] sm:$0xff]
    %v1621 = vld [vmem:[%s1608 + $0x60] sm:$0xff]
    %v1622 = vld [vmem:[%s1608 + $0x68] sm:$0xff]
    %v1623 = vld [vmem:[%s1608 + $0x70] sm:$0xff]
    %v1624 = vld [vmem:[%s1608 + $0x78] sm:$0xff]
    %v1625 = vlaneseq
    %v1626 = vshrl.u32 %v1625, 7
    %v1627 = vsub.s32 0, %v1626
    %v1628 = vrot.slane %v639, %v1627
    %1630 = vbcast.lane.b32.xlu0 %v1628, 256
    %v1631 = vpop.permute.xlu0 %1630
    %s1633 = sor.u32 256, 8
    %1634 = vbcast.lane.b32.xlu0 %v1628, %s1633
    %v1635 = vpop.permute.xlu0 %1634
    %v1636 = vlaneseq
    %v1637 = vshrl.u32 %v1636, 7
    %v1638 = vsub.s32 1, %v1637
    %v1639 = vrot.slane %v639, %v1638
    %1641 = vbcast.lane.b32.xlu0 %v1639, 256
    %v1642 = vpop.permute.xlu0 %1641
    %s1644 = sor.u32 256, 8
    %1645 = vbcast.lane.b32.xlu0 %v1639, %s1644
    %v1646 = vpop.permute.xlu0 %1645
    %v1647 = vlaneseq
    %v1648 = vshrl.u32 %v1647, 7
    %v1649 = vsub.s32 2, %v1648
    %v1650 = vrot.slane %v639, %v1649
    %1652 = vbcast.lane.b32.xlu0 %v1650, 256
    %v1653 = vpop.permute.xlu0 %1652
    %s1655 = sor.u32 256, 8
    %1656 = vbcast.lane.b32.xlu0 %v1650, %s1655
    %v1657 = vpop.permute.xlu0 %1656
    %v1658 = vlaneseq
    %v1659 = vshrl.u32 %v1658, 7
    %v1660 = vsub.s32 3, %v1659
    %v1661 = vrot.slane %v639, %v1660
    %1663 = vbcast.lane.b32.xlu0 %v1661, 256
    %v1664 = vpop.permute.xlu0 %1663
    %s1666 = sor.u32 256, 8
    %1667 = vbcast.lane.b32.xlu0 %v1661, %s1666
    %v1668 = vpop.permute.xlu0 %1667
    %v1669 = vlaneseq
    %v1670 = vshrl.u32 %v1669, 7
    %v1671 = vsub.s32 4, %v1670
    %v1672 = vrot.slane %v639, %v1671
    %1674 = vbcast.lane.b32.xlu0 %v1672, 256
    %v1675 = vpop.permute.xlu0 %1674
    %s1677 = sor.u32 256, 8
    %1678 = vbcast.lane.b32.xlu0 %v1672, %s1677
    %v1679 = vpop.permute.xlu0 %1678
    %v1680 = vlaneseq
    %v1681 = vshrl.u32 %v1680, 7
    %v1682 = vsub.s32 5, %v1681
    %v1683 = vrot.slane %v639, %v1682
    %1685 = vbcast.lane.b32.xlu0 %v1683, 256
    %v1686 = vpop.permute.xlu0 %1685
    %s1688 = sor.u32 256, 8
    %1689 = vbcast.lane.b32.xlu0 %v1683, %s1688
    %v1690 = vpop.permute.xlu0 %1689
    %v1691 = vlaneseq
    %v1692 = vshrl.u32 %v1691, 7
    %v1693 = vsub.s32 6, %v1692
    %v1694 = vrot.slane %v639, %v1693
    %1696 = vbcast.lane.b32.xlu0 %v1694, 256
    %v1697 = vpop.permute.xlu0 %1696
    %s1699 = sor.u32 256, 8
    %1700 = vbcast.lane.b32.xlu0 %v1694, %s1699
    %v1701 = vpop.permute.xlu0 %1700
    %v1702 = vlaneseq
    %v1703 = vshrl.u32 %v1702, 7
    %v1704 = vsub.s32 7, %v1703
    %v1705 = vrot.slane %v639, %v1704
    %1707 = vbcast.lane.b32.xlu0 %v1705, 256
    %v1708 = vpop.permute.xlu0 %1707
    %s1710 = sor.u32 256, 8
    %1711 = vbcast.lane.b32.xlu0 %v1705, %s1710
    %v1712 = vpop.permute.xlu0 %1711
    %v1713 = vmul.f32 %v1631, %v1609
    %v1714 = vmul.f32 %v1635, %v1610
    %v1715 = vmul.f32 %v1642, %v1611
    %v1716 = vmul.f32 %v1646, %v1612
    %v1717 = vmul.f32 %v1653, %v1613
    %v1718 = vmul.f32 %v1657, %v1614
    %v1719 = vmul.f32 %v1664, %v1615
    %v1720 = vmul.f32 %v1668, %v1616
    %v1721 = vmul.f32 %v1675, %v1617
    %v1722 = vmul.f32 %v1679, %v1618
    %v1723 = vmul.f32 %v1686, %v1619
    %v1724 = vmul.f32 %v1690, %v1620
    %v1725 = vmul.f32 %v1697, %v1621
    %v1726 = vmul.f32 %v1701, %v1622
    %v1727 = vmul.f32 %v1708, %v1623
    %v1728 = vmul.f32 %v1712, %v1624
    %v1729 = vsel %vm364, %v1713, 0.0
    %v1730 = vsel %vm364, %v1714, 0.0
    %v1731 = vadd.f32 %v1729, %v1730
    %v1732 = vrot.slane %v1731, 4
    %v1733 = vadd.f32 %v1731, %v1732
    %v1734 = vrot.slane %v1733, 2
    %v1735 = vadd.f32 %v1733, %v1734
    %v1736 = vrot.slane %v1735, 1
    %v1737 = vadd.f32 %v1735, %v1736
    %v1738 = vsel %vm364, %v1715, 0.0
    %v1739 = vsel %vm364, %v1716, 0.0
    %v1740 = vadd.f32 %v1738, %v1739
    %v1741 = vrot.slane %v1740, 4
    %v1742 = vadd.f32 %v1740, %v1741
    %v1743 = vrot.slane %v1742, 2
    %v1744 = vadd.f32 %v1742, %v1743
    %v1745 = vrot.slane %v1744, 1
    %v1746 = vadd.f32 %v1744, %v1745
    %v1747 = vsel %vm364, %v1717, 0.0
    %v1748 = vsel %vm364, %v1718, 0.0
    %v1749 = vadd.f32 %v1747, %v1748
    %v1750 = vrot.slane %v1749, 4
    %v1751 = vadd.f32 %v1749, %v1750
    %v1752 = vrot.slane %v1751, 2
    %v1753 = vadd.f32 %v1751, %v1752
    %v1754 = vrot.slane %v1753, 1
    %v1755 = vadd.f32 %v1753, %v1754
    %v1756 = vsel %vm364, %v1719, 0.0
    %v1757 = vsel %vm364, %v1720, 0.0
    %v1758 = vadd.f32 %v1756, %v1757
    %v1759 = vrot.slane %v1758, 4
    %v1760 = vadd.f32 %v1758, %v1759
    %v1761 = vrot.slane %v1760, 2
    %v1762 = vadd.f32 %v1760, %v1761
    %v1763 = vrot.slane %v1762, 1
    %v1764 = vadd.f32 %v1762, %v1763
    %v1765 = vsel %vm364, %v1721, 0.0
    %v1766 = vsel %vm364, %v1722, 0.0
    %v1767 = vadd.f32 %v1765, %v1766
    %v1768 = vrot.slane %v1767, 4
    %v1769 = vadd.f32 %v1767, %v1768
    %v1770 = vrot.slane %v1769, 2
    %v1771 = vadd.f32 %v1769, %v1770
    %v1772 = vrot.slane %v1771, 1
    %v1773 = vadd.f32 %v1771, %v1772
    %v1774 = vsel %vm364, %v1723, 0.0
    %v1775 = vsel %vm364, %v1724, 0.0
    %v1776 = vadd.f32 %v1774, %v1775
    %v1777 = vrot.slane %v1776, 4
    %v1778 = vadd.f32 %v1776, %v1777
    %v1779 = vrot.slane %v1778, 2
    %v1780 = vadd.f32 %v1778, %v1779
    %v1781 = vrot.slane %v1780, 1
    %v1782 = vadd.f32 %v1780, %v1781
    %v1783 = vsel %vm364, %v1725, 0.0
    %v1784 = vsel %vm364, %v1726, 0.0
    %v1785 = vadd.f32 %v1783, %v1784
    %v1786 = vrot.slane %v1785, 4
    %v1787 = vadd.f32 %v1785, %v1786
    %v1788 = vrot.slane %v1787, 2
    %v1789 = vadd.f32 %v1787, %v1788
    %v1790 = vrot.slane %v1789, 1
    %v1791 = vadd.f32 %v1789, %v1790
    %v1792 = vsel %vm364, %v1727, 0.0
    %v1793 = vsel %vm364, %v1728, 0.0
    %v1794 = vadd.f32 %v1792, %v1793
    %v1795 = vrot.slane %v1794, 4
    %v1796 = vadd.f32 %v1794, %v1795
    %v1797 = vrot.slane %v1796, 2
    %v1798 = vadd.f32 %v1796, %v1797
    %v1799 = vrot.slane %v1798, 1
    %v1800 = vadd.f32 %v1798, %v1799
    %vm1809 = vcmask 1041409
    %v1810 = vsel %vm1809, %v1553, %v1544
    %vm1811 = vcmask 1042434
    %v1812 = vsel %vm1811, %v1562, %v1810
    %vm1813 = vcmask 1043459
    %v1814 = vsel %vm1813, %v1571, %v1812
    %vm1815 = vcmask 1044484
    %v1816 = vsel %vm1815, %v1580, %v1814
    %vm1817 = vcmask 1045509
    %v1818 = vsel %vm1817, %v1589, %v1816
    %vm1819 = vcmask 1046534
    %v1820 = vsel %vm1819, %v1598, %v1818
    %vm1821 = vcmask 1047559
    %v1822 = vsel %vm1821, %v1607, %v1820
    %v1832 = vsel %vm1809, %v1746, %v1737
    %v1833 = vsel %vm1811, %v1755, %v1832
    %v1834 = vsel %vm1813, %v1764, %v1833
    %v1835 = vsel %vm1815, %v1773, %v1834
    %v1836 = vsel %vm1817, %v1782, %v1835
    %v1837 = vsel %vm1819, %v1791, %v1836
    %v1838 = vsel %vm1821, %v1800, %v1837
    %v1840 = vld [vmem:[%s13] sm:$0x1]
    %v1842 = vlaneseq
    %v1843 = vshrl.u32 %v1842, 7
    %v1844 = vsub.s32 0, %v1843
    %v1845 = vrot.slane %v1840, %v1844
    %v1847 = vmul.f32 %v347, %v1845
    %v1848 = vmul.f32 %v348, %v1845
    %v1849 = vadd.f32 %v1822, %v1847
    %v1850 = vadd.f32 %v1838, %v1848
    %v1851 = vxor.u32 %v261, 2147483648
    %v1852 = vxor.u32 %v266, 2147483648
    %v1853 = vmul.f32 %v1851, 1.442695
    %v1854 = vpow.pop %v1853
    %v1855 = vmul.f32 %v1852, 1.442695
    %v1856 = vpow.pop %v1855
    %v1857 = vadd.f32 %v1854, 1.0
    %v1858 = vadd.f32 %v1856, 1.0
    %v1859 = vrcp.pop %v1857
    %v1860 = vmul.f32 1.0, %v1859
    %v1861 = vrcp.pop %v1858
    %v1862 = vmul.f32 1.0, %v1861
    %v1863 = vmul.f32 %v261, %v1860
    %v1864 = vmul.f32 %v266, %v1862
    %v1865 = vmul.f32 %v1849, %v1863
    %v1866 = vmul.f32 %v1850, %v1864
    %v1867 = vld [vmem:[%s14] sm:$0xff]
    %v1868 = vld [vmem:[%s14 + $0x8] sm:$0xff]
    %v1869 = vld [vmem:[%s14 + $0x10] sm:$0xff]
    %v1870 = vld [vmem:[%s14 + $0x18] sm:$0xff]
    %v1871 = vld [vmem:[%s14 + $0x20] sm:$0xff]
    %v1872 = vld [vmem:[%s14 + $0x28] sm:$0xff]
    %v1873 = vld [vmem:[%s14 + $0x30] sm:$0xff]
    %v1874 = vld [vmem:[%s14 + $0x38] sm:$0xff]
    %v1876 = vsel %vm364, %v1865, 0
    %v1879 = vsel %vm364, %v1866, 0
    %1881 = vmatprep.subr.mxu0 0.0
    %1882 = vmatpush1.msra.mxu0 %v1867
    %1883 = vmatprep.subr.mxu0 0.0
    %1884 = vmatpush1.msra.mxu0 %v1868
    %1885 = vmatprep.subr.mxu0 0.0
    %1886 = vmatpush1.msra.mxu0 %v1869
    %1887 = vmatprep.subr.mxu0 0.0
    %1888 = vmatpush1.msra.mxu0 %v1870
    %1889 = vmatprep.subr.mxu0 0.0
    %1890 = vmatpush1.msra.mxu0 %v1871
    %1891 = vmatprep.subr.mxu0 0.0
    %1892 = vmatpush1.msra.mxu0 %v1872
    %1893 = vmatprep.subr.mxu0 0.0
    %1894 = vmatpush1.msra.mxu0 %v1873
    %1895 = vmatprep.subr.mxu0 0.0
    %1896 = vmatpush1.msra.mxu0 %v1874
    %1897 = vmatprep.subr.mxu0 0.0
    %1898 = vmatpush1.msra.mxu0 0.0
    %1899 = vmatprep.subr.mxu0 0.0
    %1900 = vmatpush1.msra.mxu0 0.0
    %1901 = vmatprep.subr.mxu0 0.0
    %1902 = vmatpush1.msra.mxu0 0.0
    %1903 = vmatprep.subr.mxu0 0.0
    %1904 = vmatpush1.msra.mxu0 0.0
    %1905 = vmatprep.subr.mxu0 0.0
    %1906 = vmatpush1.msra.mxu0 0.0
    %1907 = vmatprep.subr.mxu0 0.0
    %1908 = vmatpush1.msra.mxu0 0.0
    %1909 = vmatprep.subr.mxu0 0.0
    %1910 = vmatpush1.msra.mxu0 0.0
    %1911 = vmatprep.subr.mxu0 0.0
    %1912 = vmatpush1.msra.mxu0 0.0
    %1913 = vmatprep.subr.mxu0 0.0
    %1914 = vmatpush1.msra.mxu0 0.0
    %1915 = vmatprep.subr.mxu0 0.0
    %1916 = vmatpush1.msra.mxu0 0.0
    %1917 = vmatprep.subr.mxu0 0.0
    %1918 = vmatpush1.msra.mxu0 0.0
    %1919 = vmatprep.subr.mxu0 0.0
    %1920 = vmatpush1.msra.mxu0 0.0
    %1921 = vmatprep.subr.mxu0 0.0
    %1922 = vmatpush1.msra.mxu0 0.0
    %1923 = vmatprep.subr.mxu0 0.0
    %1924 = vmatpush1.msra.mxu0 0.0
    %1925 = vmatprep.subr.mxu0 0.0
    %1926 = vmatpush1.msra.mxu0 0.0
    %1927 = vmatprep.subr.mxu0 0.0
    %1928 = vmatpush1.msra.mxu0 0.0
    %1929 = vmatprep.subr.mxu0 0.0
    %1930 = vmatpush1.msra.mxu0 0.0
    %1931 = vmatprep.subr.mxu0 0.0
    %1932 = vmatpush1.msra.mxu0 0.0
    %1933 = vmatprep.subr.mxu0 0.0
    %1934 = vmatpush1.msra.mxu0 0.0
    %1935 = vmatprep.subr.mxu0 0.0
    %1936 = vmatpush1.msra.mxu0 0.0
    %1937 = vmatprep.subr.mxu0 0.0
    %1938 = vmatpush1.msra.mxu0 0.0
    %1939 = vmatprep.subr.mxu0 0.0
    %1940 = vmatpush1.msra.mxu0 0.0
    %1941 = vmatprep.subr.mxu0 0.0
    %1942 = vmatpush1.msra.mxu0 0.0
    %1943 = vmatprep.subr.mxu0 0.0
    %1944 = vmatpush1.msra.mxu0 0.0
    %1945 = vmatprep.mubr.f32.mxu0 0.0
    %1946 = vmatmul.mubr.f32.gmra.mrb[0].mxu0 %v1876
    %v1947 = vpop.f32.mrb[0].mxu0
    %v1948 = vadd.f32 0.0, %v1947
    %v1949 = vpop.f32.mrb[0].mxu0
    %1950 = vmatprep.mubr.f32.mxu0 0.0
    %1951 = vmatmul.mubr.f32.gmra.mrb[0].mxu0 %v1879
    %v1952 = vpop.f32.mrb[0].mxu0
    %v1953 = vadd.f32 0.0, %v1952
    %v1954 = vpop.f32.mrb[0].mxu0
    %1955 = vdwg.mxu0
    %1956 = vst.msk [vmem:[#allocation5] sm:$0xff] %vm59, %v1948
    %1957 = vst.msk [vmem:[#allocation5 + $0x8] sm:$0xff] %vm59, %v1953
    %1958 = vst.msk [vmem:[%s16] sm:$0xff] %vm59, %v57
    %1959 = vst.msk [vmem:[%s16 + $0x8] sm:$0xff] %vm59, %v58
    // Predicated region
    $region69: #{mamba_model_forward.2} parent=1 // pred_check
      _
    $region70: #{mamba_model_forward.2} parent=1 // pred_check_branch
      %1961 = sbr.rel (0) target = $region72
    $region71: #{mamba_model_forward.2} parent=1 // pred_region
      %s1963 = ssub.s32 256, 256
      %1964 = vsyncadd [#allocation6], %s1963
      %s1965 = sshll.u32 [#allocation5], 4
      %s1966 = int_to_ptr.vmem [resolvable:$true] %s1965
      %1971 = dma.vmem_to_hbm [thread:$0]  %s1966, 256, %s15, [#allocation6], 128, 128, 8
    $region72: #{mamba_model_forward.2} parent=1 // pred_fallthru
      _
    // Predicated region
    $region73: #{mamba_model_forward.2} parent=1 // pred_check
      _
    $region74: #{mamba_model_forward.2} parent=1 // pred_check_branch
      %1973 = sbr.rel (0) target = $region76
    $region75: #{mamba_model_forward.2} parent=1 // pred_region
      _
    $region76: #{mamba_model_forward.2} parent=1 // pred_fallthru
      _
    // Predicated region
    $region77: #{mamba_model_forward.2} parent=1 // pred_check
      _
    $region78: #{mamba_model_forward.2} parent=1 // pred_check_branch
      %1975 = sbr.rel (0) target = $region80
    $region79: #{mamba_model_forward.2} parent=1 // pred_region
      %1976 = dma.done [#allocation6], 256
    $region80: #{mamba_model_forward.2} parent=1 // pred_fallthru
      _
    // Predicated region
    $region81: #{mamba_model_forward.2} parent=1 // pred_check
      _
    $region82: #{mamba_model_forward.2} parent=1 // pred_check_branch
      %1978 = sbr.rel (0) target = $region84
    $region83: #{mamba_model_forward.2} parent=1 // pred_region
      _
    $region84: #{mamba_model_forward.2} parent=1 // pred_fallthru
      _
    %1979 = vsyncpa [#allocation6], 1

</llo_original>
